<compile_context>
chip_gen: v6e
topology: v6e:2x2x1
jax: 0.10.0
libtpu: 0.0.40
codegen_flags: <defaults>
</compile_context>

<pallas_src>
import functools

import jax
import jax.numpy as jnp
import numpy as np
from jax.experimental import pallas as pl
from jax.experimental.pallas import tpu as pltpu

_MIB = 1024 * 1024


# --------------------------------------------------------------------------- #
# hardware helpers
# --------------------------------------------------------------------------- #
def _physical_vmem_bytes():
    """Per-core VMEM capacity; conservative 64 MiB (v7x) if the query fails."""
    try:
        return int(pltpu.get_tpu_info().vmem_capacity_bytes)
    except Exception:
        return 64 * _MIB


def _is_v5e():
    try:
        kind = jax.devices()[0].device_kind.lower()
        return ("v5 lite" in kind) or ("v5e" in kind) or ("v5litepod" in kind)
    except Exception:
        return False


def _row_multiple(itemsize):
    # Sublane packing of the 2nd-to-last dim: f32 -> 8, bf16 -> 16, int8/fp8 -> 32.
    return max(8, 32 // max(1, int(itemsize)))


def _pick_tile_rows(n, row_mult, per_row_bytes, fixed_bytes, budget_bytes,
                    target=2048):
    """Largest node tile fitting the VMEM budget; keeps grid_n >= 2 on big N."""
    if n <= row_mult:
        return n
    tn = max(row_mult, (min(target, n) // row_mult) * row_mult)
    while tn > row_mult and fixed_bytes + tn * per_row_bytes > budget_bytes:
        tn = max(row_mult, ((tn // 2) // row_mult) * row_mult)
    if n > 2 * row_mult:
        # Ensure at least 2 grid steps so the "parallel" axis feeds both
        # TensorCores on v7x (also helps pipelining on single-TC chips).
        half = -(-((n + 1) // 2) // row_mult) * row_mult
        tn = min(tn, half)
    return max(row_mult, min(tn, n))


# --------------------------------------------------------------------------- #
# kernels
# --------------------------------------------------------------------------- #
def _fused_kernel(*args, num_z, mxu_bf16):
    """Single pass: scores + M-way softmax + beta-weighted sum, z read once."""
    z_refs = args[:num_z]
    w1_ref = args[num_z]        # (D, H)  (bf16 when mxu_bf16)
    b1_ref = args[num_z + 1]    # (1, H)  f32
    w2_ref = args[num_z + 2]    # (1, H)  f32
    out_ref = args[num_z + 3]   # (N, D)

    n_rows = z_refs[0].shape[0]
    d = z_refs[0].shape[1]
    hdim = b1_ref.shape[1]

    w1 = w1_ref[...]
    w2 = w2_ref[...]
    b1 = jnp.broadcast_to(b1_ref[...], (n_rows, hdim))   # hoisted out of m-loop
    inv_n = jnp.float32(1.0 / n_rows)

    # Per-metapath logit  w_m = mean_n(tanh(z_m @ W1 + b1)) @ W2
    # (mean folded before the linear W2 -- exact).
    scores = []
    for m in range(num_z):
        zm = z_refs[m][...]
        zin = zm.astype(jnp.bfloat16) if mxu_bf16 else zm
        h = jnp.tanh(jnp.dot(zin, w1, preferred_element_type=jnp.float32) + b1)
        hmean = jnp.sum(h, axis=0, keepdims=True) * inv_n            # (1, H)
        scores.append(jnp.sum(hmean * w2, axis=1, keepdims=True))    # (1, 1)

    # Softmax over the (tiny, static) metapath axis -- fully unrolled.
    smax = scores[0]
    for m in range(1, num_z):
        smax = jnp.maximum(smax, scores[m])
    exps = [jnp.exp(s - smax) for s in scores]
    denom = exps[0]
    for m in range(1, num_z):
        denom = denom + exps[m]

    # out = sum_m beta_m * z_m  (beta broadcast lane-first, then sublanes).
    acc = None
    for m in range(num_z):
        beta_row = jnp.broadcast_to(exps[m] / denom, (1, d))          # (1, D)
        term = beta_row * z_refs[m][...].astype(jnp.float32)
        acc = term if acc is None else acc + term
    out_ref[...] = acc.astype(out_ref.dtype)


def _score_kernel(*args, num_z, rows_valid, block_rows, mxu_bf16):
    """Per-tile partial sums of tanh(z_m @ W1 + b1) over the node axis."""
    z_refs = args[:num_z]
    w1_ref = args[num_z]        # (D, H)
    b1_ref = args[num_z + 1]    # (1, H)
    out_ref = args[num_z + 2]   # (1, M, H) partial sums for this tile

    hdim = b1_ref.shape[1]
    w1 = w1_ref[...]
    b1 = jnp.broadcast_to(b1_ref[...], (block_rows, hdim))   # hoisted

    needs_mask = (rows_valid % block_rows) != 0
    if needs_mask:
        # All-true except on the final (ragged) tile.  A pl.when two-branch
        # gate was considered (perf review) but skipped: the select is
        # negligible under the HBM bound and gating would duplicate the body.
        row0 = pl.program_id(0) * block_rows
        rows = jax.lax.broadcasted_iota(jnp.int32, (block_rows, 1), 0) + row0
        mask = rows < rows_valid

    for m in range(num_z):
        zm = z_refs[m][...]
        if mxu_bf16:
            zm = zm.astype(jnp.bfloat16)
        h = jnp.tanh(jnp.dot(zm, w1, preferred_element_type=jnp.float32) + b1)
        if needs_mask:
            h = jnp.where(mask, h, 0.0)
        # Direct per-metapath store (no concat in the epilogue).
        out_ref[0, pl.ds(m, 1), :] = jnp.sum(h, axis=0, keepdims=True)


def _wsum_kernel(*args, num_z):
    """out_tile = sum_m beta[m] * z_m_tile (beta scalars live in SMEM)."""
    beta_ref = args[0]                 # (M,) in SMEM
    z_refs = args[1:1 + num_z]
    o_ref = args[1 + num_z]

    acc = beta_ref[0] * z_refs[0][...].astype(jnp.float32)
    for m in range(1, num_z):
        acc = acc + beta_ref[m] * z_refs[m][...].astype(jnp.float32)
    o_ref[...] = acc.astype(o_ref.dtype)


# --------------------------------------------------------------------------- #
# wrapper
# --------------------------------------------------------------------------- #
def semantic_attention(z_list, w1, b1, w2, nty=None, *,
                       score_matmul_bf16=None, force_two_pass=False,
                       tile_rows=None):
    """z_list: list of M arrays (N, D).  w1: (H, D), b1: (H,), w2: (1, H)."""
    del nty
    if len(z_list) == 0:
        return None

    num_z = len(z_list)
    n, d = z_list[0].shape
    hdim = w1.shape[0]
    z_dtype = z_list[0].dtype
    z_itemsize = jnp.dtype(z_dtype).itemsize
    out_itemsize = z_itemsize

    # bf16 MXU operands keep pass 1 mem-bound on v5e; neutral on v6e/v7x.
    mxu_bf16 = _is_v5e() if score_matmul_bf16 is None else bool(score_matmul_bf16)

    w1t = jnp.transpose(w1)                                  # (D, H)
    if mxu_bf16:
        w1t = w1t.astype(jnp.bfloat16)                       # pre-cast in wrapper
    b1_2d = b1.reshape(1, hdim).astype(jnp.float32)          # (1, H)
    w2_row = w2.reshape(1, hdim).astype(jnp.float32)         # (1, H)

    phys_vmem = _physical_vmem_bytes()

    # ---------- fused single-pass path (z read from HBM exactly once) --------
    w_bytes = d * hdim * jnp.dtype(w1t.dtype).itemsize + 2 * hdim * 4
    temp_bytes = (3 * n * hdim * 4) + (n * d * 4) + (n * d * 2 if mxu_bf16 else 0)
    fused_need = (num_z * n * d * z_itemsize + n * d * out_itemsize
                  + w_bytes + temp_bytes)
    fused_budget = max(16 * _MIB, phys_vmem // 2 - 8 * _MIB)

    if (not force_two_pass) and fused_need <= fused_budget:
        vmem_limit = int(max(32 * _MIB,
                             min(phys_vmem - 12 * _MIB,
                                 max(40 * _MIB, fused_need + 16 * _MIB))))
        vspec = pl.BlockSpec(memory_space=pltpu.MemorySpace.VMEM)
        kernel = functools.partial(_fused_kernel, num_z=num_z, mxu_bf16=mxu_bf16)
        return pl.pallas_call(
            kernel,
            out_shape=jax.ShapeDtypeStruct((n, d), z_dtype),
            in_specs=[vspec] * (num_z + 3),
            out_specs=vspec,
            compiler_params=pltpu.CompilerParams(vmem_limit_bytes=vmem_limit),
        )(*z_list, w1t, b1_2d, w2_row)

    # ---------- streaming two-pass path ---------------------------------------
    if phys_vmem >= 96 * _MIB:          # v5e / v6e: 128 MiB physical VMEM
        budget_bytes, vmem_limit = 88 * _MIB, 100 * _MIB
    else:                               # v7x: 64 MiB physical (32 MiB scoped def.)
        budget_bytes, vmem_limit = 32 * _MIB, 40 * _MIB

    row_mult = _row_multiple(z_itemsize)
    if tile_rows is not None:
        tile_n = int(min(tile_rows, n))
    else:
        per_row = (d * (2 * num_z * z_itemsize + 2 * out_itemsize)  # z + out tiles (dbl-buf)
                   + 2 * hdim * 4                                    # matmul/tanh temps
                   + (d * 2 if mxu_bf16 else 0))                     # bf16 tile copy
        fixed = (2 * d * hdim * jnp.dtype(w1t.dtype).itemsize        # resident W1
                 + 2 * (hdim + num_z * hdim) * 4                     # b1 + pass-1 out
                 + 256 * 1024)                                       # slack
        tile_n = _pick_tile_rows(n, row_mult, per_row, fixed, budget_bytes,
                                 target=2048)
    grid_n = pl.cdiv(n, tile_n)

    z_spec = pl.BlockSpec((tile_n, d), lambda i: (i, 0))
    cparams = pltpu.CompilerParams(
        dimension_semantics=("parallel",),
        vmem_limit_bytes=int(vmem_limit),
    )

    # ---- pass 1: streaming per-metapath score partial sums -------------------
    score_kernel = functools.partial(
        _score_kernel, num_z=num_z, rows_valid=n, block_rows=tile_n,
        mxu_bf16=mxu_bf16)
    hpart = pl.pallas_call(
        score_kernel,
        out_shape=jax.ShapeDtypeStruct((grid_n, num_z, hdim), jnp.float32),
        grid=(grid_n,),
        in_specs=[z_spec] * num_z + [
            pl.BlockSpec((d, hdim), lambda i: (0, 0)),    # W1^T (resident)
            pl.BlockSpec((1, hdim), lambda i: (0, 0)),    # b1   (resident)
        ],
        out_specs=pl.BlockSpec((1, num_z, hdim), lambda i: (i, 0, 0)),
        compiler_params=cparams,
    )(*z_list, w1t, b1_2d)

    # Tiny epilogue on (M, H): fold the mean before W2 (exact), then softmax.
    hmean = jnp.sum(hpart, axis=0) / jnp.float32(n)             # (M, H)
    scores = jnp.sum(hmean * w2_row, axis=1)                    # (M,)
    beta = jax.nn.softmax(scores, axis=0).astype(jnp.float32)   # (M,)

    # ---- pass 2: streaming beta-weighted sum over metapaths ------------------
    wsum_kernel = functools.partial(_wsum_kernel, num_z=num_z)
    out = pl.pallas_call(
        wsum_kernel,
        out_shape=jax.ShapeDtypeStruct((n, d), z_dtype),
        grid=(grid_n,),
        in_specs=[pl.BlockSpec(memory_space=pltpu.MemorySpace.SMEM)]   # beta
                 + [z_spec] * num_z,
        out_specs=z_spec,
        compiler_params=cparams,
    )(beta, *z_list)
    return out


# --------------------------------------------------------------------------- #
# pure-JAX reference mirroring the PyTorch module
# --------------------------------------------------------------------------- #
def semantic_attention_ref(z_list, w1, b1, w2):
    z = jnp.stack(z_list, axis=1)                           # (N, M, D)
    hh = jnp.tanh(jnp.einsum("nmd,hd->nmh", z, w1) + b1)    # (N, M, H)
    s = jnp.einsum("nmh,oh->nmo", hh, w2)                   # (N, M, 1)
    w_ = jnp.mean(s, axis=0)                                # (M, 1)
    beta = jax.nn.softmax(w_, axis=0)                       # (M, 1)
    return jnp.sum(beta[None, :, :] * z, axis=1)            # (N, D)


if __name__ == "__main__":
    # M metapaths, N nodes, in_size D (lane-dense), hidden H (module default).
    M, N, D, H = 3, 1024, 256, 128

    key = jax.random.PRNGKey(0)
    kz, kw1, kb1, kw2 = jax.random.split(key, 4)

    z_list = [
        jax.random.normal(jax.random.fold_in(kz, m), (N, D), dtype=jnp.float32)
        for m in range(M)
    ]
    # nn.Linear(in_size, hidden): weight (H, D), bias (H,)
    w1 = jax.random.normal(kw1, (H, D), dtype=jnp.float32) * 0.1
    b1 = jax.random.normal(kb1, (H,), dtype=jnp.float32) * 0.1
    # nn.Linear(hidden, 1, bias=False): weight (1, H)
    w2 = jax.random.normal(kw2, (1, H), dtype=jnp.float32) * 0.1

    # bf16 MXU operands are auto-enabled on v5e -> loosen tolerance there.
    tol = 1.5e-2 if _is_v5e() else 2e-3

    # 1) fused single-pass path (z resident in VMEM, one HBM read of z).
    out = jax.block_until_ready(semantic_attention(z_list, w1, b1, w2))
    ref = jax.block_until_ready(semantic_attention_ref(z_list, w1, b1, w2))
    np.testing.assert_allclose(np.asarray(out), np.asarray(ref),
                               rtol=tol, atol=tol)

    # 2) streaming two-pass path (forced; ragged N exercises last-tile masking).
    N2 = 1000
    z_list2 = [
        jax.random.normal(jax.random.fold_in(kz, 100 + m), (N2, D),
                          dtype=jnp.float32)
        for m in range(M)
    ]
    out2 = jax.block_until_ready(
        semantic_attention(z_list2, w1, b1, w2,
                           force_two_pass=True, tile_rows=256))
    ref2 = jax.block_until_ready(semantic_attention_ref(z_list2, w1, b1, w2))
    np.testing.assert_allclose(np.asarray(out2), np.asarray(ref2),
                               rtol=tol, atol=tol)

    print("KERNEL_OK")
</pallas_src>

<mosaic_0001>
module attributes {stable_mosaic.version = 11 : i64} {
  func.func @_fused_kernel(%arg0: memref<1024x256xf32, #tpu.memory_space<vmem>>, %arg1: memref<1024x256xf32, #tpu.memory_space<vmem>>, %arg2: memref<1024x256xf32, #tpu.memory_space<vmem>>, %arg3: memref<256x128xf32, #tpu.memory_space<vmem>>, %arg4: memref<1x128xf32, #tpu.memory_space<vmem>>, %arg5: memref<1x128xf32, #tpu.memory_space<vmem>>, %arg6: memref<1024x256xf32, #tpu.memory_space<vmem>>) attributes {dimension_semantics = [], scalar_prefetch = 0 : i64, scratch_operands = 0 : i64, tpu.core_type = #tpu.core_type<tc>} {
    %c0 = arith.constant 0 : index
    %c0_0 = arith.constant 0 : index
    %0 = vector.load %arg3[%c0, %c0_0] : memref<256x128xf32, #tpu.memory_space<vmem>>, vector<256x128xf32>
    %c0_1 = arith.constant 0 : index
    %c0_2 = arith.constant 0 : index
    %1 = vector.load %arg5[%c0_1, %c0_2] : memref<1x128xf32, #tpu.memory_space<vmem>>, vector<1x128xf32>
    %c0_3 = arith.constant 0 : index
    %c0_4 = arith.constant 0 : index
    %2 = vector.load %arg4[%c0_3, %c0_4] : memref<1x128xf32, #tpu.memory_space<vmem>>, vector<1x128xf32>
    %3 = vector.shape_cast %2 : vector<1x128xf32> to vector<1x128xf32>
    %4 = vector.broadcast %3 : vector<1x128xf32> to vector<1024x128xf32>
    %c0_5 = arith.constant 0 : index
    %c0_6 = arith.constant 0 : index
    %5 = vector.load %arg0[%c0_5, %c0_6] : memref<1024x256xf32, #tpu.memory_space<vmem>>, vector<1024x256xf32>
    %cst = arith.constant dense<0.000000e+00> : vector<1024x128xf32>
    %6 = tpu.matmul %5, %0, %cst {dimension_numbers = #tpu.dot_dimension_numbers<[1], [0], [0], [1], [0, 0, 1, 1], [], []>} : vector<1024x256xf32>, vector<256x128xf32>, vector<1024x128xf32> -> vector<1024x128xf32>
    %7 = arith.addf %6, %4 : vector<1024x128xf32>
    %8 = math.tanh %7 : vector<1024x128xf32>
    %cst_7 = arith.constant dense<0.000000e+00> : vector<128xf32>
    %9 = vector.multi_reduction <add>, %8, %cst_7 [0] : vector<1024x128xf32> to vector<128xf32>
    %10 = vector.shape_cast %9 : vector<128xf32> to vector<1x128xf32>
    %cst_8 = arith.constant 9.765625E-4 : f32
    %11 = vector.broadcast %cst_8 : f32 to vector<1x128xf32>
    %12 = arith.mulf %10, %11 : vector<1x128xf32>
    %13 = arith.mulf %12, %1 : vector<1x128xf32>
    %cst_9 = arith.constant dense<0.000000e+00> : vector<1xf32>
    %14 = vector.multi_reduction <add>, %13, %cst_9 [1] : vector<1x128xf32> to vector<1xf32>
    %15 = vector.shape_cast %14 : vector<1xf32> to vector<1x1xf32>
    %c0_10 = arith.constant 0 : index
    %c0_11 = arith.constant 0 : index
    %16 = vector.load %arg1[%c0_10, %c0_11] : memref<1024x256xf32, #tpu.memory_space<vmem>>, vector<1024x256xf32>
    %cst_12 = arith.constant dense<0.000000e+00> : vector<1024x128xf32>
    %17 = tpu.matmul %16, %0, %cst_12 {dimension_numbers = #tpu.dot_dimension_numbers<[1], [0], [0], [1], [0, 0, 1, 1], [], []>} : vector<1024x256xf32>, vector<256x128xf32>, vector<1024x128xf32> -> vector<1024x128xf32>
    %18 = arith.addf %17, %4 : vector<1024x128xf32>
    %19 = math.tanh %18 : vector<1024x128xf32>
    %cst_13 = arith.constant dense<0.000000e+00> : vector<128xf32>
    %20 = vector.multi_reduction <add>, %19, %cst_13 [0] : vector<1024x128xf32> to vector<128xf32>
    %21 = vector.shape_cast %20 : vector<128xf32> to vector<1x128xf32>
    %cst_14 = arith.constant 9.765625E-4 : f32
    %22 = vector.broadcast %cst_14 : f32 to vector<1x128xf32>
    %23 = arith.mulf %21, %22 : vector<1x128xf32>
    %24 = arith.mulf %23, %1 : vector<1x128xf32>
    %cst_15 = arith.constant dense<0.000000e+00> : vector<1xf32>
    %25 = vector.multi_reduction <add>, %24, %cst_15 [1] : vector<1x128xf32> to vector<1xf32>
    %26 = vector.shape_cast %25 : vector<1xf32> to vector<1x1xf32>
    %c0_16 = arith.constant 0 : index
    %c0_17 = arith.constant 0 : index
    %27 = vector.load %arg2[%c0_16, %c0_17] : memref<1024x256xf32, #tpu.memory_space<vmem>>, vector<1024x256xf32>
    %cst_18 = arith.constant dense<0.000000e+00> : vector<1024x128xf32>
    %28 = tpu.matmul %27, %0, %cst_18 {dimension_numbers = #tpu.dot_dimension_numbers<[1], [0], [0], [1], [0, 0, 1, 1], [], []>} : vector<1024x256xf32>, vector<256x128xf32>, vector<1024x128xf32> -> vector<1024x128xf32>
    %29 = arith.addf %28, %4 : vector<1024x128xf32>
    %30 = math.tanh %29 : vector<1024x128xf32>
    %cst_19 = arith.constant dense<0.000000e+00> : vector<128xf32>
    %31 = vector.multi_reduction <add>, %30, %cst_19 [0] : vector<1024x128xf32> to vector<128xf32>
    %32 = vector.shape_cast %31 : vector<128xf32> to vector<1x128xf32>
    %cst_20 = arith.constant 9.765625E-4 : f32
    %33 = vector.broadcast %cst_20 : f32 to vector<1x128xf32>
    %34 = arith.mulf %32, %33 : vector<1x128xf32>
    %35 = arith.mulf %34, %1 : vector<1x128xf32>
    %cst_21 = arith.constant dense<0.000000e+00> : vector<1xf32>
    %36 = vector.multi_reduction <add>, %35, %cst_21 [1] : vector<1x128xf32> to vector<1xf32>
    %37 = vector.shape_cast %36 : vector<1xf32> to vector<1x1xf32>
    %38 = arith.maximumf %15, %26 : vector<1x1xf32>
    %39 = arith.maximumf %38, %37 : vector<1x1xf32>
    %40 = arith.subf %15, %39 : vector<1x1xf32>
    %41 = math.exp %40 : vector<1x1xf32>
    %42 = arith.subf %26, %39 : vector<1x1xf32>
    %43 = math.exp %42 : vector<1x1xf32>
    %44 = arith.subf %37, %39 : vector<1x1xf32>
    %45 = math.exp %44 : vector<1x1xf32>
    %46 = arith.addf %41, %43 : vector<1x1xf32>
    %47 = arith.addf %46, %45 : vector<1x1xf32>
    %48 = arith.divf %41, %47 : vector<1x1xf32>
    %49 = vector.shape_cast %48 : vector<1x1xf32> to vector<1x1xf32>
    %50 = vector.broadcast %49 : vector<1x1xf32> to vector<1x256xf32>
    %c0_22 = arith.constant 0 : index
    %c0_23 = arith.constant 0 : index
    %51 = vector.load %arg0[%c0_22, %c0_23] : memref<1024x256xf32, #tpu.memory_space<vmem>>, vector<1024x256xf32>
    %52 = vector.broadcast %50 : vector<1x256xf32> to vector<1024x256xf32>
    %53 = arith.mulf %52, %51 : vector<1024x256xf32>
    %54 = arith.divf %43, %47 : vector<1x1xf32>
    %55 = vector.shape_cast %54 : vector<1x1xf32> to vector<1x1xf32>
    %56 = vector.broadcast %55 : vector<1x1xf32> to vector<1x256xf32>
    %c0_24 = arith.constant 0 : index
    %c0_25 = arith.constant 0 : index
    %57 = vector.load %arg1[%c0_24, %c0_25] : memref<1024x256xf32, #tpu.memory_space<vmem>>, vector<1024x256xf32>
    %58 = vector.broadcast %56 : vector<1x256xf32> to vector<1024x256xf32>
    %59 = arith.mulf %58, %57 : vector<1024x256xf32>
    %60 = arith.addf %53, %59 : vector<1024x256xf32>
    %61 = arith.divf %45, %47 : vector<1x1xf32>
    %62 = vector.shape_cast %61 : vector<1x1xf32> to vector<1x1xf32>
    %63 = vector.broadcast %62 : vector<1x1xf32> to vector<1x256xf32>
    %c0_26 = arith.constant 0 : index
    %c0_27 = arith.constant 0 : index
    %64 = vector.load %arg2[%c0_26, %c0_27] : memref<1024x256xf32, #tpu.memory_space<vmem>>, vector<1024x256xf32>
    %65 = vector.broadcast %63 : vector<1x256xf32> to vector<1024x256xf32>
    %66 = arith.mulf %65, %64 : vector<1024x256xf32>
    %67 = arith.addf %60, %66 : vector<1024x256xf32>
    %c0_28 = arith.constant 0 : index
    %c0_29 = arith.constant 0 : index
    %68 = vector.load %arg6[%c0_28, %c0_29] : memref<1024x256xf32, #tpu.memory_space<vmem>>, vector<1024x256xf32>
    tpu.vector_store %arg6[%c0_28, %c0_29], %67 {strides = array<i32>} : memref<1024x256xf32, #tpu.memory_space<vmem>>, vector<1024x256xf32>,
    return
  }
}

</mosaic_0001>

<llo_original>
// kernel: tpu_custom_call.1
$region0: #{tpu_custom_call.1}
  #allocation0 [shape = 'u32[]', space=smem, size = 0x4, offset = 0x4, fixed_abs, tag = 'smem constant byte address 0x4 - core index']
  #allocation1 [shape = 'u32[144,128]{1,0:T(1,128)}', space=vmem, size = 0x12000, scoped, tag = 'internal scratch']
  %s0 = inlined_call_operand.hbm [shape: f32[1024,256], index: 0, kind: input, shape index: {}]
  %s1 = inlined_call_operand.hbm [shape: f32[1024,256], index: 1, kind: input, shape index: {}]
  %s2 = inlined_call_operand.hbm [shape: f32[1024,256], index: 2, kind: input, shape index: {}]
  %s3 = inlined_call_operand.hbm [shape: f32[256,128], index: 3, kind: input, shape index: {}]
  %s4 = inlined_call_operand.vmem [shape: f32[1,128], index: 4, kind: input, shape index: {}]
  %s5 = inlined_call_operand.vmem [shape: f32[1,128], index: 5, kind: input, shape index: {}]
  %s6 = inlined_call_operand.hbm [shape: f32[1024,256], index: 6, kind: output, shape index: {}]
  %s7 = sld [smem:[#allocation0]]
  $region50: #{tpu_custom_call.1} parent=0
    _
  %s9 = ssub.s32 1, %s7
  %s10 = scalar_select 0, %s9, %s7
  $region1: #{tpu_custom_call.1} parent=0
    #allocation2 [shape = 'u8[1048576]{0}', space=vmem, size = 0x100000, scoped, tag = 'input window, operand 0, single buffered']
    #allocation3 [shape = 's32[1]{0}', space=sflag, size = 0x4, scoped, tag = 'scoped memory for tpu_custom_call.1']
    #allocation4 [shape = 's32[1]{0}', space=sflag, size = 0x4, scoped, tag = 'scoped memory for tpu_custom_call.1']
    #allocation5 [shape = 'u8[1048576]{0}', space=vmem, size = 0x100000, scoped, tag = 'input window, operand 1, single buffered']
    #allocation6 [shape = 's32[1]{0}', space=sflag, size = 0x4, scoped, tag = 'scoped memory for tpu_custom_call.1']
    #allocation7 [shape = 'u8[1048576]{0}', space=vmem, size = 0x100000, scoped, tag = 'input window, operand 2, single buffered']
    #allocation8 [shape = 'u8[131072]{0}', space=vmem, size = 0x20000, scoped, tag = 'input window, operand 3, single buffered']
    #allocation9 [shape = 's32[1]{0}', space=sflag, size = 0x4, scoped, tag = 'scoped memory for tpu_custom_call.1']
    #allocation10 [shape = 'u8[1048576]{0}', space=vmem, size = 0x100000, scoped, tag = 'output window, operand 0, single buffered']
    %11 = vsyncpa [#allocation3], 0
    %12 = vsyncpa [#allocation6], 0
    %13 = vsyncpa [#allocation9], 0
    %14 = vsyncpa [#allocation4], 0
    // Predicated region
    $region2: #{tpu_custom_call.1} parent=1 // pred_check
      _
    $region3: #{tpu_custom_call.1} parent=1 // pred_check_branch
      %16 = sbr.rel (0) target = $region5
    $region4: #{tpu_custom_call.1} parent=1 // pred_region
      %s18 = ssub.s32 32768, 32768
      %19 = vsyncadd [#allocation3], %s18
      %s20 = sshll.u32 [#allocation2], 4
      %s21 = int_to_ptr.vmem [resolvable:$true] %s20
      %26 = dma.hbm_to_vmem [thread:$0]  %s0, 32768, %s21, [#allocation3], 256, 256, 16
    $region5: #{tpu_custom_call.1} parent=1 // pred_fallthru
      _
    // Predicated region
    $region6: #{tpu_custom_call.1} parent=1 // pred_check
      _
    $region7: #{tpu_custom_call.1} parent=1 // pred_check_branch
      %28 = sbr.rel (0) target = $region9
    $region8: #{tpu_custom_call.1} parent=1 // pred_region
      %s30 = ssub.s32 32768, 32768
      %31 = vsyncadd [#allocation6], %s30
      %s32 = sshll.u32 [#allocation5], 4
      %s33 = int_to_ptr.vmem [resolvable:$true] %s32
      %38 = dma.hbm_to_vmem [thread:$0]  %s1, 32768, %s33, [#allocation6], 256, 256, 16
    $region9: #{tpu_custom_call.1} parent=1 // pred_fallthru
      _
    // Predicated region
    $region10: #{tpu_custom_call.1} parent=1 // pred_check
      _
    $region11: #{tpu_custom_call.1} parent=1 // pred_check_branch
      %40 = sbr.rel (0) target = $region13
    $region12: #{tpu_custom_call.1} parent=1 // pred_region
      %s42 = ssub.s32 32768, 32768
      %43 = vsyncadd [#allocation6], %s42
      %s44 = sshll.u32 [#allocation7], 4
      %s45 = int_to_ptr.vmem [resolvable:$true] %s44
      %50 = dma.hbm_to_vmem [thread:$0]  %s2, 32768, %s45, [#allocation6], 256, 256, 16
    $region13: #{tpu_custom_call.1} parent=1 // pred_fallthru
      _
    // Predicated region
    $region14: #{tpu_custom_call.1} parent=1 // pred_check
      _
    $region15: #{tpu_custom_call.1} parent=1 // pred_check_branch
      %52 = sbr.rel (0) target = $region17
    $region16: #{tpu_custom_call.1} parent=1 // pred_region
      %s54 = ssub.s32 4096, 4096
      %55 = vsyncadd [#allocation9], %s54
      %s56 = sshll.u32 [#allocation8], 4
      %s57 = int_to_ptr.vmem [resolvable:$true] %s56
      %62 = dma.hbm_to_vmem [thread:$0]  %s3, 4096, %s57, [#allocation9], 128, 128, 8
    $region17: #{tpu_custom_call.1} parent=1 // pred_fallthru
      _
    // Predicated region
    $region18: #{tpu_custom_call.1} parent=1 // pred_check
      _
    $region19: #{tpu_custom_call.1} parent=1 // pred_check_branch
      %64 = sbr.rel (0) target = $region21
    $region20: #{tpu_custom_call.1} parent=1 // pred_region
      _
    $region21: #{tpu_custom_call.1} parent=1 // pred_fallthru
      _
    // Predicated region
    $region22: #{tpu_custom_call.1} parent=1 // pred_check
      _
    $region23: #{tpu_custom_call.1} parent=1 // pred_check_branch
      %66 = sbr.rel (0) target = $region25
    $region24: #{tpu_custom_call.1} parent=1 // pred_region
      _
    $region25: #{tpu_custom_call.1} parent=1 // pred_fallthru
      _
    // Predicated region
    $region26: #{tpu_custom_call.1} parent=1 // pred_check
      _
    $region27: #{tpu_custom_call.1} parent=1 // pred_check_branch
      %68 = sbr.rel (0) target = $region29
    $region28: #{tpu_custom_call.1} parent=1 // pred_region
      %69 = dma.done [#allocation3], 32768
    $region29: #{tpu_custom_call.1} parent=1 // pred_fallthru
      _
    // Predicated region
    $region30: #{tpu_custom_call.1} parent=1 // pred_check
      _
    $region31: #{tpu_custom_call.1} parent=1 // pred_check_branch
      %71 = sbr.rel (0) target = $region33
    $region32: #{tpu_custom_call.1} parent=1 // pred_region
      %72 = dma.done [#allocation6], 32768
    $region33: #{tpu_custom_call.1} parent=1 // pred_fallthru
      _
    // Predicated region
    $region34: #{tpu_custom_call.1} parent=1 // pred_check
      _
    $region35: #{tpu_custom_call.1} parent=1 // pred_check_branch
      %74 = sbr.rel (0) target = $region37
    $region36: #{tpu_custom_call.1} parent=1 // pred_region
      %75 = dma.done [#allocation6], 32768
    $region37: #{tpu_custom_call.1} parent=1 // pred_fallthru
      _
    // Predicated region
    $region38: #{tpu_custom_call.1} parent=1 // pred_check
      _
    $region39: #{tpu_custom_call.1} parent=1 // pred_check_branch
      %77 = sbr.rel (0) target = $region41
    $region40: #{tpu_custom_call.1} parent=1 // pred_region
      %78 = dma.done [#allocation9], 4096
    $region41: #{tpu_custom_call.1} parent=1 // pred_fallthru
      _
    %v79 = vld [vmem:[#allocation8] sm:$0xff]
    %v80 = vld [vmem:[#allocation8 + $0x8] sm:$0xff]
    %v81 = vld [vmem:[#allocation8 + $0x10] sm:$0xff]
    %v82 = vld [vmem:[#allocation8 + $0x18] sm:$0xff]
    %v83 = vld [vmem:[#allocation8 + $0x20] sm:$0xff]
    %v84 = vld [vmem:[#allocation8 + $0x28] sm:$0xff]
    %v85 = vld [vmem:[#allocation8 + $0x30] sm:$0xff]
    %v86 = vld [vmem:[#allocation8 + $0x38] sm:$0xff]
    %v87 = vld [vmem:[#allocation8 + $0x40] sm:$0xff]
    %v88 = vld [vmem:[#allocation8 + $0x48] sm:$0xff]
    %v89 = vld [vmem:[#allocation8 + $0x50] sm:$0xff]
    %v90 = vld [vmem:[#allocation8 + $0x58] sm:$0xff]
    %v91 = vld [vmem:[#allocation8 + $0x60] sm:$0xff]
    %v92 = vld [vmem:[#allocation8 + $0x68] sm:$0xff]
    %v93 = vld [vmem:[#allocation8 + $0x70] sm:$0xff]
    %v94 = vld [vmem:[#allocation8 + $0x78] sm:$0xff]
    %v95 = vld [vmem:[#allocation8 + $0x80] sm:$0xff]
    %v96 = vld [vmem:[#allocation8 + $0x88] sm:$0xff]
    %v97 = vld [vmem:[#allocation8 + $0x90] sm:$0xff]
    %v98 = vld [vmem:[#allocation8 + $0x98] sm:$0xff]
    %v99 = vld [vmem:[#allocation8 + $0xa0] sm:$0xff]
    %v100 = vld [vmem:[#allocation8 + $0xa8] sm:$0xff]
    %v101 = vld [vmem:[#allocation8 + $0xb0] sm:$0xff]
    %v102 = vld [vmem:[#allocation8 + $0xb8] sm:$0xff]
    %v103 = vld [vmem:[#allocation8 + $0xc0] sm:$0xff]
    %v104 = vld [vmem:[#allocation8 + $0xc8] sm:$0xff]
    %v105 = vld [vmem:[#allocation8 + $0xd0] sm:$0xff]
    %v106 = vld [vmem:[#allocation8 + $0xd8] sm:$0xff]
    %v107 = vld [vmem:[#allocation8 + $0xe0] sm:$0xff]
    %v108 = vld [vmem:[#allocation8 + $0xe8] sm:$0xff]
    %v109 = vld [vmem:[#allocation8 + $0xf0] sm:$0xff]
    %v110 = vld [vmem:[#allocation8 + $0xf8] sm:$0xff]
    %v111 = vld [vmem:[%s5] sm:$0x1]
    %v112 = vld [vmem:[%s4] sm:$0x1]
    %v114 = vlaneseq
    %v115 = vshrl.u32 %v114, 7
    %v116 = vsub.s32 0, %v115
    %v117 = vrot.slane %v112, %v116
    %v119 = vld [vmem:[#allocation2] sm:$0xff]
    %v120 = vld [vmem:[#allocation2 + $0x8] sm:$0xff]
    %v121 = vld [vmem:[#allocation2 + $0x10] sm:$0xff]
    %v122 = vld [vmem:[#allocation2 + $0x18] sm:$0xff]
    %v123 = vld [vmem:[#allocation2 + $0x20] sm:$0xff]
    %v124 = vld [vmem:[#allocation2 + $0x28] sm:$0xff]
    %v125 = vld [vmem:[#allocation2 + $0x30] sm:$0xff]
    %v126 = vld [vmem:[#allocation2 + $0x38] sm:$0xff]
    %v127 = vld [vmem:[#allocation2 + $0x40] sm:$0xff]
    %v128 = vld [vmem:[#allocation2 + $0x48] sm:$0xff]
    %v129 = vld [vmem:[#allocation2 + $0x50] sm:$0xff]
    %v130 = vld [vmem:[#allocation2 + $0x58] sm:$0xff]
    %v131 = vld [vmem:[#allocation2 + $0x60] sm:$0xff]
    %v132 = vld [vmem:[#allocation2 + $0x68] sm:$0xff]
    %v133 = vld [vmem:[#allocation2 + $0x70] sm:$0xff]
    %v134 = vld [vmem:[#allocation2 + $0x78] sm:$0xff]
    %v135 = vld [vmem:[#allocation2 + $0x80] sm:$0xff]
    %v136 = vld [vmem:[#allocation2 + $0x88] sm:$0xff]
    %v137 = vld [vmem:[#allocation2 + $0x90] sm:$0xff]
    %v138 = vld [vmem:[#allocation2 + $0x98] sm:$0xff]
    %v139 = vld [vmem:[#allocation2 + $0xa0] sm:$0xff]
    %v140 = vld [vmem:[#allocation2 + $0xa8] sm:$0xff]
    %v141 = vld [vmem:[#allocation2 + $0xb0] sm:$0xff]
    %v142 = vld [vmem:[#allocation2 + $0xb8] sm:$0xff]
    %v143 = vld [vmem:[#allocation2 + $0xc0] sm:$0xff]
    %v144 = vld [vmem:[#allocation2 + $0xc8] sm:$0xff]
    %v145 = vld [vmem:[#allocation2 + $0xd0] sm:$0xff]
    %v146 = vld [vmem:[#allocation2 + $0xd8] sm:$0xff]
    %v147 = vld [vmem:[#allocation2 + $0xe0] sm:$0xff]
    %v148 = vld [vmem:[#allocation2 + $0xe8] sm:$0xff]
    %v149 = vld [vmem:[#allocation2 + $0xf0] sm:$0xff]
    %v150 = vld [vmem:[#allocation2 + $0xf8] sm:$0xff]
    %v151 = vld [vmem:[#allocation2 + $0x100] sm:$0xff]
    %v152 = vld [vmem:[#allocation2 + $0x108] sm:$0xff]
    %v153 = vld [vmem:[#allocation2 + $0x110] sm:$0xff]
    %v154 = vld [vmem:[#allocation2 + $0x118] sm:$0xff]
    %v155 = vld [vmem:[#allocation2 + $0x120] sm:$0xff]
    %v156 = vld [vmem:[#allocation2 + $0x128] sm:$0xff]
    %v157 = vld [vmem:[#allocation2 + $0x130] sm:$0xff]
    %v158 = vld [vmem:[#allocation2 + $0x138] sm:$0xff]
    %v159 = vld [vmem:[#allocation2 + $0x140] sm:$0xff]
    %v160 = vld [vmem:[#allocation2 + $0x148] sm:$0xff]
    %v161 = vld [vmem:[#allocation2 + $0x150] sm:$0xff]
    %v162 = vld [vmem:[#allocation2 + $0x158] sm:$0xff]
    %v163 = vld [vmem:[#allocation2 + $0x160] sm:$0xff]
    %v164 = vld [vmem:[#allocation2 + $0x168] sm:$0xff]
    %v165 = vld [vmem:[#allocation2 + $0x170] sm:$0xff]
    %v166 = vld [vmem:[#allocation2 + $0x178] sm:$0xff]
    %v167 = vld [vmem:[#allocation2 + $0x180] sm:$0xff]
    %v168 = vld [vmem:[#allocation2 + $0x188] sm:$0xff]
    %v169 = vld [vmem:[#allocation2 + $0x190] sm:$0xff]
    %v170 = vld [vmem:[#allocation2 + $0x198] sm:$0xff]
    %v171 = vld [vmem:[#allocation2 + $0x1a0] sm:$0xff]
    %v172 = vld [vmem:[#allocation2 + $0x1a8] sm:$0xff]
    %v173 = vld [vmem:[#allocation2 + $0x1b0] sm:$0xff]
    %v174 = vld [vmem:[#allocation2 + $0x1b8] sm:$0xff]
    %v175 = vld [vmem:[#allocation2 + $0x1c0] sm:$0xff]
    %v176 = vld [vmem:[#allocation2 + $0x1c8] sm:$0xff]
    %v177 = vld [vmem:[#allocation2 + $0x1d0] sm:$0xff]
    %v178 = vld [vmem:[#allocation2 + $0x1d8] sm:$0xff]
    %v179 = vld [vmem:[#allocation2 + $0x1e0] sm:$0xff]
    %v180 = vld [vmem:[#allocation2 + $0x1e8] sm:$0xff]
    %v181 = vld [vmem:[#allocation2 + $0x1f0] sm:$0xff]
    %v182 = vld [vmem:[#allocation2 + $0x1f8] sm:$0xff]
    %v183 = vld [vmem:[#allocation2 + $0x200] sm:$0xff]
    %v184 = vld [vmem:[#allocation2 + $0x208] sm:$0xff]
    %v185 = vld [vmem:[#allocation2 + $0x210] sm:$0xff]
    %v186 = vld [vmem:[#allocation2 + $0x218] sm:$0xff]
    %v187 = vld [vmem:[#allocation2 + $0x220] sm:$0xff]
    %v188 = vld [vmem:[#allocation2 + $0x228] sm:$0xff]
    %v189 = vld [vmem:[#allocation2 + $0x230] sm:$0xff]
    %v190 = vld [vmem:[#allocation2 + $0x238] sm:$0xff]
    %v191 = vld [vmem:[#allocation2 + $0x240] sm:$0xff]
    %v192 = vld [vmem:[#allocation2 + $0x248] sm:$0xff]
    %v193 = vld [vmem:[#allocation2 + $0x250] sm:$0xff]
    %v194 = vld [vmem:[#allocation2 + $0x258] sm:$0xff]
    %v195 = vld [vmem:[#allocation2 + $0x260] sm:$0xff]
    %v196 = vld [vmem:[#allocation2 + $0x268] sm:$0xff]
    %v197 = vld [vmem:[#allocation2 + $0x270] sm:$0xff]
    %v198 = vld [vmem:[#allocation2 + $0x278] sm:$0xff]
    %v199 = vld [vmem:[#allocation2 + $0x280] sm:$0xff]
    %v200 = vld [vmem:[#allocation2 + $0x288] sm:$0xff]
    %v201 = vld [vmem:[#allocation2 + $0x290] sm:$0xff]
    %v202 = vld [vmem:[#allocation2 + $0x298] sm:$0xff]
    %v203 = vld [vmem:[#allocation2 + $0x2a0] sm:$0xff]
    %v204 = vld [vmem:[#allocation2 + $0x2a8] sm:$0xff]
    %v205 = vld [vmem:[#allocation2 + $0x2b0] sm:$0xff]
    %v206 = vld [vmem:[#allocation2 + $0x2b8] sm:$0xff]
    %v207 = vld [vmem:[#allocation2 + $0x2c0] sm:$0xff]
    %v208 = vld [vmem:[#allocation2 + $0x2c8] sm:$0xff]
    %v209 = vld [vmem:[#allocation2 + $0x2d0] sm:$0xff]
    %v210 = vld [vmem:[#allocation2 + $0x2d8] sm:$0xff]
    %v211 = vld [vmem:[#allocation2 + $0x2e0] sm:$0xff]
    %v212 = vld [vmem:[#allocation2 + $0x2e8] sm:$0xff]
    %v213 = vld [vmem:[#allocation2 + $0x2f0] sm:$0xff]
    %v214 = vld [vmem:[#allocation2 + $0x2f8] sm:$0xff]
    %v215 = vld [vmem:[#allocation2 + $0x300] sm:$0xff]
    %v216 = vld [vmem:[#allocation2 + $0x308] sm:$0xff]
    %v217 = vld [vmem:[#allocation2 + $0x310] sm:$0xff]
    %v218 = vld [vmem:[#allocation2 + $0x318] sm:$0xff]
    %v219 = vld [vmem:[#allocation2 + $0x320] sm:$0xff]
    %v220 = vld [vmem:[#allocation2 + $0x328] sm:$0xff]
    %v221 = vld [vmem:[#allocation2 + $0x330] sm:$0xff]
    %v222 = vld [vmem:[#allocation2 + $0x338] sm:$0xff]
    %v223 = vld [vmem:[#allocation2 + $0x340] sm:$0xff]
    %v224 = vld [vmem:[#allocation2 + $0x348] sm:$0xff]
    %v225 = vld [vmem:[#allocation2 + $0x350] sm:$0xff]
    %v226 = vld [vmem:[#allocation2 + $0x358] sm:$0xff]
    %v227 = vld [vmem:[#allocation2 + $0x360] sm:$0xff]
    %v228 = vld [vmem:[#allocation2 + $0x368] sm:$0xff]
    %v229 = vld [vmem:[#allocation2 + $0x370] sm:$0xff]
    %v230 = vld [vmem:[#allocation2 + $0x378] sm:$0xff]
    %v231 = vld [vmem:[#allocation2 + $0x380] sm:$0xff]
    %v232 = vld [vmem:[#allocation2 + $0x388] sm:$0xff]
    %v233 = vld [vmem:[#allocation2 + $0x390] sm:$0xff]
    %v234 = vld [vmem:[#allocation2 + $0x398] sm:$0xff]
    %v235 = vld [vmem:[#allocation2 + $0x3a0] sm:$0xff]
    %v236 = vld [vmem:[#allocation2 + $0x3a8] sm:$0xff]
    %v237 = vld [vmem:[#allocation2 + $0x3b0] sm:$0xff]
    %v238 = vld [vmem:[#allocation2 + $0x3b8] sm:$0xff]
    %v239 = vld [vmem:[#allocation2 + $0x3c0] sm:$0xff]
    %v240 = vld [vmem:[#allocation2 + $0x3c8] sm:$0xff]
    %v241 = vld [vmem:[#allocation2 + $0x3d0] sm:$0xff]
    %v242 = vld [vmem:[#allocation2 + $0x3d8] sm:$0xff]
    %v243 = vld [vmem:[#allocation2 + $0x3e0] sm:$0xff]
    %v244 = vld [vmem:[#allocation2 + $0x3e8] sm:$0xff]
    %v245 = vld [vmem:[#allocation2 + $0x3f0] sm:$0xff]
    %v246 = vld [vmem:[#allocation2 + $0x3f8] sm:$0xff]
    %v247 = vld [vmem:[#allocation2 + $0x400] sm:$0xff]
    %v248 = vld [vmem:[#allocation2 + $0x408] sm:$0xff]
    %v249 = vld [vmem:[#allocation2 + $0x410] sm:$0xff]
    %v250 = vld [vmem:[#allocation2 + $0x418] sm:$0xff]
    %v251 = vld [vmem:[#allocation2 + $0x420] sm:$0xff]
    %v252 = vld [vmem:[#allocation2 + $0x428] sm:$0xff]
    %v253 = vld [vmem:[#allocation2 + $0x430] sm:$0xff]
    %v254 = vld [vmem:[#allocation2 + $0x438] sm:$0xff]
    %v255 = vld [vmem:[#allocation2 + $0x440] sm:$0xff]
    %v256 = vld [vmem:[#allocation2 + $0x448] sm:$0xff]
    %v257 = vld [vmem:[#allocation2 + $0x450] sm:$0xff]
    %v258 = vld [vmem:[#allocation2 + $0x458] sm:$0xff]
    %v259 = vld [vmem:[#allocation2 + $0x460] sm:$0xff]
    %v260 = vld [vmem:[#allocation2 + $0x468] sm:$0xff]
    %v261 = vld [vmem:[#allocation2 + $0x470] sm:$0xff]
    %v262 = vld [vmem:[#allocation2 + $0x478] sm:$0xff]
    %v263 = vld [vmem:[#allocation2 + $0x480] sm:$0xff]
    %v264 = vld [vmem:[#allocation2 + $0x488] sm:$0xff]
    %v265 = vld [vmem:[#allocation2 + $0x490] sm:$0xff]
    %v266 = vld [vmem:[#allocation2 + $0x498] sm:$0xff]
    %v267 = vld [vmem:[#allocation2 + $0x4a0] sm:$0xff]
    %v268 = vld [vmem:[#allocation2 + $0x4a8] sm:$0xff]
    %v269 = vld [vmem:[#allocation2 + $0x4b0] sm:$0xff]
    %v270 = vld [vmem:[#allocation2 + $0x4b8] sm:$0xff]
    %v271 = vld [vmem:[#allocation2 + $0x4c0] sm:$0xff]
    %v272 = vld [vmem:[#allocation2 + $0x4c8] sm:$0xff]
    %v273 = vld [vmem:[#allocation2 + $0x4d0] sm:$0xff]
    %v274 = vld [vmem:[#allocation2 + $0x4d8] sm:$0xff]
    %v275 = vld [vmem:[#allocation2 + $0x4e0] sm:$0xff]
    %v276 = vld [vmem:[#allocation2 + $0x4e8] sm:$0xff]
    %v277 = vld [vmem:[#allocation2 + $0x4f0] sm:$0xff]
    %v278 = vld [vmem:[#allocation2 + $0x4f8] sm:$0xff]
    %v279 = vld [vmem:[#allocation2 + $0x500] sm:$0xff]
    %v280 = vld [vmem:[#allocation2 + $0x508] sm:$0xff]
    %v281 = vld [vmem:[#allocation2 + $0x510] sm:$0xff]
    %v282 = vld [vmem:[#allocation2 + $0x518] sm:$0xff]
    %v283 = vld [vmem:[#allocation2 + $0x520] sm:$0xff]
    %v284 = vld [vmem:[#allocation2 + $0x528] sm:$0xff]
    %v285 = vld [vmem:[#allocation2 + $0x530] sm:$0xff]
    %v286 = vld [vmem:[#allocation2 + $0x538] sm:$0xff]
    %v287 = vld [vmem:[#allocation2 + $0x540] sm:$0xff]
    %v288 = vld [vmem:[#allocation2 + $0x548] sm:$0xff]
    %v289 = vld [vmem:[#allocation2 + $0x550] sm:$0xff]
    %v290 = vld [vmem:[#allocation2 + $0x558] sm:$0xff]
    %v291 = vld [vmem:[#allocation2 + $0x560] sm:$0xff]
    %v292 = vld [vmem:[#allocation2 + $0x568] sm:$0xff]
    %v293 = vld [vmem:[#allocation2 + $0x570] sm:$0xff]
    %v294 = vld [vmem:[#allocation2 + $0x578] sm:$0xff]
    %v295 = vld [vmem:[#allocation2 + $0x580] sm:$0xff]
    %v296 = vld [vmem:[#allocation2 + $0x588] sm:$0xff]
    %v297 = vld [vmem:[#allocation2 + $0x590] sm:$0xff]
    %v298 = vld [vmem:[#allocation2 + $0x598] sm:$0xff]
    %v299 = vld [vmem:[#allocation2 + $0x5a0] sm:$0xff]
    %v300 = vld [vmem:[#allocation2 + $0x5a8] sm:$0xff]
    %v301 = vld [vmem:[#allocation2 + $0x5b0] sm:$0xff]
    %v302 = vld [vmem:[#allocation2 + $0x5b8] sm:$0xff]
    %v303 = vld [vmem:[#allocation2 + $0x5c0] sm:$0xff]
    %v304 = vld [vmem:[#allocation2 + $0x5c8] sm:$0xff]
    %v305 = vld [vmem:[#allocation2 + $0x5d0] sm:$0xff]
    %v306 = vld [vmem:[#allocation2 + $0x5d8] sm:$0xff]
    %v307 = vld [vmem:[#allocation2 + $0x5e0] sm:$0xff]
    %v308 = vld [vmem:[#allocation2 + $0x5e8] sm:$0xff]
    %v309 = vld [vmem:[#allocation2 + $0x5f0] sm:$0xff]
    %v310 = vld [vmem:[#allocation2 + $0x5f8] sm:$0xff]
    %v311 = vld [vmem:[#allocation2 + $0x600] sm:$0xff]
    %v312 = vld [vmem:[#allocation2 + $0x608] sm:$0xff]
    %v313 = vld [vmem:[#allocation2 + $0x610] sm:$0xff]
    %v314 = vld [vmem:[#allocation2 + $0x618] sm:$0xff]
    %v315 = vld [vmem:[#allocation2 + $0x620] sm:$0xff]
    %v316 = vld [vmem:[#allocation2 + $0x628] sm:$0xff]
    %v317 = vld [vmem:[#allocation2 + $0x630] sm:$0xff]
    %v318 = vld [vmem:[#allocation2 + $0x638] sm:$0xff]
    %v319 = vld [vmem:[#allocation2 + $0x640] sm:$0xff]
    %v320 = vld [vmem:[#allocation2 + $0x648] sm:$0xff]
    %v321 = vld [vmem:[#allocation2 + $0x650] sm:$0xff]
    %v322 = vld [vmem:[#allocation2 + $0x658] sm:$0xff]
    %v323 = vld [vmem:[#allocation2 + $0x660] sm:$0xff]
    %v324 = vld [vmem:[#allocation2 + $0x668] sm:$0xff]
    %v325 = vld [vmem:[#allocation2 + $0x670] sm:$0xff]
    %v326 = vld [vmem:[#allocation2 + $0x678] sm:$0xff]
    %v327 = vld [vmem:[#allocation2 + $0x680] sm:$0xff]
    %v328 = vld [vmem:[#allocation2 + $0x688] sm:$0xff]
    %v329 = vld [vmem:[#allocation2 + $0x690] sm:$0xff]
    %v330 = vld [vmem:[#allocation2 + $0x698] sm:$0xff]
    %v331 = vld [vmem:[#allocation2 + $0x6a0] sm:$0xff]
    %v332 = vld [vmem:[#allocation2 + $0x6a8] sm:$0xff]
    %v333 = vld [vmem:[#allocation2 + $0x6b0] sm:$0xff]
    %v334 = vld [vmem:[#allocation2 + $0x6b8] sm:$0xff]
    %v335 = vld [vmem:[#allocation2 + $0x6c0] sm:$0xff]
    %v336 = vld [vmem:[#allocation2 + $0x6c8] sm:$0xff]
    %v337 = vld [vmem:[#allocation2 + $0x6d0] sm:$0xff]
    %v338 = vld [vmem:[#allocation2 + $0x6d8] sm:$0xff]
    %v339 = vld [vmem:[#allocation2 + $0x6e0] sm:$0xff]
    %v340 = vld [vmem:[#allocation2 + $0x6e8] sm:$0xff]
    %v341 = vld [vmem:[#allocation2 + $0x6f0] sm:$0xff]
    %v342 = vld [vmem:[#allocation2 + $0x6f8] sm:$0xff]
    %v343 = vld [vmem:[#allocation2 + $0x700] sm:$0xff]
    %v344 = vld [vmem:[#allocation2 + $0x708] sm:$0xff]
    %v345 = vld [vmem:[#allocation2 + $0x710] sm:$0xff]
    %v346 = vld [vmem:[#allocation2 + $0x718] sm:$0xff]
    %v347 = vld [vmem:[#allocation2 + $0x720] sm:$0xff]
    %v348 = vld [vmem:[#allocation2 + $0x728] sm:$0xff]
    %v349 = vld [vmem:[#allocation2 + $0x730] sm:$0xff]
    %v350 = vld [vmem:[#allocation2 + $0x738] sm:$0xff]
    %v351 = vld [vmem:[#allocation2 + $0x740] sm:$0xff]
    %v352 = vld [vmem:[#allocation2 + $0x748] sm:$0xff]
    %v353 = vld [vmem:[#allocation2 + $0x750] sm:$0xff]
    %v354 = vld [vmem:[#allocation2 + $0x758] sm:$0xff]
    %v355 = vld [vmem:[#allocation2 + $0x760] sm:$0xff]
    %v356 = vld [vmem:[#allocation2 + $0x768] sm:$0xff]
    %v357 = vld [vmem:[#allocation2 + $0x770] sm:$0xff]
    %v358 = vld [vmem:[#allocation2 + $0x778] sm:$0xff]
    %v359 = vld [vmem:[#allocation2 + $0x780] sm:$0xff]
    %v360 = vld [vmem:[#allocation2 + $0x788] sm:$0xff]
    %v361 = vld [vmem:[#allocation2 + $0x790] sm:$0xff]
    %v362 = vld [vmem:[#allocation2 + $0x798] sm:$0xff]
    %v363 = vld [vmem:[#allocation2 + $0x7a0] sm:$0xff]
    %v364 = vld [vmem:[#allocation2 + $0x7a8] sm:$0xff]
    %v365 = vld [vmem:[#allocation2 + $0x7b0] sm:$0xff]
    %v366 = vld [vmem:[#allocation2 + $0x7b8] sm:$0xff]
    %v367 = vld [vmem:[#allocation2 + $0x7c0] sm:$0xff]
    %v368 = vld [vmem:[#allocation2 + $0x7c8] sm:$0xff]
    %v369 = vld [vmem:[#allocation2 + $0x7d0] sm:$0xff]
    %v370 = vld [vmem:[#allocation2 + $0x7d8] sm:$0xff]
    %v371 = vld [vmem:[#allocation2 + $0x7e0] sm:$0xff]
    %v372 = vld [vmem:[#allocation2 + $0x7e8] sm:$0xff]
    %v373 = vld [vmem:[#allocation2 + $0x7f0] sm:$0xff]
    %v374 = vld [vmem:[#allocation2 + $0x7f8] sm:$0xff]
    %375 = vmatprep.subr.mxu0 0.0
    %376 = vmatpush1.msra.mxu0 %v94
    %377 = vmatprep.subr.mxu0 0.0
    %378 = vmatpush1.msra.mxu0 %v93
    %379 = vmatprep.subr.mxu0 0.0
    %380 = vmatpush1.msra.mxu0 %v92
    %381 = vmatprep.subr.mxu0 0.0
    %382 = vmatpush1.msra.mxu0 %v91
    %383 = vmatprep.subr.mxu0 0.0
    %384 = vmatpush1.msra.mxu0 %v90
    %385 = vmatprep.subr.mxu0 0.0
    %386 = vmatpush1.msra.mxu0 %v89
    %387 = vmatprep.subr.mxu0 0.0
    %388 = vmatpush1.msra.mxu0 %v88
    %389 = vmatprep.subr.mxu0 0.0
    %390 = vmatpush1.msra.mxu0 %v87
    %391 = vmatprep.subr.mxu0 0.0
    %392 = vmatpush1.msra.mxu0 %v86
    %393 = vmatprep.subr.mxu0 0.0
    %394 = vmatpush1.msra.mxu0 %v85
    %395 = vmatprep.subr.mxu0 0.0
    %396 = vmatpush1.msra.mxu0 %v84
    %397 = vmatprep.subr.mxu0 0.0
    %398 = vmatpush1.msra.mxu0 %v83
    %399 = vmatprep.subr.mxu0 0.0
    %400 = vmatpush1.msra.mxu0 %v82
    %401 = vmatprep.subr.mxu0 0.0
    %402 = vmatpush1.msra.mxu0 %v81
    %403 = vmatprep.subr.mxu0 0.0
    %404 = vmatpush1.msra.mxu0 %v80
    %405 = vmatprep.subr.mxu0 0.0
    %406 = vmatpush1.msra.mxu0 %v79
    %407 = vmatprep.subr.mxu0 0.0
    %408 = vmatpush2.msra.mxu0 %v110
    %409 = vmatprep.subr.mxu0 0.0
    %410 = vmatpush2.msra.mxu0 %v109
    %411 = vmatprep.subr.mxu0 0.0
    %412 = vmatpush2.msra.mxu0 %v108
    %413 = vmatprep.subr.mxu0 0.0
    %414 = vmatpush2.msra.mxu0 %v107
    %415 = vmatprep.subr.mxu0 0.0
    %416 = vmatpush2.msra.mxu0 %v106
    %417 = vmatprep.subr.mxu0 0.0
    %418 = vmatpush2.msra.mxu0 %v105
    %419 = vmatprep.subr.mxu0 0.0
    %420 = vmatpush2.msra.mxu0 %v104
    %421 = vmatprep.subr.mxu0 0.0
    %422 = vmatpush2.msra.mxu0 %v103
    %423 = vmatprep.subr.mxu0 0.0
    %424 = vmatpush2.msra.mxu0 %v102
    %425 = vmatprep.subr.mxu0 0.0
    %426 = vmatpush2.msra.mxu0 %v101
    %427 = vmatprep.subr.mxu0 0.0
    %428 = vmatpush2.msra.mxu0 %v100
    %429 = vmatprep.subr.mxu0 0.0
    %430 = vmatpush2.msra.mxu0 %v99
    %431 = vmatprep.subr.mxu0 0.0
    %432 = vmatpush2.msra.mxu0 %v98
    %433 = vmatprep.subr.mxu0 0.0
    %434 = vmatpush2.msra.mxu0 %v97
    %435 = vmatprep.subr.mxu0 0.0
    %436 = vmatpush2.msra.mxu0 %v96
    %437 = vmatprep.subr.mxu0 0.0
    %438 = vmatpush2.msra.mxu0 %v95
    %439 = vmatprep.mubr.f32.mxu0 %v120
    %440 = vmatmul.mubr.f32.gmra.mxu0 %v119
    %v441 = vpop.f32.mrf.mxu0
    %v442 = vadd.f32 %v117, %v441
    %v443 = vpop.f32.mrf.mxu0
    %444 = vmatprep.mubr.f32.mxu0 %v122
    %445 = vmatmul.mubr.f32.gmra.mxu0 %v121
    %v446 = vpop.f32.mrf.mxu0
    %v447 = vadd.f32 %v117, %v446
    %v448 = vpop.f32.mrf.mxu0
    %449 = vmatprep.mubr.f32.mxu0 %v124
    %450 = vmatmul.mubr.f32.gmra.mxu0 %v123
    %v451 = vpop.f32.mrf.mxu0
    %v452 = vadd.f32 %v117, %v451
    %v453 = vpop.f32.mrf.mxu0
    %454 = vmatprep.mubr.f32.mxu0 %v126
    %455 = vmatmul.mubr.f32.gmra.mxu0 %v125
    %v456 = vpop.f32.mrf.mxu0
    %v457 = vadd.f32 %v117, %v456
    %v458 = vpop.f32.mrf.mxu0
    %459 = vmatprep.mubr.f32.mxu0 %v128
    %460 = vmatmul.mubr.f32.gmra.mxu0 %v127
    %v461 = vpop.f32.mrf.mxu0
    %v462 = vadd.f32 %v117, %v461
    %v463 = vpop.f32.mrf.mxu0
    %464 = vmatprep.mubr.f32.mxu0 %v130
    %465 = vmatmul.mubr.f32.gmra.mxu0 %v129
    %v466 = vpop.f32.mrf.mxu0
    %v467 = vadd.f32 %v117, %v466
    %v468 = vpop.f32.mrf.mxu0
    %469 = vmatprep.mubr.f32.mxu0 %v132
    %470 = vmatmul.mubr.f32.gmra.mxu0 %v131
    %v471 = vpop.f32.mrf.mxu0
    %v472 = vadd.f32 %v117, %v471
    %v473 = vpop.f32.mrf.mxu0
    %474 = vmatprep.mubr.f32.mxu0 %v134
    %475 = vmatmul.mubr.f32.gmra.mxu0 %v133
    %v476 = vpop.f32.mrf.mxu0
    %v477 = vadd.f32 %v117, %v476
    %v478 = vpop.f32.mrf.mxu0
    %479 = vmatprep.mubr.f32.mxu0 %v136
    %480 = vmatmul.mubr.f32.gmra.mxu0 %v135
    %v481 = vpop.f32.mrf.mxu0
    %v482 = vadd.f32 %v117, %v481
    %v483 = vpop.f32.mrf.mxu0
    %484 = vmatprep.mubr.f32.mxu0 %v138
    %485 = vmatmul.mubr.f32.gmra.mxu0 %v137
    %v486 = vpop.f32.mrf.mxu0
    %v487 = vadd.f32 %v117, %v486
    %v488 = vpop.f32.mrf.mxu0
    %489 = vmatprep.mubr.f32.mxu0 %v140
    %490 = vmatmul.mubr.f32.gmra.mxu0 %v139
    %v491 = vpop.f32.mrf.mxu0
    %v492 = vadd.f32 %v117, %v491
    %v493 = vpop.f32.mrf.mxu0
    %494 = vmatprep.mubr.f32.mxu0 %v142
    %495 = vmatmul.mubr.f32.gmra.mxu0 %v141
    %v496 = vpop.f32.mrf.mxu0
    %v497 = vadd.f32 %v117, %v496
    %v498 = vpop.f32.mrf.mxu0
    %499 = vmatprep.mubr.f32.mxu0 %v144
    %500 = vmatmul.mubr.f32.gmra.mxu0 %v143
    %v501 = vpop.f32.mrf.mxu0
    %v502 = vadd.f32 %v117, %v501
    %v503 = vpop.f32.mrf.mxu0
    %504 = vmatprep.mubr.f32.mxu0 %v146
    %505 = vmatmul.mubr.f32.gmra.mxu0 %v145
    %v506 = vpop.f32.mrf.mxu0
    %v507 = vadd.f32 %v117, %v506
    %v508 = vpop.f32.mrf.mxu0
    %509 = vmatprep.mubr.f32.mxu0 %v148
    %510 = vmatmul.mubr.f32.gmra.mxu0 %v147
    %v511 = vpop.f32.mrf.mxu0
    %v512 = vadd.f32 %v117, %v511
    %v513 = vpop.f32.mrf.mxu0
    %514 = vmatprep.mubr.f32.mxu0 %v150
    %515 = vmatmul.mubr.f32.gmra.mxu0 %v149
    %v516 = vpop.f32.mrf.mxu0
    %v517 = vadd.f32 %v117, %v516
    %v518 = vpop.f32.mrf.mxu0
    %519 = vmatprep.mubr.f32.mxu0 %v152
    %520 = vmatmul.mubr.f32.gmra.mxu0 %v151
    %v521 = vpop.f32.mrf.mxu0
    %v522 = vadd.f32 %v117, %v521
    %v523 = vpop.f32.mrf.mxu0
    %524 = vmatprep.mubr.f32.mxu0 %v154
    %525 = vmatmul.mubr.f32.gmra.mxu0 %v153
    %v526 = vpop.f32.mrf.mxu0
    %v527 = vadd.f32 %v117, %v526
    %v528 = vpop.f32.mrf.mxu0
    %529 = vmatprep.mubr.f32.mxu0 %v156
    %530 = vmatmul.mubr.f32.gmra.mxu0 %v155
    %v531 = vpop.f32.mrf.mxu0
    %v532 = vadd.f32 %v117, %v531
    %v533 = vpop.f32.mrf.mxu0
    %534 = vmatprep.mubr.f32.mxu0 %v158
    %535 = vmatmul.mubr.f32.gmra.mxu0 %v157
    %v536 = vpop.f32.mrf.mxu0
    %v537 = vadd.f32 %v117, %v536
    %v538 = vpop.f32.mrf.mxu0
    %539 = vmatprep.mubr.f32.mxu0 %v160
    %540 = vmatmul.mubr.f32.gmra.mxu0 %v159
    %v541 = vpop.f32.mrf.mxu0
    %v542 = vadd.f32 %v117, %v541
    %v543 = vpop.f32.mrf.mxu0
    %544 = vmatprep.mubr.f32.mxu0 %v162
    %545 = vmatmul.mubr.f32.gmra.mxu0 %v161
    %v546 = vpop.f32.mrf.mxu0
    %v547 = vadd.f32 %v117, %v546
    %v548 = vpop.f32.mrf.mxu0
    %549 = vmatprep.mubr.f32.mxu0 %v164
    %550 = vmatmul.mubr.f32.gmra.mxu0 %v163
    %v551 = vpop.f32.mrf.mxu0
    %v552 = vadd.f32 %v117, %v551
    %v553 = vpop.f32.mrf.mxu0
    %554 = vmatprep.mubr.f32.mxu0 %v166
    %555 = vmatmul.mubr.f32.gmra.mxu0 %v165
    %v556 = vpop.f32.mrf.mxu0
    %v557 = vadd.f32 %v117, %v556
    %v558 = vpop.f32.mrf.mxu0
    %559 = vmatprep.mubr.f32.mxu0 %v168
    %560 = vmatmul.mubr.f32.gmra.mxu0 %v167
    %v561 = vpop.f32.mrf.mxu0
    %v562 = vadd.f32 %v117, %v561
    %v563 = vpop.f32.mrf.mxu0
    %564 = vmatprep.mubr.f32.mxu0 %v170
    %565 = vmatmul.mubr.f32.gmra.mxu0 %v169
    %v566 = vpop.f32.mrf.mxu0
    %v567 = vadd.f32 %v117, %v566
    %v568 = vpop.f32.mrf.mxu0
    %569 = vmatprep.mubr.f32.mxu0 %v172
    %570 = vmatmul.mubr.f32.gmra.mxu0 %v171
    %v571 = vpop.f32.mrf.mxu0
    %v572 = vadd.f32 %v117, %v571
    %v573 = vpop.f32.mrf.mxu0
    %574 = vmatprep.mubr.f32.mxu0 %v174
    %575 = vmatmul.mubr.f32.gmra.mxu0 %v173
    %v576 = vpop.f32.mrf.mxu0
    %v577 = vadd.f32 %v117, %v576
    %v578 = vpop.f32.mrf.mxu0
    %579 = vmatprep.mubr.f32.mxu0 %v176
    %580 = vmatmul.mubr.f32.gmra.mxu0 %v175
    %v581 = vpop.f32.mrf.mxu0
    %v582 = vadd.f32 %v117, %v581
    %v583 = vpop.f32.mrf.mxu0
    %584 = vmatprep.mubr.f32.mxu0 %v178
    %585 = vmatmul.mubr.f32.gmra.mxu0 %v177
    %v586 = vpop.f32.mrf.mxu0
    %v587 = vadd.f32 %v117, %v586
    %v588 = vpop.f32.mrf.mxu0
    %589 = vmatprep.mubr.f32.mxu0 %v180
    %590 = vmatmul.mubr.f32.gmra.mxu0 %v179
    %v591 = vpop.f32.mrf.mxu0
    %v592 = vadd.f32 %v117, %v591
    %v593 = vpop.f32.mrf.mxu0
    %594 = vmatprep.mubr.f32.mxu0 %v182
    %595 = vmatmul.mubr.f32.gmra.mxu0 %v181
    %v596 = vpop.f32.mrf.mxu0
    %v597 = vadd.f32 %v117, %v596
    %v598 = vpop.f32.mrf.mxu0
    %599 = vmatprep.mubr.f32.mxu0 %v184
    %600 = vmatmul.mubr.f32.gmra.mxu0 %v183
    %v601 = vpop.f32.mrf.mxu0
    %v602 = vadd.f32 %v117, %v601
    %v603 = vpop.f32.mrf.mxu0
    %604 = vmatprep.mubr.f32.mxu0 %v186
    %605 = vmatmul.mubr.f32.gmra.mxu0 %v185
    %v606 = vpop.f32.mrf.mxu0
    %v607 = vadd.f32 %v117, %v606
    %v608 = vpop.f32.mrf.mxu0
    %609 = vmatprep.mubr.f32.mxu0 %v188
    %610 = vmatmul.mubr.f32.gmra.mxu0 %v187
    %v611 = vpop.f32.mrf.mxu0
    %v612 = vadd.f32 %v117, %v611
    %v613 = vpop.f32.mrf.mxu0
    %614 = vmatprep.mubr.f32.mxu0 %v190
    %615 = vmatmul.mubr.f32.gmra.mxu0 %v189
    %v616 = vpop.f32.mrf.mxu0
    %v617 = vadd.f32 %v117, %v616
    %v618 = vpop.f32.mrf.mxu0
    %619 = vmatprep.mubr.f32.mxu0 %v192
    %620 = vmatmul.mubr.f32.gmra.mxu0 %v191
    %v621 = vpop.f32.mrf.mxu0
    %v622 = vadd.f32 %v117, %v621
    %v623 = vpop.f32.mrf.mxu0
    %624 = vmatprep.mubr.f32.mxu0 %v194
    %625 = vmatmul.mubr.f32.gmra.mxu0 %v193
    %v626 = vpop.f32.mrf.mxu0
    %v627 = vadd.f32 %v117, %v626
    %v628 = vpop.f32.mrf.mxu0
    %629 = vmatprep.mubr.f32.mxu0 %v196
    %630 = vmatmul.mubr.f32.gmra.mxu0 %v195
    %v631 = vpop.f32.mrf.mxu0
    %v632 = vadd.f32 %v117, %v631
    %v633 = vpop.f32.mrf.mxu0
    %634 = vmatprep.mubr.f32.mxu0 %v198
    %635 = vmatmul.mubr.f32.gmra.mxu0 %v197
    %v636 = vpop.f32.mrf.mxu0
    %v637 = vadd.f32 %v117, %v636
    %v638 = vpop.f32.mrf.mxu0
    %639 = vmatprep.mubr.f32.mxu0 %v200
    %640 = vmatmul.mubr.f32.gmra.mxu0 %v199
    %v641 = vpop.f32.mrf.mxu0
    %v642 = vadd.f32 %v117, %v641
    %v643 = vpop.f32.mrf.mxu0
    %644 = vmatprep.mubr.f32.mxu0 %v202
    %645 = vmatmul.mubr.f32.gmra.mxu0 %v201
    %v646 = vpop.f32.mrf.mxu0
    %v647 = vadd.f32 %v117, %v646
    %v648 = vpop.f32.mrf.mxu0
    %649 = vmatprep.mubr.f32.mxu0 %v204
    %650 = vmatmul.mubr.f32.gmra.mxu0 %v203
    %v651 = vpop.f32.mrf.mxu0
    %v652 = vadd.f32 %v117, %v651
    %v653 = vpop.f32.mrf.mxu0
    %654 = vmatprep.mubr.f32.mxu0 %v206
    %655 = vmatmul.mubr.f32.gmra.mxu0 %v205
    %v656 = vpop.f32.mrf.mxu0
    %v657 = vadd.f32 %v117, %v656
    %v658 = vpop.f32.mrf.mxu0
    %659 = vmatprep.mubr.f32.mxu0 %v208
    %660 = vmatmul.mubr.f32.gmra.mxu0 %v207
    %v661 = vpop.f32.mrf.mxu0
    %v662 = vadd.f32 %v117, %v661
    %v663 = vpop.f32.mrf.mxu0
    %664 = vmatprep.mubr.f32.mxu0 %v210
    %665 = vmatmul.mubr.f32.gmra.mxu0 %v209
    %v666 = vpop.f32.mrf.mxu0
    %v667 = vadd.f32 %v117, %v666
    %v668 = vpop.f32.mrf.mxu0
    %669 = vmatprep.mubr.f32.mxu0 %v212
    %670 = vmatmul.mubr.f32.gmra.mxu0 %v211
    %v671 = vpop.f32.mrf.mxu0
    %v672 = vadd.f32 %v117, %v671
    %v673 = vpop.f32.mrf.mxu0
    %674 = vmatprep.mubr.f32.mxu0 %v214
    %675 = vmatmul.mubr.f32.gmra.mxu0 %v213
    %v676 = vpop.f32.mrf.mxu0
    %v677 = vadd.f32 %v117, %v676
    %v678 = vpop.f32.mrf.mxu0
    %679 = vmatprep.mubr.f32.mxu0 %v216
    %680 = vmatmul.mubr.f32.gmra.mxu0 %v215
    %v681 = vpop.f32.mrf.mxu0
    %v682 = vadd.f32 %v117, %v681
    %v683 = vpop.f32.mrf.mxu0
    %684 = vmatprep.mubr.f32.mxu0 %v218
    %685 = vmatmul.mubr.f32.gmra.mxu0 %v217
    %v686 = vpop.f32.mrf.mxu0
    %v687 = vadd.f32 %v117, %v686
    %v688 = vpop.f32.mrf.mxu0
    %689 = vmatprep.mubr.f32.mxu0 %v220
    %690 = vmatmul.mubr.f32.gmra.mxu0 %v219
    %v691 = vpop.f32.mrf.mxu0
    %v692 = vadd.f32 %v117, %v691
    %v693 = vpop.f32.mrf.mxu0
    %694 = vmatprep.mubr.f32.mxu0 %v222
    %695 = vmatmul.mubr.f32.gmra.mxu0 %v221
    %v696 = vpop.f32.mrf.mxu0
    %v697 = vadd.f32 %v117, %v696
    %v698 = vpop.f32.mrf.mxu0
    %699 = vmatprep.mubr.f32.mxu0 %v224
    %700 = vmatmul.mubr.f32.gmra.mxu0 %v223
    %v701 = vpop.f32.mrf.mxu0
    %v702 = vadd.f32 %v117, %v701
    %v703 = vpop.f32.mrf.mxu0
    %704 = vmatprep.mubr.f32.mxu0 %v226
    %705 = vmatmul.mubr.f32.gmra.mxu0 %v225
    %v706 = vpop.f32.mrf.mxu0
    %v707 = vadd.f32 %v117, %v706
    %v708 = vpop.f32.mrf.mxu0
    %709 = vmatprep.mubr.f32.mxu0 %v228
    %710 = vmatmul.mubr.f32.gmra.mxu0 %v227
    %v711 = vpop.f32.mrf.mxu0
    %v712 = vadd.f32 %v117, %v711
    %v713 = vpop.f32.mrf.mxu0
    %714 = vmatprep.mubr.f32.mxu0 %v230
    %715 = vmatmul.mubr.f32.gmra.mxu0 %v229
    %v716 = vpop.f32.mrf.mxu0
    %v717 = vadd.f32 %v117, %v716
    %v718 = vpop.f32.mrf.mxu0
    %719 = vmatprep.mubr.f32.mxu0 %v232
    %720 = vmatmul.mubr.f32.gmra.mxu0 %v231
    %v721 = vpop.f32.mrf.mxu0
    %v722 = vadd.f32 %v117, %v721
    %v723 = vpop.f32.mrf.mxu0
    %724 = vmatprep.mubr.f32.mxu0 %v234
    %725 = vmatmul.mubr.f32.gmra.mxu0 %v233
    %v726 = vpop.f32.mrf.mxu0
    %v727 = vadd.f32 %v117, %v726
    %v728 = vpop.f32.mrf.mxu0
    %729 = vmatprep.mubr.f32.mxu0 %v236
    %730 = vmatmul.mubr.f32.gmra.mxu0 %v235
    %v731 = vpop.f32.mrf.mxu0
    %v732 = vadd.f32 %v117, %v731
    %v733 = vpop.f32.mrf.mxu0
    %734 = vmatprep.mubr.f32.mxu0 %v238
    %735 = vmatmul.mubr.f32.gmra.mxu0 %v237
    %v736 = vpop.f32.mrf.mxu0
    %v737 = vadd.f32 %v117, %v736
    %v738 = vpop.f32.mrf.mxu0
    %739 = vmatprep.mubr.f32.mxu0 %v240
    %740 = vmatmul.mubr.f32.gmra.mxu0 %v239
    %v741 = vpop.f32.mrf.mxu0
    %v742 = vadd.f32 %v117, %v741
    %v743 = vpop.f32.mrf.mxu0
    %744 = vmatprep.mubr.f32.mxu0 %v242
    %745 = vmatmul.mubr.f32.gmra.mxu0 %v241
    %v746 = vpop.f32.mrf.mxu0
    %v747 = vadd.f32 %v117, %v746
    %v748 = vpop.f32.mrf.mxu0
    %749 = vmatprep.mubr.f32.mxu0 %v244
    %750 = vmatmul.mubr.f32.gmra.mxu0 %v243
    %v751 = vpop.f32.mrf.mxu0
    %v752 = vadd.f32 %v117, %v751
    %v753 = vpop.f32.mrf.mxu0
    %754 = vmatprep.mubr.f32.mxu0 %v246
    %755 = vmatmul.mubr.f32.gmra.mxu0 %v245
    %v756 = vpop.f32.mrf.mxu0
    %v757 = vadd.f32 %v117, %v756
    %v758 = vpop.f32.mrf.mxu0
    %759 = vmatprep.mubr.f32.mxu0 %v248
    %760 = vmatmul.mubr.f32.gmra.mxu0 %v247
    %v761 = vpop.f32.mrf.mxu0
    %v762 = vadd.f32 %v117, %v761
    %v763 = vpop.f32.mrf.mxu0
    %764 = vmatprep.mubr.f32.mxu0 %v250
    %765 = vmatmul.mubr.f32.gmra.mxu0 %v249
    %v766 = vpop.f32.mrf.mxu0
    %v767 = vadd.f32 %v117, %v766
    %v768 = vpop.f32.mrf.mxu0
    %769 = vmatprep.mubr.f32.mxu0 %v252
    %770 = vmatmul.mubr.f32.gmra.mxu0 %v251
    %v771 = vpop.f32.mrf.mxu0
    %v772 = vadd.f32 %v117, %v771
    %v773 = vpop.f32.mrf.mxu0
    %774 = vmatprep.mubr.f32.mxu0 %v254
    %775 = vmatmul.mubr.f32.gmra.mxu0 %v253
    %v776 = vpop.f32.mrf.mxu0
    %v777 = vadd.f32 %v117, %v776
    %v778 = vpop.f32.mrf.mxu0
    %779 = vmatprep.mubr.f32.mxu0 %v256
    %780 = vmatmul.mubr.f32.gmra.mxu0 %v255
    %v781 = vpop.f32.mrf.mxu0
    %v782 = vadd.f32 %v117, %v781
    %v783 = vpop.f32.mrf.mxu0
    %784 = vmatprep.mubr.f32.mxu0 %v258
    %785 = vmatmul.mubr.f32.gmra.mxu0 %v257
    %v786 = vpop.f32.mrf.mxu0
    %v787 = vadd.f32 %v117, %v786
    %v788 = vpop.f32.mrf.mxu0
    %789 = vmatprep.mubr.f32.mxu0 %v260
    %790 = vmatmul.mubr.f32.gmra.mxu0 %v259
    %v791 = vpop.f32.mrf.mxu0
    %v792 = vadd.f32 %v117, %v791
    %v793 = vpop.f32.mrf.mxu0
    %794 = vmatprep.mubr.f32.mxu0 %v262
    %795 = vmatmul.mubr.f32.gmra.mxu0 %v261
    %v796 = vpop.f32.mrf.mxu0
    %v797 = vadd.f32 %v117, %v796
    %v798 = vpop.f32.mrf.mxu0
    %799 = vmatprep.mubr.f32.mxu0 %v264
    %800 = vmatmul.mubr.f32.gmra.mxu0 %v263
    %v801 = vpop.f32.mrf.mxu0
    %v802 = vadd.f32 %v117, %v801
    %v803 = vpop.f32.mrf.mxu0
    %804 = vmatprep.mubr.f32.mxu0 %v266
    %805 = vmatmul.mubr.f32.gmra.mxu0 %v265
    %v806 = vpop.f32.mrf.mxu0
    %v807 = vadd.f32 %v117, %v806
    %v808 = vpop.f32.mrf.mxu0
    %809 = vmatprep.mubr.f32.mxu0 %v268
    %810 = vmatmul.mubr.f32.gmra.mxu0 %v267
    %v811 = vpop.f32.mrf.mxu0
    %v812 = vadd.f32 %v117, %v811
    %v813 = vpop.f32.mrf.mxu0
    %814 = vmatprep.mubr.f32.mxu0 %v270
    %815 = vmatmul.mubr.f32.gmra.mxu0 %v269
    %v816 = vpop.f32.mrf.mxu0
    %v817 = vadd.f32 %v117, %v816
    %v818 = vpop.f32.mrf.mxu0
    %819 = vmatprep.mubr.f32.mxu0 %v272
    %820 = vmatmul.mubr.f32.gmra.mxu0 %v271
    %v821 = vpop.f32.mrf.mxu0
    %v822 = vadd.f32 %v117, %v821
    %v823 = vpop.f32.mrf.mxu0
    %824 = vmatprep.mubr.f32.mxu0 %v274
    %825 = vmatmul.mubr.f32.gmra.mxu0 %v273
    %v826 = vpop.f32.mrf.mxu0
    %v827 = vadd.f32 %v117, %v826
    %v828 = vpop.f32.mrf.mxu0
    %829 = vmatprep.mubr.f32.mxu0 %v276
    %830 = vmatmul.mubr.f32.gmra.mxu0 %v275
    %v831 = vpop.f32.mrf.mxu0
    %v832 = vadd.f32 %v117, %v831
    %v833 = vpop.f32.mrf.mxu0
    %834 = vmatprep.mubr.f32.mxu0 %v278
    %835 = vmatmul.mubr.f32.gmra.mxu0 %v277
    %v836 = vpop.f32.mrf.mxu0
    %v837 = vadd.f32 %v117, %v836
    %v838 = vpop.f32.mrf.mxu0
    %839 = vmatprep.mubr.f32.mxu0 %v280
    %840 = vmatmul.mubr.f32.gmra.mxu0 %v279
    %v841 = vpop.f32.mrf.mxu0
    %v842 = vadd.f32 %v117, %v841
    %v843 = vpop.f32.mrf.mxu0
    %844 = vmatprep.mubr.f32.mxu0 %v282
    %845 = vmatmul.mubr.f32.gmra.mxu0 %v281
    %v846 = vpop.f32.mrf.mxu0
    %v847 = vadd.f32 %v117, %v846
    %v848 = vpop.f32.mrf.mxu0
    %849 = vmatprep.mubr.f32.mxu0 %v284
    %850 = vmatmul.mubr.f32.gmra.mxu0 %v283
    %v851 = vpop.f32.mrf.mxu0
    %v852 = vadd.f32 %v117, %v851
    %v853 = vpop.f32.mrf.mxu0
    %854 = vmatprep.mubr.f32.mxu0 %v286
    %855 = vmatmul.mubr.f32.gmra.mxu0 %v285
    %v856 = vpop.f32.mrf.mxu0
    %v857 = vadd.f32 %v117, %v856
    %v858 = vpop.f32.mrf.mxu0
    %859 = vmatprep.mubr.f32.mxu0 %v288
    %860 = vmatmul.mubr.f32.gmra.mxu0 %v287
    %v861 = vpop.f32.mrf.mxu0
    %v862 = vadd.f32 %v117, %v861
    %v863 = vpop.f32.mrf.mxu0
    %864 = vmatprep.mubr.f32.mxu0 %v290
    %865 = vmatmul.mubr.f32.gmra.mxu0 %v289
    %v866 = vpop.f32.mrf.mxu0
    %v867 = vadd.f32 %v117, %v866
    %v868 = vpop.f32.mrf.mxu0
    %869 = vmatprep.mubr.f32.mxu0 %v292
    %870 = vmatmul.mubr.f32.gmra.mxu0 %v291
    %v871 = vpop.f32.mrf.mxu0
    %v872 = vadd.f32 %v117, %v871
    %v873 = vpop.f32.mrf.mxu0
    %874 = vmatprep.mubr.f32.mxu0 %v294
    %875 = vmatmul.mubr.f32.gmra.mxu0 %v293
    %v876 = vpop.f32.mrf.mxu0
    %v877 = vadd.f32 %v117, %v876
    %v878 = vpop.f32.mrf.mxu0
    %879 = vmatprep.mubr.f32.mxu0 %v296
    %880 = vmatmul.mubr.f32.gmra.mxu0 %v295
    %v881 = vpop.f32.mrf.mxu0
    %v882 = vadd.f32 %v117, %v881
    %v883 = vpop.f32.mrf.mxu0
    %884 = vmatprep.mubr.f32.mxu0 %v298
    %885 = vmatmul.mubr.f32.gmra.mxu0 %v297
    %v886 = vpop.f32.mrf.mxu0
    %v887 = vadd.f32 %v117, %v886
    %v888 = vpop.f32.mrf.mxu0
    %889 = vmatprep.mubr.f32.mxu0 %v300
    %890 = vmatmul.mubr.f32.gmra.mxu0 %v299
    %v891 = vpop.f32.mrf.mxu0
    %v892 = vadd.f32 %v117, %v891
    %v893 = vpop.f32.mrf.mxu0
    %894 = vmatprep.mubr.f32.mxu0 %v302
    %895 = vmatmul.mubr.f32.gmra.mxu0 %v301
    %v896 = vpop.f32.mrf.mxu0
    %v897 = vadd.f32 %v117, %v896
    %v898 = vpop.f32.mrf.mxu0
    %899 = vmatprep.mubr.f32.mxu0 %v304
    %900 = vmatmul.mubr.f32.gmra.mxu0 %v303
    %v901 = vpop.f32.mrf.mxu0
    %v902 = vadd.f32 %v117, %v901
    %v903 = vpop.f32.mrf.mxu0
    %904 = vmatprep.mubr.f32.mxu0 %v306
    %905 = vmatmul.mubr.f32.gmra.mxu0 %v305
    %v906 = vpop.f32.mrf.mxu0
    %v907 = vadd.f32 %v117, %v906
    %v908 = vpop.f32.mrf.mxu0
    %909 = vmatprep.mubr.f32.mxu0 %v308
    %910 = vmatmul.mubr.f32.gmra.mxu0 %v307
    %v911 = vpop.f32.mrf.mxu0
    %v912 = vadd.f32 %v117, %v911
    %v913 = vpop.f32.mrf.mxu0
    %914 = vmatprep.mubr.f32.mxu0 %v310
    %915 = vmatmul.mubr.f32.gmra.mxu0 %v309
    %v916 = vpop.f32.mrf.mxu0
    %v917 = vadd.f32 %v117, %v916
    %v918 = vpop.f32.mrf.mxu0
    %919 = vmatprep.mubr.f32.mxu0 %v312
    %920 = vmatmul.mubr.f32.gmra.mxu0 %v311
    %v921 = vpop.f32.mrf.mxu0
    %v922 = vadd.f32 %v117, %v921
    %v923 = vpop.f32.mrf.mxu0
    %924 = vmatprep.mubr.f32.mxu0 %v314
    %925 = vmatmul.mubr.f32.gmra.mxu0 %v313
    %v926 = vpop.f32.mrf.mxu0
    %v927 = vadd.f32 %v117, %v926
    %v928 = vpop.f32.mrf.mxu0
    %929 = vmatprep.mubr.f32.mxu0 %v316
    %930 = vmatmul.mubr.f32.gmra.mxu0 %v315
    %v931 = vpop.f32.mrf.mxu0
    %v932 = vadd.f32 %v117, %v931
    %v933 = vpop.f32.mrf.mxu0
    %934 = vmatprep.mubr.f32.mxu0 %v318
    %935 = vmatmul.mubr.f32.gmra.mxu0 %v317
    %v936 = vpop.f32.mrf.mxu0
    %v937 = vadd.f32 %v117, %v936
    %v938 = vpop.f32.mrf.mxu0
    %939 = vmatprep.mubr.f32.mxu0 %v320
    %940 = vmatmul.mubr.f32.gmra.mxu0 %v319
    %v941 = vpop.f32.mrf.mxu0
    %v942 = vadd.f32 %v117, %v941
    %v943 = vpop.f32.mrf.mxu0
    %944 = vmatprep.mubr.f32.mxu0 %v322
    %945 = vmatmul.mubr.f32.gmra.mxu0 %v321
    %v946 = vpop.f32.mrf.mxu0
    %v947 = vadd.f32 %v117, %v946
    %v948 = vpop.f32.mrf.mxu0
    %949 = vmatprep.mubr.f32.mxu0 %v324
    %950 = vmatmul.mubr.f32.gmra.mxu0 %v323
    %v951 = vpop.f32.mrf.mxu0
    %v952 = vadd.f32 %v117, %v951
    %v953 = vpop.f32.mrf.mxu0
    %954 = vmatprep.mubr.f32.mxu0 %v326
    %955 = vmatmul.mubr.f32.gmra.mxu0 %v325
    %v956 = vpop.f32.mrf.mxu0
    %v957 = vadd.f32 %v117, %v956
    %v958 = vpop.f32.mrf.mxu0
    %959 = vmatprep.mubr.f32.mxu0 %v328
    %960 = vmatmul.mubr.f32.gmra.mxu0 %v327
    %v961 = vpop.f32.mrf.mxu0
    %v962 = vadd.f32 %v117, %v961
    %v963 = vpop.f32.mrf.mxu0
    %964 = vmatprep.mubr.f32.mxu0 %v330
    %965 = vmatmul.mubr.f32.gmra.mxu0 %v329
    %v966 = vpop.f32.mrf.mxu0
    %v967 = vadd.f32 %v117, %v966
    %v968 = vpop.f32.mrf.mxu0
    %969 = vmatprep.mubr.f32.mxu0 %v332
    %970 = vmatmul.mubr.f32.gmra.mxu0 %v331
    %v971 = vpop.f32.mrf.mxu0
    %v972 = vadd.f32 %v117, %v971
    %v973 = vpop.f32.mrf.mxu0
    %974 = vmatprep.mubr.f32.mxu0 %v334
    %975 = vmatmul.mubr.f32.gmra.mxu0 %v333
    %v976 = vpop.f32.mrf.mxu0
    %v977 = vadd.f32 %v117, %v976
    %v978 = vpop.f32.mrf.mxu0
    %979 = vmatprep.mubr.f32.mxu0 %v336
    %980 = vmatmul.mubr.f32.gmra.mxu0 %v335
    %v981 = vpop.f32.mrf.mxu0
    %v982 = vadd.f32 %v117, %v981
    %v983 = vpop.f32.mrf.mxu0
    %984 = vmatprep.mubr.f32.mxu0 %v338
    %985 = vmatmul.mubr.f32.gmra.mxu0 %v337
    %v986 = vpop.f32.mrf.mxu0
    %v987 = vadd.f32 %v117, %v986
    %v988 = vpop.f32.mrf.mxu0
    %989 = vmatprep.mubr.f32.mxu0 %v340
    %990 = vmatmul.mubr.f32.gmra.mxu0 %v339
    %v991 = vpop.f32.mrf.mxu0
    %v992 = vadd.f32 %v117, %v991
    %v993 = vpop.f32.mrf.mxu0
    %994 = vmatprep.mubr.f32.mxu0 %v342
    %995 = vmatmul.mubr.f32.gmra.mxu0 %v341
    %v996 = vpop.f32.mrf.mxu0
    %v997 = vadd.f32 %v117, %v996
    %v998 = vpop.f32.mrf.mxu0
    %999 = vmatprep.mubr.f32.mxu0 %v344
    %1000 = vmatmul.mubr.f32.gmra.mxu0 %v343
    %v1001 = vpop.f32.mrf.mxu0
    %v1002 = vadd.f32 %v117, %v1001
    %v1003 = vpop.f32.mrf.mxu0
    %1004 = vmatprep.mubr.f32.mxu0 %v346
    %1005 = vmatmul.mubr.f32.gmra.mxu0 %v345
    %v1006 = vpop.f32.mrf.mxu0
    %v1007 = vadd.f32 %v117, %v1006
    %v1008 = vpop.f32.mrf.mxu0
    %1009 = vmatprep.mubr.f32.mxu0 %v348
    %1010 = vmatmul.mubr.f32.gmra.mxu0 %v347
    %v1011 = vpop.f32.mrf.mxu0
    %v1012 = vadd.f32 %v117, %v1011
    %v1013 = vpop.f32.mrf.mxu0
    %1014 = vmatprep.mubr.f32.mxu0 %v350
    %1015 = vmatmul.mubr.f32.gmra.mxu0 %v349
    %v1016 = vpop.f32.mrf.mxu0
    %v1017 = vadd.f32 %v117, %v1016
    %v1018 = vpop.f32.mrf.mxu0
    %1019 = vmatprep.mubr.f32.mxu0 %v352
    %1020 = vmatmul.mubr.f32.gmra.mxu0 %v351
    %v1021 = vpop.f32.mrf.mxu0
    %v1022 = vadd.f32 %v117, %v1021
    %v1023 = vpop.f32.mrf.mxu0
    %1024 = vmatprep.mubr.f32.mxu0 %v354
    %1025 = vmatmul.mubr.f32.gmra.mxu0 %v353
    %v1026 = vpop.f32.mrf.mxu0
    %v1027 = vadd.f32 %v117, %v1026
    %v1028 = vpop.f32.mrf.mxu0
    %1029 = vmatprep.mubr.f32.mxu0 %v356
    %1030 = vmatmul.mubr.f32.gmra.mxu0 %v355
    %v1031 = vpop.f32.mrf.mxu0
    %v1032 = vadd.f32 %v117, %v1031
    %v1033 = vpop.f32.mrf.mxu0
    %1034 = vmatprep.mubr.f32.mxu0 %v358
    %1035 = vmatmul.mubr.f32.gmra.mxu0 %v357
    %v1036 = vpop.f32.mrf.mxu0
    %v1037 = vadd.f32 %v117, %v1036
    %v1038 = vpop.f32.mrf.mxu0
    %1039 = vmatprep.mubr.f32.mxu0 %v360
    %1040 = vmatmul.mubr.f32.gmra.mxu0 %v359
    %v1041 = vpop.f32.mrf.mxu0
    %v1042 = vadd.f32 %v117, %v1041
    %v1043 = vpop.f32.mrf.mxu0
    %1044 = vmatprep.mubr.f32.mxu0 %v362
    %1045 = vmatmul.mubr.f32.gmra.mxu0 %v361
    %v1046 = vpop.f32.mrf.mxu0
    %v1047 = vadd.f32 %v117, %v1046
    %v1048 = vpop.f32.mrf.mxu0
    %1049 = vmatprep.mubr.f32.mxu0 %v364
    %1050 = vmatmul.mubr.f32.gmra.mxu0 %v363
    %v1051 = vpop.f32.mrf.mxu0
    %v1052 = vadd.f32 %v117, %v1051
    %v1053 = vpop.f32.mrf.mxu0
    %1054 = vmatprep.mubr.f32.mxu0 %v366
    %1055 = vmatmul.mubr.f32.gmra.mxu0 %v365
    %v1056 = vpop.f32.mrf.mxu0
    %v1057 = vadd.f32 %v117, %v1056
    %v1058 = vpop.f32.mrf.mxu0
    %1059 = vmatprep.mubr.f32.mxu0 %v368
    %1060 = vmatmul.mubr.f32.gmra.mxu0 %v367
    %v1061 = vpop.f32.mrf.mxu0
    %v1062 = vadd.f32 %v117, %v1061
    %v1063 = vpop.f32.mrf.mxu0
    %1064 = vmatprep.mubr.f32.mxu0 %v370
    %1065 = vmatmul.mubr.f32.gmra.mxu0 %v369
    %v1066 = vpop.f32.mrf.mxu0
    %v1067 = vadd.f32 %v117, %v1066
    %v1068 = vpop.f32.mrf.mxu0
    %1069 = vmatprep.mubr.f32.mxu0 %v372
    %1070 = vmatmul.mubr.f32.gmra.mxu0 %v371
    %v1071 = vpop.f32.mrf.mxu0
    %v1072 = vadd.f32 %v117, %v1071
    %v1073 = vpop.f32.mrf.mxu0
    %1074 = vmatprep.mubr.f32.mxu0 %v374
    %1075 = vmatmul.mubr.f32.gmra.mxu0 %v373
    %v1076 = vpop.f32.mrf.mxu0
    %v1077 = vadd.f32 %v117, %v1076
    %v1078 = vpop.f32.mrf.mxu0
    %1079 = vdwg.mxu0
    %v1080 = vtanh.pop %v442
    %v1081 = vtanh.pop %v447
    %v1082 = vtanh.pop %v452
    %v1083 = vtanh.pop %v457
    %v1084 = vtanh.pop %v462
    %v1085 = vtanh.pop %v467
    %v1086 = vtanh.pop %v472
    %v1087 = vtanh.pop %v477
    %v1088 = vtanh.pop %v482
    %v1089 = vtanh.pop %v487
    %v1090 = vtanh.pop %v492
    %v1091 = vtanh.pop %v497
    %v1092 = vtanh.pop %v502
    %v1093 = vtanh.pop %v507
    %v1094 = vtanh.pop %v512
    %v1095 = vtanh.pop %v517
    %v1096 = vtanh.pop %v522
    %v1097 = vtanh.pop %v527
    %v1098 = vtanh.pop %v532
    %v1099 = vtanh.pop %v537
    %v1100 = vtanh.pop %v542
    %v1101 = vtanh.pop %v547
    %v1102 = vtanh.pop %v552
    %v1103 = vtanh.pop %v557
    %v1104 = vtanh.pop %v562
    %v1105 = vtanh.pop %v567
    %v1106 = vtanh.pop %v572
    %v1107 = vtanh.pop %v577
    %v1108 = vtanh.pop %v582
    %v1109 = vtanh.pop %v587
    %v1110 = vtanh.pop %v592
    %v1111 = vtanh.pop %v597
    %v1112 = vtanh.pop %v602
    %v1113 = vtanh.pop %v607
    %v1114 = vtanh.pop %v612
    %v1115 = vtanh.pop %v617
    %v1116 = vtanh.pop %v622
    %v1117 = vtanh.pop %v627
    %v1118 = vtanh.pop %v632
    %v1119 = vtanh.pop %v637
    %v1120 = vtanh.pop %v642
    %v1121 = vtanh.pop %v647
    %v1122 = vtanh.pop %v652
    %v1123 = vtanh.pop %v657
    %v1124 = vtanh.pop %v662
    %v1125 = vtanh.pop %v667
    %v1126 = vtanh.pop %v672
    %v1127 = vtanh.pop %v677
    %v1128 = vtanh.pop %v682
    %v1129 = vtanh.pop %v687
    %v1130 = vtanh.pop %v692
    %v1131 = vtanh.pop %v697
    %v1132 = vtanh.pop %v702
    %v1133 = vtanh.pop %v707
    %v1134 = vtanh.pop %v712
    %v1135 = vtanh.pop %v717
    %v1136 = vtanh.pop %v722
    %v1137 = vtanh.pop %v727
    %v1138 = vtanh.pop %v732
    %v1139 = vtanh.pop %v737
    %v1140 = vtanh.pop %v742
    %v1141 = vtanh.pop %v747
    %v1142 = vtanh.pop %v752
    %v1143 = vtanh.pop %v757
    %v1144 = vtanh.pop %v762
    %v1145 = vtanh.pop %v767
    %v1146 = vtanh.pop %v772
    %v1147 = vtanh.pop %v777
    %v1148 = vtanh.pop %v782
    %v1149 = vtanh.pop %v787
    %v1150 = vtanh.pop %v792
    %v1151 = vtanh.pop %v797
    %v1152 = vtanh.pop %v802
    %v1153 = vtanh.pop %v807
    %v1154 = vtanh.pop %v812
    %v1155 = vtanh.pop %v817
    %v1156 = vtanh.pop %v822
    %v1157 = vtanh.pop %v827
    %v1158 = vtanh.pop %v832
    %v1159 = vtanh.pop %v837
    %v1160 = vtanh.pop %v842
    %v1161 = vtanh.pop %v847
    %v1162 = vtanh.pop %v852
    %v1163 = vtanh.pop %v857
    %v1164 = vtanh.pop %v862
    %v1165 = vtanh.pop %v867
    %v1166 = vtanh.pop %v872
    %v1167 = vtanh.pop %v877
    %v1168 = vtanh.pop %v882
    %v1169 = vtanh.pop %v887
    %v1170 = vtanh.pop %v892
    %v1171 = vtanh.pop %v897
    %v1172 = vtanh.pop %v902
    %v1173 = vtanh.pop %v907
    %v1174 = vtanh.pop %v912
    %v1175 = vtanh.pop %v917
    %v1176 = vtanh.pop %v922
    %v1177 = vtanh.pop %v927
    %v1178 = vtanh.pop %v932
    %v1179 = vtanh.pop %v937
    %v1180 = vtanh.pop %v942
    %v1181 = vtanh.pop %v947
    %v1182 = vtanh.pop %v952
    %v1183 = vtanh.pop %v957
    %v1184 = vtanh.pop %v962
    %v1185 = vtanh.pop %v967
    %v1186 = vtanh.pop %v972
    %v1187 = vtanh.pop %v977
    %v1188 = vtanh.pop %v982
    %v1189 = vtanh.pop %v987
    %v1190 = vtanh.pop %v992
    %v1191 = vtanh.pop %v997
    %v1192 = vtanh.pop %v1002
    %v1193 = vtanh.pop %v1007
    %v1194 = vtanh.pop %v1012
    %v1195 = vtanh.pop %v1017
    %v1196 = vtanh.pop %v1022
    %v1197 = vtanh.pop %v1027
    %v1198 = vtanh.pop %v1032
    %v1199 = vtanh.pop %v1037
    %v1200 = vtanh.pop %v1042
    %v1201 = vtanh.pop %v1047
    %v1202 = vtanh.pop %v1052
    %v1203 = vtanh.pop %v1057
    %v1204 = vtanh.pop %v1062
    %v1205 = vtanh.pop %v1067
    %v1206 = vtanh.pop %v1072
    %v1207 = vtanh.pop %v1077
    %v1208 = vadd.f32 %v1080, %v1081
    %v1209 = vadd.f32 %v1208, %v1082
    %v1210 = vadd.f32 %v1209, %v1083
    %v1211 = vadd.f32 %v1210, %v1084
    %v1212 = vadd.f32 %v1211, %v1085
    %v1213 = vadd.f32 %v1212, %v1086
    %v1214 = vadd.f32 %v1213, %v1087
    %v1215 = vadd.f32 %v1214, %v1088
    %v1216 = vadd.f32 %v1215, %v1089
    %v1217 = vadd.f32 %v1216, %v1090
    %v1218 = vadd.f32 %v1217, %v1091
    %v1219 = vadd.f32 %v1218, %v1092
    %v1220 = vadd.f32 %v1219, %v1093
    %v1221 = vadd.f32 %v1220, %v1094
    %v1222 = vadd.f32 %v1221, %v1095
    %v1223 = vadd.f32 %v1222, %v1096
    %v1224 = vadd.f32 %v1223, %v1097
    %v1225 = vadd.f32 %v1224, %v1098
    %v1226 = vadd.f32 %v1225, %v1099
    %v1227 = vadd.f32 %v1226, %v1100
    %v1228 = vadd.f32 %v1227, %v1101
    %v1229 = vadd.f32 %v1228, %v1102
    %v1230 = vadd.f32 %v1229, %v1103
    %v1231 = vadd.f32 %v1230, %v1104
    %v1232 = vadd.f32 %v1231, %v1105
    %v1233 = vadd.f32 %v1232, %v1106
    %v1234 = vadd.f32 %v1233, %v1107
    %v1235 = vadd.f32 %v1234, %v1108
    %v1236 = vadd.f32 %v1235, %v1109
    %v1237 = vadd.f32 %v1236, %v1110
    %v1238 = vadd.f32 %v1237, %v1111
    %v1239 = vadd.f32 %v1238, %v1112
    %v1240 = vadd.f32 %v1239, %v1113
    %v1241 = vadd.f32 %v1240, %v1114
    %v1242 = vadd.f32 %v1241, %v1115
    %v1243 = vadd.f32 %v1242, %v1116
    %v1244 = vadd.f32 %v1243, %v1117
    %v1245 = vadd.f32 %v1244, %v1118
    %v1246 = vadd.f32 %v1245, %v1119
    %v1247 = vadd.f32 %v1246, %v1120
    %v1248 = vadd.f32 %v1247, %v1121
    %v1249 = vadd.f32 %v1248, %v1122
    %v1250 = vadd.f32 %v1249, %v1123
    %v1251 = vadd.f32 %v1250, %v1124
    %v1252 = vadd.f32 %v1251, %v1125
    %v1253 = vadd.f32 %v1252, %v1126
    %v1254 = vadd.f32 %v1253, %v1127
    %v1255 = vadd.f32 %v1254, %v1128
    %v1256 = vadd.f32 %v1255, %v1129
    %v1257 = vadd.f32 %v1256, %v1130
    %v1258 = vadd.f32 %v1257, %v1131
    %v1259 = vadd.f32 %v1258, %v1132
    %v1260 = vadd.f32 %v1259, %v1133
    %v1261 = vadd.f32 %v1260, %v1134
    %v1262 = vadd.f32 %v1261, %v1135
    %v1263 = vadd.f32 %v1262, %v1136
    %v1264 = vadd.f32 %v1263, %v1137
    %v1265 = vadd.f32 %v1264, %v1138
    %v1266 = vadd.f32 %v1265, %v1139
    %v1267 = vadd.f32 %v1266, %v1140
    %v1268 = vadd.f32 %v1267, %v1141
    %v1269 = vadd.f32 %v1268, %v1142
    %v1270 = vadd.f32 %v1269, %v1143
    %v1271 = vadd.f32 %v1270, %v1144
    %v1272 = vadd.f32 %v1271, %v1145
    %v1273 = vadd.f32 %v1272, %v1146
    %v1274 = vadd.f32 %v1273, %v1147
    %v1275 = vadd.f32 %v1274, %v1148
    %v1276 = vadd.f32 %v1275, %v1149
    %v1277 = vadd.f32 %v1276, %v1150
    %v1278 = vadd.f32 %v1277, %v1151
    %v1279 = vadd.f32 %v1278, %v1152
    %v1280 = vadd.f32 %v1279, %v1153
    %v1281 = vadd.f32 %v1280, %v1154
    %v1282 = vadd.f32 %v1281, %v1155
    %v1283 = vadd.f32 %v1282, %v1156
    %v1284 = vadd.f32 %v1283, %v1157
    %v1285 = vadd.f32 %v1284, %v1158
    %v1286 = vadd.f32 %v1285, %v1159
    %v1287 = vadd.f32 %v1286, %v1160
    %v1288 = vadd.f32 %v1287, %v1161
    %v1289 = vadd.f32 %v1288, %v1162
    %v1290 = vadd.f32 %v1289, %v1163
    %v1291 = vadd.f32 %v1290, %v1164
    %v1292 = vadd.f32 %v1291, %v1165
    %v1293 = vadd.f32 %v1292, %v1166
    %v1294 = vadd.f32 %v1293, %v1167
    %v1295 = vadd.f32 %v1294, %v1168
    %v1296 = vadd.f32 %v1295, %v1169
    %v1297 = vadd.f32 %v1296, %v1170
    %v1298 = vadd.f32 %v1297, %v1171
    %v1299 = vadd.f32 %v1298, %v1172
    %v1300 = vadd.f32 %v1299, %v1173
    %v1301 = vadd.f32 %v1300, %v1174
    %v1302 = vadd.f32 %v1301, %v1175
    %v1303 = vadd.f32 %v1302, %v1176
    %v1304 = vadd.f32 %v1303, %v1177
    %v1305 = vadd.f32 %v1304, %v1178
    %v1306 = vadd.f32 %v1305, %v1179
    %v1307 = vadd.f32 %v1306, %v1180
    %v1308 = vadd.f32 %v1307, %v1181
    %v1309 = vadd.f32 %v1308, %v1182
    %v1310 = vadd.f32 %v1309, %v1183
    %v1311 = vadd.f32 %v1310, %v1184
    %v1312 = vadd.f32 %v1311, %v1185
    %v1313 = vadd.f32 %v1312, %v1186
    %v1314 = vadd.f32 %v1313, %v1187
    %v1315 = vadd.f32 %v1314, %v1188
    %v1316 = vadd.f32 %v1315, %v1189
    %v1317 = vadd.f32 %v1316, %v1190
    %v1318 = vadd.f32 %v1317, %v1191
    %v1319 = vadd.f32 %v1318, %v1192
    %v1320 = vadd.f32 %v1319, %v1193
    %v1321 = vadd.f32 %v1320, %v1194
    %v1322 = vadd.f32 %v1321, %v1195
    %v1323 = vadd.f32 %v1322, %v1196
    %v1324 = vadd.f32 %v1323, %v1197
    %v1325 = vadd.f32 %v1324, %v1198
    %v1326 = vadd.f32 %v1325, %v1199
    %v1327 = vadd.f32 %v1326, %v1200
    %v1328 = vadd.f32 %v1327, %v1201
    %v1329 = vadd.f32 %v1328, %v1202
    %v1330 = vadd.f32 %v1329, %v1203
    %v1331 = vadd.f32 %v1330, %v1204
    %v1332 = vadd.f32 %v1331, %v1205
    %v1333 = vadd.f32 %v1332, %v1206
    %v1334 = vadd.f32 %v1333, %v1207
    %v1335 = vrot.slane %v1334, 4
    %v1336 = vadd.f32 %v1334, %v1335
    %v1337 = vrot.slane %v1336, 2
    %v1338 = vadd.f32 %v1336, %v1337
    %v1339 = vrot.slane %v1338, 1
    %v1340 = vadd.f32 %v1338, %v1339
    %v1341 = vmul.f32 %v1340, 0.0009765625
    %v1342 = vmul.f32 %v1341, %v111
    %vm1343 = vcmask 1040384
    %v1344 = vsel %vm1343, %v1342, 0.0
    %1345 = vadd.xlane.f32.xlu0 %v1344
    %v1346 = vpop.xlane.xlu0 %1345
    %v1347 = vld [vmem:[#allocation5] sm:$0xff]
    %v1348 = vld [vmem:[#allocation5 + $0x8] sm:$0xff]
    %v1349 = vld [vmem:[#allocation5 + $0x10] sm:$0xff]
    %v1350 = vld [vmem:[#allocation5 + $0x18] sm:$0xff]
    %v1351 = vld [vmem:[#allocation5 + $0x20] sm:$0xff]
    %v1352 = vld [vmem:[#allocation5 + $0x28] sm:$0xff]
    %v1353 = vld [vmem:[#allocation5 + $0x30] sm:$0xff]
    %v1354 = vld [vmem:[#allocation5 + $0x38] sm:$0xff]
    %v1355 = vld [vmem:[#allocation5 + $0x40] sm:$0xff]
    %v1356 = vld [vmem:[#allocation5 + $0x48] sm:$0xff]
    %v1357 = vld [vmem:[#allocation5 + $0x50] sm:$0xff]
    %v1358 = vld [vmem:[#allocation5 + $0x58] sm:$0xff]
    %v1359 = vld [vmem:[#allocation5 + $0x60] sm:$0xff]
    %v1360 = vld [vmem:[#allocation5 + $0x68] sm:$0xff]
    %v1361 = vld [vmem:[#allocation5 + $0x70] sm:$0xff]
    %v1362 = vld [vmem:[#allocation5 + $0x78] sm:$0xff]
    %v1363 = vld [vmem:[#allocation5 + $0x80] sm:$0xff]
    %v1364 = vld [vmem:[#allocation5 + $0x88] sm:$0xff]
    %v1365 = vld [vmem:[#allocation5 + $0x90] sm:$0xff]
    %v1366 = vld [vmem:[#allocation5 + $0x98] sm:$0xff]
    %v1367 = vld [vmem:[#allocation5 + $0xa0] sm:$0xff]
    %v1368 = vld [vmem:[#allocation5 + $0xa8] sm:$0xff]
    %v1369 = vld [vmem:[#allocation5 + $0xb0] sm:$0xff]
    %v1370 = vld [vmem:[#allocation5 + $0xb8] sm:$0xff]
    %v1371 = vld [vmem:[#allocation5 + $0xc0] sm:$0xff]
    %v1372 = vld [vmem:[#allocation5 + $0xc8] sm:$0xff]
    %v1373 = vld [vmem:[#allocation5 + $0xd0] sm:$0xff]
    %v1374 = vld [vmem:[#allocation5 + $0xd8] sm:$0xff]
    %v1375 = vld [vmem:[#allocation5 + $0xe0] sm:$0xff]
    %v1376 = vld [vmem:[#allocation5 + $0xe8] sm:$0xff]
    %v1377 = vld [vmem:[#allocation5 + $0xf0] sm:$0xff]
    %v1378 = vld [vmem:[#allocation5 + $0xf8] sm:$0xff]
    %v1379 = vld [vmem:[#allocation5 + $0x100] sm:$0xff]
    %v1380 = vld [vmem:[#allocation5 + $0x108] sm:$0xff]
    %v1381 = vld [vmem:[#allocation5 + $0x110] sm:$0xff]
    %v1382 = vld [vmem:[#allocation5 + $0x118] sm:$0xff]
    %v1383 = vld [vmem:[#allocation5 + $0x120] sm:$0xff]
    %v1384 = vld [vmem:[#allocation5 + $0x128] sm:$0xff]
    %v1385 = vld [vmem:[#allocation5 + $0x130] sm:$0xff]
    %v1386 = vld [vmem:[#allocation5 + $0x138] sm:$0xff]
    %v1387 = vld [vmem:[#allocation5 + $0x140] sm:$0xff]
    %v1388 = vld [vmem:[#allocation5 + $0x148] sm:$0xff]
    %v1389 = vld [vmem:[#allocation5 + $0x150] sm:$0xff]
    %v1390 = vld [vmem:[#allocation5 + $0x158] sm:$0xff]
    %v1391 = vld [vmem:[#allocation5 + $0x160] sm:$0xff]
    %v1392 = vld [vmem:[#allocation5 + $0x168] sm:$0xff]
    %v1393 = vld [vmem:[#allocation5 + $0x170] sm:$0xff]
    %v1394 = vld [vmem:[#allocation5 + $0x178] sm:$0xff]
    %v1395 = vld [vmem:[#allocation5 + $0x180] sm:$0xff]
    %v1396 = vld [vmem:[#allocation5 + $0x188] sm:$0xff]
    %v1397 = vld [vmem:[#allocation5 + $0x190] sm:$0xff]
    %v1398 = vld [vmem:[#allocation5 + $0x198] sm:$0xff]
    %v1399 = vld [vmem:[#allocation5 + $0x1a0] sm:$0xff]
    %v1400 = vld [vmem:[#allocation5 + $0x1a8] sm:$0xff]
    %v1401 = vld [vmem:[#allocation5 + $0x1b0] sm:$0xff]
    %v1402 = vld [vmem:[#allocation5 + $0x1b8] sm:$0xff]
    %v1403 = vld [vmem:[#allocation5 + $0x1c0] sm:$0xff]
    %v1404 = vld [vmem:[#allocation5 + $0x1c8] sm:$0xff]
    %v1405 = vld [vmem:[#allocation5 + $0x1d0] sm:$0xff]
    %v1406 = vld [vmem:[#allocation5 + $0x1d8] sm:$0xff]
    %v1407 = vld [vmem:[#allocation5 + $0x1e0] sm:$0xff]
    %v1408 = vld [vmem:[#allocation5 + $0x1e8] sm:$0xff]
    %v1409 = vld [vmem:[#allocation5 + $0x1f0] sm:$0xff]
    %v1410 = vld [vmem:[#allocation5 + $0x1f8] sm:$0xff]
    %v1411 = vld [vmem:[#allocation5 + $0x200] sm:$0xff]
    %v1412 = vld [vmem:[#allocation5 + $0x208] sm:$0xff]
    %v1413 = vld [vmem:[#allocation5 + $0x210] sm:$0xff]
    %v1414 = vld [vmem:[#allocation5 + $0x218] sm:$0xff]
    %v1415 = vld [vmem:[#allocation5 + $0x220] sm:$0xff]
    %v1416 = vld [vmem:[#allocation5 + $0x228] sm:$0xff]
    %v1417 = vld [vmem:[#allocation5 + $0x230] sm:$0xff]
    %v1418 = vld [vmem:[#allocation5 + $0x238] sm:$0xff]
    %v1419 = vld [vmem:[#allocation5 + $0x240] sm:$0xff]
    %v1420 = vld [vmem:[#allocation5 + $0x248] sm:$0xff]
    %v1421 = vld [vmem:[#allocation5 + $0x250] sm:$0xff]
    %v1422 = vld [vmem:[#allocation5 + $0x258] sm:$0xff]
    %v1423 = vld [vmem:[#allocation5 + $0x260] sm:$0xff]
    %v1424 = vld [vmem:[#allocation5 + $0x268] sm:$0xff]
    %v1425 = vld [vmem:[#allocation5 + $0x270] sm:$0xff]
    %v1426 = vld [vmem:[#allocation5 + $0x278] sm:$0xff]
    %v1427 = vld [vmem:[#allocation5 + $0x280] sm:$0xff]
    %v1428 = vld [vmem:[#allocation5 + $0x288] sm:$0xff]
    %v1429 = vld [vmem:[#allocation5 + $0x290] sm:$0xff]
    %v1430 = vld [vmem:[#allocation5 + $0x298] sm:$0xff]
    %v1431 = vld [vmem:[#allocation5 + $0x2a0] sm:$0xff]
    %v1432 = vld [vmem:[#allocation5 + $0x2a8] sm:$0xff]
    %v1433 = vld [vmem:[#allocation5 + $0x2b0] sm:$0xff]
    %v1434 = vld [vmem:[#allocation5 + $0x2b8] sm:$0xff]
    %v1435 = vld [vmem:[#allocation5 + $0x2c0] sm:$0xff]
    %v1436 = vld [vmem:[#allocation5 + $0x2c8] sm:$0xff]
    %v1437 = vld [vmem:[#allocation5 + $0x2d0] sm:$0xff]
    %v1438 = vld [vmem:[#allocation5 + $0x2d8] sm:$0xff]
    %v1439 = vld [vmem:[#allocation5 + $0x2e0] sm:$0xff]
    %v1440 = vld [vmem:[#allocation5 + $0x2e8] sm:$0xff]
    %v1441 = vld [vmem:[#allocation5 + $0x2f0] sm:$0xff]
    %v1442 = vld [vmem:[#allocation5 + $0x2f8] sm:$0xff]
    %v1443 = vld [vmem:[#allocation5 + $0x300] sm:$0xff]
    %v1444 = vld [vmem:[#allocation5 + $0x308] sm:$0xff]
    %v1445 = vld [vmem:[#allocation5 + $0x310] sm:$0xff]
    %v1446 = vld [vmem:[#allocation5 + $0x318] sm:$0xff]
    %v1447 = vld [vmem:[#allocation5 + $0x320] sm:$0xff]
    %v1448 = vld [vmem:[#allocation5 + $0x328] sm:$0xff]
    %v1449 = vld [vmem:[#allocation5 + $0x330] sm:$0xff]
    %v1450 = vld [vmem:[#allocation5 + $0x338] sm:$0xff]
    %v1451 = vld [vmem:[#allocation5 + $0x340] sm:$0xff]
    %v1452 = vld [vmem:[#allocation5 + $0x348] sm:$0xff]
    %v1453 = vld [vmem:[#allocation5 + $0x350] sm:$0xff]
    %v1454 = vld [vmem:[#allocation5 + $0x358] sm:$0xff]
    %v1455 = vld [vmem:[#allocation5 + $0x360] sm:$0xff]
    %v1456 = vld [vmem:[#allocation5 + $0x368] sm:$0xff]
    %v1457 = vld [vmem:[#allocation5 + $0x370] sm:$0xff]
    %v1458 = vld [vmem:[#allocation5 + $0x378] sm:$0xff]
    %v1459 = vld [vmem:[#allocation5 + $0x380] sm:$0xff]
    %v1460 = vld [vmem:[#allocation5 + $0x388] sm:$0xff]
    %v1461 = vld [vmem:[#allocation5 + $0x390] sm:$0xff]
    %v1462 = vld [vmem:[#allocation5 + $0x398] sm:$0xff]
    %v1463 = vld [vmem:[#allocation5 + $0x3a0] sm:$0xff]
    %v1464 = vld [vmem:[#allocation5 + $0x3a8] sm:$0xff]
    %v1465 = vld [vmem:[#allocation5 + $0x3b0] sm:$0xff]
    %v1466 = vld [vmem:[#allocation5 + $0x3b8] sm:$0xff]
    %v1467 = vld [vmem:[#allocation5 + $0x3c0] sm:$0xff]
    %v1468 = vld [vmem:[#allocation5 + $0x3c8] sm:$0xff]
    %v1469 = vld [vmem:[#allocation5 + $0x3d0] sm:$0xff]
    %v1470 = vld [vmem:[#allocation5 + $0x3d8] sm:$0xff]
    %v1471 = vld [vmem:[#allocation5 + $0x3e0] sm:$0xff]
    %v1472 = vld [vmem:[#allocation5 + $0x3e8] sm:$0xff]
    %v1473 = vld [vmem:[#allocation5 + $0x3f0] sm:$0xff]
    %v1474 = vld [vmem:[#allocation5 + $0x3f8] sm:$0xff]
    %v1475 = vld [vmem:[#allocation5 + $0x400] sm:$0xff]
    %v1476 = vld [vmem:[#allocation5 + $0x408] sm:$0xff]
    %v1477 = vld [vmem:[#allocation5 + $0x410] sm:$0xff]
    %v1478 = vld [vmem:[#allocation5 + $0x418] sm:$0xff]
    %v1479 = vld [vmem:[#allocation5 + $0x420] sm:$0xff]
    %v1480 = vld [vmem:[#allocation5 + $0x428] sm:$0xff]
    %v1481 = vld [vmem:[#allocation5 + $0x430] sm:$0xff]
    %v1482 = vld [vmem:[#allocation5 + $0x438] sm:$0xff]
    %v1483 = vld [vmem:[#allocation5 + $0x440] sm:$0xff]
    %v1484 = vld [vmem:[#allocation5 + $0x448] sm:$0xff]
    %v1485 = vld [vmem:[#allocation5 + $0x450] sm:$0xff]
    %v1486 = vld [vmem:[#allocation5 + $0x458] sm:$0xff]
    %v1487 = vld [vmem:[#allocation5 + $0x460] sm:$0xff]
    %v1488 = vld [vmem:[#allocation5 + $0x468] sm:$0xff]
    %v1489 = vld [vmem:[#allocation5 + $0x470] sm:$0xff]
    %v1490 = vld [vmem:[#allocation5 + $0x478] sm:$0xff]
    %v1491 = vld [vmem:[#allocation5 + $0x480] sm:$0xff]
    %v1492 = vld [vmem:[#allocation5 + $0x488] sm:$0xff]
    %v1493 = vld [vmem:[#allocation5 + $0x490] sm:$0xff]
    %v1494 = vld [vmem:[#allocation5 + $0x498] sm:$0xff]
    %v1495 = vld [vmem:[#allocation5 + $0x4a0] sm:$0xff]
    %v1496 = vld [vmem:[#allocation5 + $0x4a8] sm:$0xff]
    %v1497 = vld [vmem:[#allocation5 + $0x4b0] sm:$0xff]
    %v1498 = vld [vmem:[#allocation5 + $0x4b8] sm:$0xff]
    %v1499 = vld [vmem:[#allocation5 + $0x4c0] sm:$0xff]
    %v1500 = vld [vmem:[#allocation5 + $0x4c8] sm:$0xff]
    %v1501 = vld [vmem:[#allocation5 + $0x4d0] sm:$0xff]
    %v1502 = vld [vmem:[#allocation5 + $0x4d8] sm:$0xff]
    %v1503 = vld [vmem:[#allocation5 + $0x4e0] sm:$0xff]
    %v1504 = vld [vmem:[#allocation5 + $0x4e8] sm:$0xff]
    %v1505 = vld [vmem:[#allocation5 + $0x4f0] sm:$0xff]
    %v1506 = vld [vmem:[#allocation5 + $0x4f8] sm:$0xff]
    %v1507 = vld [vmem:[#allocation5 + $0x500] sm:$0xff]
    %v1508 = vld [vmem:[#allocation5 + $0x508] sm:$0xff]
    %v1509 = vld [vmem:[#allocation5 + $0x510] sm:$0xff]
    %v1510 = vld [vmem:[#allocation5 + $0x518] sm:$0xff]
    %v1511 = vld [vmem:[#allocation5 + $0x520] sm:$0xff]
    %v1512 = vld [vmem:[#allocation5 + $0x528] sm:$0xff]
    %v1513 = vld [vmem:[#allocation5 + $0x530] sm:$0xff]
    %v1514 = vld [vmem:[#allocation5 + $0x538] sm:$0xff]
    %v1515 = vld [vmem:[#allocation5 + $0x540] sm:$0xff]
    %v1516 = vld [vmem:[#allocation5 + $0x548] sm:$0xff]
    %v1517 = vld [vmem:[#allocation5 + $0x550] sm:$0xff]
    %v1518 = vld [vmem:[#allocation5 + $0x558] sm:$0xff]
    %v1519 = vld [vmem:[#allocation5 + $0x560] sm:$0xff]
    %v1520 = vld [vmem:[#allocation5 + $0x568] sm:$0xff]
    %v1521 = vld [vmem:[#allocation5 + $0x570] sm:$0xff]
    %v1522 = vld [vmem:[#allocation5 + $0x578] sm:$0xff]
    %v1523 = vld [vmem:[#allocation5 + $0x580] sm:$0xff]
    %v1524 = vld [vmem:[#allocation5 + $0x588] sm:$0xff]
    %v1525 = vld [vmem:[#allocation5 + $0x590] sm:$0xff]
    %v1526 = vld [vmem:[#allocation5 + $0x598] sm:$0xff]
    %v1527 = vld [vmem:[#allocation5 + $0x5a0] sm:$0xff]
    %v1528 = vld [vmem:[#allocation5 + $0x5a8] sm:$0xff]
    %v1529 = vld [vmem:[#allocation5 + $0x5b0] sm:$0xff]
    %v1530 = vld [vmem:[#allocation5 + $0x5b8] sm:$0xff]
    %v1531 = vld [vmem:[#allocation5 + $0x5c0] sm:$0xff]
    %v1532 = vld [vmem:[#allocation5 + $0x5c8] sm:$0xff]
    %v1533 = vld [vmem:[#allocation5 + $0x5d0] sm:$0xff]
    %v1534 = vld [vmem:[#allocation5 + $0x5d8] sm:$0xff]
    %v1535 = vld [vmem:[#allocation5 + $0x5e0] sm:$0xff]
    %v1536 = vld [vmem:[#allocation5 + $0x5e8] sm:$0xff]
    %v1537 = vld [vmem:[#allocation5 + $0x5f0] sm:$0xff]
    %v1538 = vld [vmem:[#allocation5 + $0x5f8] sm:$0xff]
    %v1539 = vld [vmem:[#allocation5 + $0x600] sm:$0xff]
    %v1540 = vld [vmem:[#allocation5 + $0x608] sm:$0xff]
    %v1541 = vld [vmem:[#allocation5 + $0x610] sm:$0xff]
    %v1542 = vld [vmem:[#allocation5 + $0x618] sm:$0xff]
    %v1543 = vld [vmem:[#allocation5 + $0x620] sm:$0xff]
    %v1544 = vld [vmem:[#allocation5 + $0x628] sm:$0xff]
    %v1545 = vld [vmem:[#allocation5 + $0x630] sm:$0xff]
    %v1546 = vld [vmem:[#allocation5 + $0x638] sm:$0xff]
    %v1547 = vld [vmem:[#allocation5 + $0x640] sm:$0xff]
    %v1548 = vld [vmem:[#allocation5 + $0x648] sm:$0xff]
    %v1549 = vld [vmem:[#allocation5 + $0x650] sm:$0xff]
    %v1550 = vld [vmem:[#allocation5 + $0x658] sm:$0xff]
    %v1551 = vld [vmem:[#allocation5 + $0x660] sm:$0xff]
    %v1552 = vld [vmem:[#allocation5 + $0x668] sm:$0xff]
    %v1553 = vld [vmem:[#allocation5 + $0x670] sm:$0xff]
    %v1554 = vld [vmem:[#allocation5 + $0x678] sm:$0xff]
    %v1555 = vld [vmem:[#allocation5 + $0x680] sm:$0xff]
    %v1556 = vld [vmem:[#allocation5 + $0x688] sm:$0xff]
    %v1557 = vld [vmem:[#allocation5 + $0x690] sm:$0xff]
    %v1558 = vld [vmem:[#allocation5 + $0x698] sm:$0xff]
    %v1559 = vld [vmem:[#allocation5 + $0x6a0] sm:$0xff]
    %v1560 = vld [vmem:[#allocation5 + $0x6a8] sm:$0xff]
    %v1561 = vld [vmem:[#allocation5 + $0x6b0] sm:$0xff]
    %v1562 = vld [vmem:[#allocation5 + $0x6b8] sm:$0xff]
    %v1563 = vld [vmem:[#allocation5 + $0x6c0] sm:$0xff]
    %v1564 = vld [vmem:[#allocation5 + $0x6c8] sm:$0xff]
    %v1565 = vld [vmem:[#allocation5 + $0x6d0] sm:$0xff]
    %v1566 = vld [vmem:[#allocation5 + $0x6d8] sm:$0xff]
    %v1567 = vld [vmem:[#allocation5 + $0x6e0] sm:$0xff]
    %v1568 = vld [vmem:[#allocation5 + $0x6e8] sm:$0xff]
    %v1569 = vld [vmem:[#allocation5 + $0x6f0] sm:$0xff]
    %v1570 = vld [vmem:[#allocation5 + $0x6f8] sm:$0xff]
    %v1571 = vld [vmem:[#allocation5 + $0x700] sm:$0xff]
    %v1572 = vld [vmem:[#allocation5 + $0x708] sm:$0xff]
    %v1573 = vld [vmem:[#allocation5 + $0x710] sm:$0xff]
    %v1574 = vld [vmem:[#allocation5 + $0x718] sm:$0xff]
    %v1575 = vld [vmem:[#allocation5 + $0x720] sm:$0xff]
    %v1576 = vld [vmem:[#allocation5 + $0x728] sm:$0xff]
    %v1577 = vld [vmem:[#allocation5 + $0x730] sm:$0xff]
    %v1578 = vld [vmem:[#allocation5 + $0x738] sm:$0xff]
    %v1579 = vld [vmem:[#allocation5 + $0x740] sm:$0xff]
    %v1580 = vld [vmem:[#allocation5 + $0x748] sm:$0xff]
    %v1581 = vld [vmem:[#allocation5 + $0x750] sm:$0xff]
    %v1582 = vld [vmem:[#allocation5 + $0x758] sm:$0xff]
    %v1583 = vld [vmem:[#allocation5 + $0x760] sm:$0xff]
    %v1584 = vld [vmem:[#allocation5 + $0x768] sm:$0xff]
    %v1585 = vld [vmem:[#allocation5 + $0x770] sm:$0xff]
    %v1586 = vld [vmem:[#allocation5 + $0x778] sm:$0xff]
    %v1587 = vld [vmem:[#allocation5 + $0x780] sm:$0xff]
    %v1588 = vld [vmem:[#allocation5 + $0x788] sm:$0xff]
    %v1589 = vld [vmem:[#allocation5 + $0x790] sm:$0xff]
    %v1590 = vld [vmem:[#allocation5 + $0x798] sm:$0xff]
    %v1591 = vld [vmem:[#allocation5 + $0x7a0] sm:$0xff]
    %v1592 = vld [vmem:[#allocation5 + $0x7a8] sm:$0xff]
    %v1593 = vld [vmem:[#allocation5 + $0x7b0] sm:$0xff]
    %v1594 = vld [vmem:[#allocation5 + $0x7b8] sm:$0xff]
    %v1595 = vld [vmem:[#allocation5 + $0x7c0] sm:$0xff]
    %v1596 = vld [vmem:[#allocation5 + $0x7c8] sm:$0xff]
    %v1597 = vld [vmem:[#allocation5 + $0x7d0] sm:$0xff]
    %v1598 = vld [vmem:[#allocation5 + $0x7d8] sm:$0xff]
    %v1599 = vld [vmem:[#allocation5 + $0x7e0] sm:$0xff]
    %v1600 = vld [vmem:[#allocation5 + $0x7e8] sm:$0xff]
    %v1601 = vld [vmem:[#allocation5 + $0x7f0] sm:$0xff]
    %v1602 = vld [vmem:[#allocation5 + $0x7f8] sm:$0xff]
    %1603 = vmatprep.subr.mxu0 0.0
    %1604 = vmatpush1.msra.mxu0 %v94
    %1605 = vmatprep.subr.mxu0 0.0
    %1606 = vmatpush1.msra.mxu0 %v93
    %1607 = vmatprep.subr.mxu0 0.0
    %1608 = vmatpush1.msra.mxu0 %v92
    %1609 = vmatprep.subr.mxu0 0.0
    %1610 = vmatpush1.msra.mxu0 %v91
    %1611 = vmatprep.subr.mxu0 0.0
    %1612 = vmatpush1.msra.mxu0 %v90
    %1613 = vmatprep.subr.mxu0 0.0
    %1614 = vmatpush1.msra.mxu0 %v89
    %1615 = vmatprep.subr.mxu0 0.0
    %1616 = vmatpush1.msra.mxu0 %v88
    %1617 = vmatprep.subr.mxu0 0.0
    %1618 = vmatpush1.msra.mxu0 %v87
    %1619 = vmatprep.subr.mxu0 0.0
    %1620 = vmatpush1.msra.mxu0 %v86
    %1621 = vmatprep.subr.mxu0 0.0
    %1622 = vmatpush1.msra.mxu0 %v85
    %1623 = vmatprep.subr.mxu0 0.0
    %1624 = vmatpush1.msra.mxu0 %v84
    %1625 = vmatprep.subr.mxu0 0.0
    %1626 = vmatpush1.msra.mxu0 %v83
    %1627 = vmatprep.subr.mxu0 0.0
    %1628 = vmatpush1.msra.mxu0 %v82
    %1629 = vmatprep.subr.mxu0 0.0
    %1630 = vmatpush1.msra.mxu0 %v81
    %1631 = vmatprep.subr.mxu0 0.0
    %1632 = vmatpush1.msra.mxu0 %v80
    %1633 = vmatprep.subr.mxu0 0.0
    %1634 = vmatpush1.msra.mxu0 %v79
    %1635 = vmatprep.subr.mxu0 0.0
    %1636 = vmatpush2.msra.mxu0 %v110
    %1637 = vmatprep.subr.mxu0 0.0
    %1638 = vmatpush2.msra.mxu0 %v109
    %1639 = vmatprep.subr.mxu0 0.0
    %1640 = vmatpush2.msra.mxu0 %v108
    %1641 = vmatprep.subr.mxu0 0.0
    %1642 = vmatpush2.msra.mxu0 %v107
    %1643 = vmatprep.subr.mxu0 0.0
    %1644 = vmatpush2.msra.mxu0 %v106
    %1645 = vmatprep.subr.mxu0 0.0
    %1646 = vmatpush2.msra.mxu0 %v105
    %1647 = vmatprep.subr.mxu0 0.0
    %1648 = vmatpush2.msra.mxu0 %v104
    %1649 = vmatprep.subr.mxu0 0.0
    %1650 = vmatpush2.msra.mxu0 %v103
    %1651 = vmatprep.subr.mxu0 0.0
    %1652 = vmatpush2.msra.mxu0 %v102
    %1653 = vmatprep.subr.mxu0 0.0
    %1654 = vmatpush2.msra.mxu0 %v101
    %1655 = vmatprep.subr.mxu0 0.0
    %1656 = vmatpush2.msra.mxu0 %v100
    %1657 = vmatprep.subr.mxu0 0.0
    %1658 = vmatpush2.msra.mxu0 %v99
    %1659 = vmatprep.subr.mxu0 0.0
    %1660 = vmatpush2.msra.mxu0 %v98
    %1661 = vmatprep.subr.mxu0 0.0
    %1662 = vmatpush2.msra.mxu0 %v97
    %1663 = vmatprep.subr.mxu0 0.0
    %1664 = vmatpush2.msra.mxu0 %v96
    %1665 = vmatprep.subr.mxu0 0.0
    %1666 = vmatpush2.msra.mxu0 %v95
    %1667 = vmatprep.mubr.f32.mxu0 %v1348
    %1668 = vmatmul.mubr.f32.gmra.mxu0 %v1347
    %v1669 = vpop.f32.mrf.mxu0
    %v1670 = vadd.f32 %v117, %v1669
    %v1671 = vpop.f32.mrf.mxu0
    %1672 = vmatprep.mubr.f32.mxu0 %v1350
    %1673 = vmatmul.mubr.f32.gmra.mxu0 %v1349
    %v1674 = vpop.f32.mrf.mxu0
    %v1675 = vadd.f32 %v117, %v1674
    %v1676 = vpop.f32.mrf.mxu0
    %1677 = vmatprep.mubr.f32.mxu0 %v1352
    %1678 = vmatmul.mubr.f32.gmra.mxu0 %v1351
    %v1679 = vpop.f32.mrf.mxu0
    %v1680 = vadd.f32 %v117, %v1679
    %v1681 = vpop.f32.mrf.mxu0
    %1682 = vmatprep.mubr.f32.mxu0 %v1354
    %1683 = vmatmul.mubr.f32.gmra.mxu0 %v1353
    %v1684 = vpop.f32.mrf.mxu0
    %v1685 = vadd.f32 %v117, %v1684
    %v1686 = vpop.f32.mrf.mxu0
    %1687 = vmatprep.mubr.f32.mxu0 %v1356
    %1688 = vmatmul.mubr.f32.gmra.mxu0 %v1355
    %v1689 = vpop.f32.mrf.mxu0
    %v1690 = vadd.f32 %v117, %v1689
    %v1691 = vpop.f32.mrf.mxu0
    %1692 = vmatprep.mubr.f32.mxu0 %v1358
    %1693 = vmatmul.mubr.f32.gmra.mxu0 %v1357
    %v1694 = vpop.f32.mrf.mxu0
    %v1695 = vadd.f32 %v117, %v1694
    %v1696 = vpop.f32.mrf.mxu0
    %1697 = vmatprep.mubr.f32.mxu0 %v1360
    %1698 = vmatmul.mubr.f32.gmra.mxu0 %v1359
    %v1699 = vpop.f32.mrf.mxu0
    %v1700 = vadd.f32 %v117, %v1699
    %v1701 = vpop.f32.mrf.mxu0
    %1702 = vmatprep.mubr.f32.mxu0 %v1362
    %1703 = vmatmul.mubr.f32.gmra.mxu0 %v1361
    %v1704 = vpop.f32.mrf.mxu0
    %v1705 = vadd.f32 %v117, %v1704
    %v1706 = vpop.f32.mrf.mxu0
    %1707 = vmatprep.mubr.f32.mxu0 %v1364
    %1708 = vmatmul.mubr.f32.gmra.mxu0 %v1363
    %v1709 = vpop.f32.mrf.mxu0
    %v1710 = vadd.f32 %v117, %v1709
    %v1711 = vpop.f32.mrf.mxu0
    %1712 = vmatprep.mubr.f32.mxu0 %v1366
    %1713 = vmatmul.mubr.f32.gmra.mxu0 %v1365
    %v1714 = vpop.f32.mrf.mxu0
    %v1715 = vadd.f32 %v117, %v1714
    %v1716 = vpop.f32.mrf.mxu0
    %1717 = vmatprep.mubr.f32.mxu0 %v1368
    %1718 = vmatmul.mubr.f32.gmra.mxu0 %v1367
    %v1719 = vpop.f32.mrf.mxu0
    %v1720 = vadd.f32 %v117, %v1719
    %v1721 = vpop.f32.mrf.mxu0
    %1722 = vmatprep.mubr.f32.mxu0 %v1370
    %1723 = vmatmul.mubr.f32.gmra.mxu0 %v1369
    %v1724 = vpop.f32.mrf.mxu0
    %v1725 = vadd.f32 %v117, %v1724
    %v1726 = vpop.f32.mrf.mxu0
    %1727 = vmatprep.mubr.f32.mxu0 %v1372
    %1728 = vmatmul.mubr.f32.gmra.mxu0 %v1371
    %v1729 = vpop.f32.mrf.mxu0
    %v1730 = vadd.f32 %v117, %v1729
    %v1731 = vpop.f32.mrf.mxu0
    %1732 = vmatprep.mubr.f32.mxu0 %v1374
    %1733 = vmatmul.mubr.f32.gmra.mxu0 %v1373
    %v1734 = vpop.f32.mrf.mxu0
    %v1735 = vadd.f32 %v117, %v1734
    %v1736 = vpop.f32.mrf.mxu0
    %1737 = vmatprep.mubr.f32.mxu0 %v1376
    %1738 = vmatmul.mubr.f32.gmra.mxu0 %v1375
    %v1739 = vpop.f32.mrf.mxu0
    %v1740 = vadd.f32 %v117, %v1739
    %v1741 = vpop.f32.mrf.mxu0
    %1742 = vmatprep.mubr.f32.mxu0 %v1378
    %1743 = vmatmul.mubr.f32.gmra.mxu0 %v1377
    %v1744 = vpop.f32.mrf.mxu0
    %v1745 = vadd.f32 %v117, %v1744
    %v1746 = vpop.f32.mrf.mxu0
    %1747 = vmatprep.mubr.f32.mxu0 %v1380
    %1748 = vmatmul.mubr.f32.gmra.mxu0 %v1379
    %v1749 = vpop.f32.mrf.mxu0
    %v1750 = vadd.f32 %v117, %v1749
    %v1751 = vpop.f32.mrf.mxu0
    %1752 = vmatprep.mubr.f32.mxu0 %v1382
    %1753 = vmatmul.mubr.f32.gmra.mxu0 %v1381
    %v1754 = vpop.f32.mrf.mxu0
    %v1755 = vadd.f32 %v117, %v1754
    %v1756 = vpop.f32.mrf.mxu0
    %1757 = vmatprep.mubr.f32.mxu0 %v1384
    %1758 = vmatmul.mubr.f32.gmra.mxu0 %v1383
    %v1759 = vpop.f32.mrf.mxu0
    %v1760 = vadd.f32 %v117, %v1759
    %v1761 = vpop.f32.mrf.mxu0
    %1762 = vmatprep.mubr.f32.mxu0 %v1386
    %1763 = vmatmul.mubr.f32.gmra.mxu0 %v1385
    %v1764 = vpop.f32.mrf.mxu0
    %v1765 = vadd.f32 %v117, %v1764
    %v1766 = vpop.f32.mrf.mxu0
    %1767 = vmatprep.mubr.f32.mxu0 %v1388
    %1768 = vmatmul.mubr.f32.gmra.mxu0 %v1387
    %v1769 = vpop.f32.mrf.mxu0
    %v1770 = vadd.f32 %v117, %v1769
    %v1771 = vpop.f32.mrf.mxu0
    %1772 = vmatprep.mubr.f32.mxu0 %v1390
    %1773 = vmatmul.mubr.f32.gmra.mxu0 %v1389
    %v1774 = vpop.f32.mrf.mxu0
    %v1775 = vadd.f32 %v117, %v1774
    %v1776 = vpop.f32.mrf.mxu0
    %1777 = vmatprep.mubr.f32.mxu0 %v1392
    %1778 = vmatmul.mubr.f32.gmra.mxu0 %v1391
    %v1779 = vpop.f32.mrf.mxu0
    %v1780 = vadd.f32 %v117, %v1779
    %v1781 = vpop.f32.mrf.mxu0
    %1782 = vmatprep.mubr.f32.mxu0 %v1394
    %1783 = vmatmul.mubr.f32.gmra.mxu0 %v1393
    %v1784 = vpop.f32.mrf.mxu0
    %v1785 = vadd.f32 %v117, %v1784
    %v1786 = vpop.f32.mrf.mxu0
    %1787 = vmatprep.mubr.f32.mxu0 %v1396
    %1788 = vmatmul.mubr.f32.gmra.mxu0 %v1395
    %v1789 = vpop.f32.mrf.mxu0
    %v1790 = vadd.f32 %v117, %v1789
    %v1791 = vpop.f32.mrf.mxu0
    %1792 = vmatprep.mubr.f32.mxu0 %v1398
    %1793 = vmatmul.mubr.f32.gmra.mxu0 %v1397
    %v1794 = vpop.f32.mrf.mxu0
    %v1795 = vadd.f32 %v117, %v1794
    %v1796 = vpop.f32.mrf.mxu0
    %1797 = vmatprep.mubr.f32.mxu0 %v1400
    %1798 = vmatmul.mubr.f32.gmra.mxu0 %v1399
    %v1799 = vpop.f32.mrf.mxu0
    %v1800 = vadd.f32 %v117, %v1799
    %v1801 = vpop.f32.mrf.mxu0
    %1802 = vmatprep.mubr.f32.mxu0 %v1402
    %1803 = vmatmul.mubr.f32.gmra.mxu0 %v1401
    %v1804 = vpop.f32.mrf.mxu0
    %v1805 = vadd.f32 %v117, %v1804
    %v1806 = vpop.f32.mrf.mxu0
    %1807 = vmatprep.mubr.f32.mxu0 %v1404
    %1808 = vmatmul.mubr.f32.gmra.mxu0 %v1403
    %v1809 = vpop.f32.mrf.mxu0
    %v1810 = vadd.f32 %v117, %v1809
    %v1811 = vpop.f32.mrf.mxu0
    %1812 = vmatprep.mubr.f32.mxu0 %v1406
    %1813 = vmatmul.mubr.f32.gmra.mxu0 %v1405
    %v1814 = vpop.f32.mrf.mxu0
    %v1815 = vadd.f32 %v117, %v1814
    %v1816 = vpop.f32.mrf.mxu0
    %1817 = vmatprep.mubr.f32.mxu0 %v1408
    %1818 = vmatmul.mubr.f32.gmra.mxu0 %v1407
    %v1819 = vpop.f32.mrf.mxu0
    %v1820 = vadd.f32 %v117, %v1819
    %v1821 = vpop.f32.mrf.mxu0
    %1822 = vmatprep.mubr.f32.mxu0 %v1410
    %1823 = vmatmul.mubr.f32.gmra.mxu0 %v1409
    %v1824 = vpop.f32.mrf.mxu0
    %v1825 = vadd.f32 %v117, %v1824
    %v1826 = vpop.f32.mrf.mxu0
    %1827 = vmatprep.mubr.f32.mxu0 %v1412
    %1828 = vmatmul.mubr.f32.gmra.mxu0 %v1411
    %v1829 = vpop.f32.mrf.mxu0
    %v1830 = vadd.f32 %v117, %v1829
    %v1831 = vpop.f32.mrf.mxu0
    %1832 = vmatprep.mubr.f32.mxu0 %v1414
    %1833 = vmatmul.mubr.f32.gmra.mxu0 %v1413
    %v1834 = vpop.f32.mrf.mxu0
    %v1835 = vadd.f32 %v117, %v1834
    %v1836 = vpop.f32.mrf.mxu0
    %1837 = vmatprep.mubr.f32.mxu0 %v1416
    %1838 = vmatmul.mubr.f32.gmra.mxu0 %v1415
    %v1839 = vpop.f32.mrf.mxu0
    %v1840 = vadd.f32 %v117, %v1839
    %v1841 = vpop.f32.mrf.mxu0
    %1842 = vmatprep.mubr.f32.mxu0 %v1418
    %1843 = vmatmul.mubr.f32.gmra.mxu0 %v1417
    %v1844 = vpop.f32.mrf.mxu0
    %v1845 = vadd.f32 %v117, %v1844
    %v1846 = vpop.f32.mrf.mxu0
    %1847 = vmatprep.mubr.f32.mxu0 %v1420
    %1848 = vmatmul.mubr.f32.gmra.mxu0 %v1419
    %v1849 = vpop.f32.mrf.mxu0
    %v1850 = vadd.f32 %v117, %v1849
    %v1851 = vpop.f32.mrf.mxu0
    %1852 = vmatprep.mubr.f32.mxu0 %v1422
    %1853 = vmatmul.mubr.f32.gmra.mxu0 %v1421
    %v1854 = vpop.f32.mrf.mxu0
    %v1855 = vadd.f32 %v117, %v1854
    %v1856 = vpop.f32.mrf.mxu0
    %1857 = vmatprep.mubr.f32.mxu0 %v1424
    %1858 = vmatmul.mubr.f32.gmra.mxu0 %v1423
    %v1859 = vpop.f32.mrf.mxu0
    %v1860 = vadd.f32 %v117, %v1859
    %v1861 = vpop.f32.mrf.mxu0
    %1862 = vmatprep.mubr.f32.mxu0 %v1426
    %1863 = vmatmul.mubr.f32.gmra.mxu0 %v1425
    %v1864 = vpop.f32.mrf.mxu0
    %v1865 = vadd.f32 %v117, %v1864
    %v1866 = vpop.f32.mrf.mxu0
    %1867 = vmatprep.mubr.f32.mxu0 %v1428
    %1868 = vmatmul.mubr.f32.gmra.mxu0 %v1427
    %v1869 = vpop.f32.mrf.mxu0
    %v1870 = vadd.f32 %v117, %v1869
    %v1871 = vpop.f32.mrf.mxu0
    %1872 = vmatprep.mubr.f32.mxu0 %v1430
    %1873 = vmatmul.mubr.f32.gmra.mxu0 %v1429
    %v1874 = vpop.f32.mrf.mxu0
    %v1875 = vadd.f32 %v117, %v1874
    %v1876 = vpop.f32.mrf.mxu0
    %1877 = vmatprep.mubr.f32.mxu0 %v1432
    %1878 = vmatmul.mubr.f32.gmra.mxu0 %v1431
    %v1879 = vpop.f32.mrf.mxu0
    %v1880 = vadd.f32 %v117, %v1879
    %v1881 = vpop.f32.mrf.mxu0
    %1882 = vmatprep.mubr.f32.mxu0 %v1434
    %1883 = vmatmul.mubr.f32.gmra.mxu0 %v1433
    %v1884 = vpop.f32.mrf.mxu0
    %v1885 = vadd.f32 %v117, %v1884
    %v1886 = vpop.f32.mrf.mxu0
    %1887 = vmatprep.mubr.f32.mxu0 %v1436
    %1888 = vmatmul.mubr.f32.gmra.mxu0 %v1435
    %v1889 = vpop.f32.mrf.mxu0
    %v1890 = vadd.f32 %v117, %v1889
    %v1891 = vpop.f32.mrf.mxu0
    %1892 = vmatprep.mubr.f32.mxu0 %v1438
    %1893 = vmatmul.mubr.f32.gmra.mxu0 %v1437
    %v1894 = vpop.f32.mrf.mxu0
    %v1895 = vadd.f32 %v117, %v1894
    %v1896 = vpop.f32.mrf.mxu0
    %1897 = vmatprep.mubr.f32.mxu0 %v1440
    %1898 = vmatmul.mubr.f32.gmra.mxu0 %v1439
    %v1899 = vpop.f32.mrf.mxu0
    %v1900 = vadd.f32 %v117, %v1899
    %v1901 = vpop.f32.mrf.mxu0
    %1902 = vmatprep.mubr.f32.mxu0 %v1442
    %1903 = vmatmul.mubr.f32.gmra.mxu0 %v1441
    %v1904 = vpop.f32.mrf.mxu0
    %v1905 = vadd.f32 %v117, %v1904
    %v1906 = vpop.f32.mrf.mxu0
    %1907 = vmatprep.mubr.f32.mxu0 %v1444
    %1908 = vmatmul.mubr.f32.gmra.mxu0 %v1443
    %v1909 = vpop.f32.mrf.mxu0
    %v1910 = vadd.f32 %v117, %v1909
    %v1911 = vpop.f32.mrf.mxu0
    %1912 = vmatprep.mubr.f32.mxu0 %v1446
    %1913 = vmatmul.mubr.f32.gmra.mxu0 %v1445
    %v1914 = vpop.f32.mrf.mxu0
    %v1915 = vadd.f32 %v117, %v1914
    %v1916 = vpop.f32.mrf.mxu0
    %1917 = vmatprep.mubr.f32.mxu0 %v1448
    %1918 = vmatmul.mubr.f32.gmra.mxu0 %v1447
    %v1919 = vpop.f32.mrf.mxu0
    %v1920 = vadd.f32 %v117, %v1919
    %v1921 = vpop.f32.mrf.mxu0
    %1922 = vmatprep.mubr.f32.mxu0 %v1450
    %1923 = vmatmul.mubr.f32.gmra.mxu0 %v1449
    %v1924 = vpop.f32.mrf.mxu0
    %v1925 = vadd.f32 %v117, %v1924
    %v1926 = vpop.f32.mrf.mxu0
    %1927 = vmatprep.mubr.f32.mxu0 %v1452
    %1928 = vmatmul.mubr.f32.gmra.mxu0 %v1451
    %v1929 = vpop.f32.mrf.mxu0
    %v1930 = vadd.f32 %v117, %v1929
    %v1931 = vpop.f32.mrf.mxu0
    %1932 = vmatprep.mubr.f32.mxu0 %v1454
    %1933 = vmatmul.mubr.f32.gmra.mxu0 %v1453
    %v1934 = vpop.f32.mrf.mxu0
    %v1935 = vadd.f32 %v117, %v1934
    %v1936 = vpop.f32.mrf.mxu0
    %1937 = vmatprep.mubr.f32.mxu0 %v1456
    %1938 = vmatmul.mubr.f32.gmra.mxu0 %v1455
    %v1939 = vpop.f32.mrf.mxu0
    %v1940 = vadd.f32 %v117, %v1939
    %v1941 = vpop.f32.mrf.mxu0
    %1942 = vmatprep.mubr.f32.mxu0 %v1458
    %1943 = vmatmul.mubr.f32.gmra.mxu0 %v1457
    %v1944 = vpop.f32.mrf.mxu0
    %v1945 = vadd.f32 %v117, %v1944
    %v1946 = vpop.f32.mrf.mxu0
    %1947 = vmatprep.mubr.f32.mxu0 %v1460
    %1948 = vmatmul.mubr.f32.gmra.mxu0 %v1459
    %v1949 = vpop.f32.mrf.mxu0
    %v1950 = vadd.f32 %v117, %v1949
    %v1951 = vpop.f32.mrf.mxu0
    %1952 = vmatprep.mubr.f32.mxu0 %v1462
    %1953 = vmatmul.mubr.f32.gmra.mxu0 %v1461
    %v1954 = vpop.f32.mrf.mxu0
    %v1955 = vadd.f32 %v117, %v1954
    %v1956 = vpop.f32.mrf.mxu0
    %1957 = vmatprep.mubr.f32.mxu0 %v1464
    %1958 = vmatmul.mubr.f32.gmra.mxu0 %v1463
    %v1959 = vpop.f32.mrf.mxu0
    %v1960 = vadd.f32 %v117, %v1959
    %v1961 = vpop.f32.mrf.mxu0
    %1962 = vmatprep.mubr.f32.mxu0 %v1466
    %1963 = vmatmul.mubr.f32.gmra.mxu0 %v1465
    %v1964 = vpop.f32.mrf.mxu0
    %v1965 = vadd.f32 %v117, %v1964
    %v1966 = vpop.f32.mrf.mxu0
    %1967 = vmatprep.mubr.f32.mxu0 %v1468
    %1968 = vmatmul.mubr.f32.gmra.mxu0 %v1467
    %v1969 = vpop.f32.mrf.mxu0
    %v1970 = vadd.f32 %v117, %v1969
    %v1971 = vpop.f32.mrf.mxu0
    %1972 = vmatprep.mubr.f32.mxu0 %v1470
    %1973 = vmatmul.mubr.f32.gmra.mxu0 %v1469
    %v1974 = vpop.f32.mrf.mxu0
    %v1975 = vadd.f32 %v117, %v1974
    %v1976 = vpop.f32.mrf.mxu0
    %1977 = vmatprep.mubr.f32.mxu0 %v1472
    %1978 = vmatmul.mubr.f32.gmra.mxu0 %v1471
    %v1979 = vpop.f32.mrf.mxu0
    %v1980 = vadd.f32 %v117, %v1979
    %v1981 = vpop.f32.mrf.mxu0
    %1982 = vmatprep.mubr.f32.mxu0 %v1474
    %1983 = vmatmul.mubr.f32.gmra.mxu0 %v1473
    %v1984 = vpop.f32.mrf.mxu0
    %v1985 = vadd.f32 %v117, %v1984
    %v1986 = vpop.f32.mrf.mxu0
    %1987 = vmatprep.mubr.f32.mxu0 %v1476
    %1988 = vmatmul.mubr.f32.gmra.mxu0 %v1475
    %v1989 = vpop.f32.mrf.mxu0
    %v1990 = vadd.f32 %v117, %v1989
    %v1991 = vpop.f32.mrf.mxu0
    %1992 = vmatprep.mubr.f32.mxu0 %v1478
    %1993 = vmatmul.mubr.f32.gmra.mxu0 %v1477
    %v1994 = vpop.f32.mrf.mxu0
    %v1995 = vadd.f32 %v117, %v1994
    %v1996 = vpop.f32.mrf.mxu0
    %1997 = vmatprep.mubr.f32.mxu0 %v1480
    %1998 = vmatmul.mubr.f32.gmra.mxu0 %v1479
    %v1999 = vpop.f32.mrf.mxu0
    %v2000 = vadd.f32 %v117, %v1999
    %v2001 = vpop.f32.mrf.mxu0
    %2002 = vmatprep.mubr.f32.mxu0 %v1482
    %2003 = vmatmul.mubr.f32.gmra.mxu0 %v1481
    %v2004 = vpop.f32.mrf.mxu0
    %v2005 = vadd.f32 %v117, %v2004
    %v2006 = vpop.f32.mrf.mxu0
    %2007 = vmatprep.mubr.f32.mxu0 %v1484
    %2008 = vmatmul.mubr.f32.gmra.mxu0 %v1483
    %v2009 = vpop.f32.mrf.mxu0
    %v2010 = vadd.f32 %v117, %v2009
    %v2011 = vpop.f32.mrf.mxu0
    %2012 = vmatprep.mubr.f32.mxu0 %v1486
    %2013 = vmatmul.mubr.f32.gmra.mxu0 %v1485
    %v2014 = vpop.f32.mrf.mxu0
    %v2015 = vadd.f32 %v117, %v2014
    %v2016 = vpop.f32.mrf.mxu0
    %2017 = vmatprep.mubr.f32.mxu0 %v1488
    %2018 = vmatmul.mubr.f32.gmra.mxu0 %v1487
    %v2019 = vpop.f32.mrf.mxu0
    %v2020 = vadd.f32 %v117, %v2019
    %v2021 = vpop.f32.mrf.mxu0
    %2022 = vmatprep.mubr.f32.mxu0 %v1490
    %2023 = vmatmul.mubr.f32.gmra.mxu0 %v1489
    %v2024 = vpop.f32.mrf.mxu0
    %v2025 = vadd.f32 %v117, %v2024
    %v2026 = vpop.f32.mrf.mxu0
    %2027 = vmatprep.mubr.f32.mxu0 %v1492
    %2028 = vmatmul.mubr.f32.gmra.mxu0 %v1491
    %v2029 = vpop.f32.mrf.mxu0
    %v2030 = vadd.f32 %v117, %v2029
    %v2031 = vpop.f32.mrf.mxu0
    %2032 = vmatprep.mubr.f32.mxu0 %v1494
    %2033 = vmatmul.mubr.f32.gmra.mxu0 %v1493
    %v2034 = vpop.f32.mrf.mxu0
    %v2035 = vadd.f32 %v117, %v2034
    %v2036 = vpop.f32.mrf.mxu0
    %2037 = vmatprep.mubr.f32.mxu0 %v1496
    %2038 = vmatmul.mubr.f32.gmra.mxu0 %v1495
    %v2039 = vpop.f32.mrf.mxu0
    %v2040 = vadd.f32 %v117, %v2039
    %v2041 = vpop.f32.mrf.mxu0
    %2042 = vmatprep.mubr.f32.mxu0 %v1498
    %2043 = vmatmul.mubr.f32.gmra.mxu0 %v1497
    %v2044 = vpop.f32.mrf.mxu0
    %v2045 = vadd.f32 %v117, %v2044
    %v2046 = vpop.f32.mrf.mxu0
    %2047 = vmatprep.mubr.f32.mxu0 %v1500
    %2048 = vmatmul.mubr.f32.gmra.mxu0 %v1499
    %v2049 = vpop.f32.mrf.mxu0
    %v2050 = vadd.f32 %v117, %v2049
    %v2051 = vpop.f32.mrf.mxu0
    %2052 = vmatprep.mubr.f32.mxu0 %v1502
    %2053 = vmatmul.mubr.f32.gmra.mxu0 %v1501
    %v2054 = vpop.f32.mrf.mxu0
    %v2055 = vadd.f32 %v117, %v2054
    %v2056 = vpop.f32.mrf.mxu0
    %2057 = vmatprep.mubr.f32.mxu0 %v1504
    %2058 = vmatmul.mubr.f32.gmra.mxu0 %v1503
    %v2059 = vpop.f32.mrf.mxu0
    %v2060 = vadd.f32 %v117, %v2059
    %v2061 = vpop.f32.mrf.mxu0
    %2062 = vmatprep.mubr.f32.mxu0 %v1506
    %2063 = vmatmul.mubr.f32.gmra.mxu0 %v1505
    %v2064 = vpop.f32.mrf.mxu0
    %v2065 = vadd.f32 %v117, %v2064
    %v2066 = vpop.f32.mrf.mxu0
    %2067 = vmatprep.mubr.f32.mxu0 %v1508
    %2068 = vmatmul.mubr.f32.gmra.mxu0 %v1507
    %v2069 = vpop.f32.mrf.mxu0
    %v2070 = vadd.f32 %v117, %v2069
    %v2071 = vpop.f32.mrf.mxu0
    %2072 = vmatprep.mubr.f32.mxu0 %v1510
    %2073 = vmatmul.mubr.f32.gmra.mxu0 %v1509
    %v2074 = vpop.f32.mrf.mxu0
    %v2075 = vadd.f32 %v117, %v2074
    %v2076 = vpop.f32.mrf.mxu0
    %2077 = vmatprep.mubr.f32.mxu0 %v1512
    %2078 = vmatmul.mubr.f32.gmra.mxu0 %v1511
    %v2079 = vpop.f32.mrf.mxu0
    %v2080 = vadd.f32 %v117, %v2079
    %v2081 = vpop.f32.mrf.mxu0
    %2082 = vmatprep.mubr.f32.mxu0 %v1514
    %2083 = vmatmul.mubr.f32.gmra.mxu0 %v1513
    %v2084 = vpop.f32.mrf.mxu0
    %v2085 = vadd.f32 %v117, %v2084
    %v2086 = vpop.f32.mrf.mxu0
    %2087 = vmatprep.mubr.f32.mxu0 %v1516
    %2088 = vmatmul.mubr.f32.gmra.mxu0 %v1515
    %v2089 = vpop.f32.mrf.mxu0
    %v2090 = vadd.f32 %v117, %v2089
    %v2091 = vpop.f32.mrf.mxu0
    %2092 = vmatprep.mubr.f32.mxu0 %v1518
    %2093 = vmatmul.mubr.f32.gmra.mxu0 %v1517
    %v2094 = vpop.f32.mrf.mxu0
    %v2095 = vadd.f32 %v117, %v2094
    %v2096 = vpop.f32.mrf.mxu0
    %2097 = vmatprep.mubr.f32.mxu0 %v1520
    %2098 = vmatmul.mubr.f32.gmra.mxu0 %v1519
    %v2099 = vpop.f32.mrf.mxu0
    %v2100 = vadd.f32 %v117, %v2099
    %v2101 = vpop.f32.mrf.mxu0
    %2102 = vmatprep.mubr.f32.mxu0 %v1522
    %2103 = vmatmul.mubr.f32.gmra.mxu0 %v1521
    %v2104 = vpop.f32.mrf.mxu0
    %v2105 = vadd.f32 %v117, %v2104
    %v2106 = vpop.f32.mrf.mxu0
    %2107 = vmatprep.mubr.f32.mxu0 %v1524
    %2108 = vmatmul.mubr.f32.gmra.mxu0 %v1523
    %v2109 = vpop.f32.mrf.mxu0
    %v2110 = vadd.f32 %v117, %v2109
    %v2111 = vpop.f32.mrf.mxu0
    %2112 = vmatprep.mubr.f32.mxu0 %v1526
    %2113 = vmatmul.mubr.f32.gmra.mxu0 %v1525
    %v2114 = vpop.f32.mrf.mxu0
    %v2115 = vadd.f32 %v117, %v2114
    %v2116 = vpop.f32.mrf.mxu0
    %2117 = vmatprep.mubr.f32.mxu0 %v1528
    %2118 = vmatmul.mubr.f32.gmra.mxu0 %v1527
    %v2119 = vpop.f32.mrf.mxu0
    %v2120 = vadd.f32 %v117, %v2119
    %v2121 = vpop.f32.mrf.mxu0
    %2122 = vmatprep.mubr.f32.mxu0 %v1530
    %2123 = vmatmul.mubr.f32.gmra.mxu0 %v1529
    %v2124 = vpop.f32.mrf.mxu0
    %v2125 = vadd.f32 %v117, %v2124
    %v2126 = vpop.f32.mrf.mxu0
    %2127 = vmatprep.mubr.f32.mxu0 %v1532
    %2128 = vmatmul.mubr.f32.gmra.mxu0 %v1531
    %v2129 = vpop.f32.mrf.mxu0
    %v2130 = vadd.f32 %v117, %v2129
    %v2131 = vpop.f32.mrf.mxu0
    %2132 = vmatprep.mubr.f32.mxu0 %v1534
    %2133 = vmatmul.mubr.f32.gmra.mxu0 %v1533
    %v2134 = vpop.f32.mrf.mxu0
    %v2135 = vadd.f32 %v117, %v2134
    %v2136 = vpop.f32.mrf.mxu0
    %2137 = vmatprep.mubr.f32.mxu0 %v1536
    %2138 = vmatmul.mubr.f32.gmra.mxu0 %v1535
    %v2139 = vpop.f32.mrf.mxu0
    %v2140 = vadd.f32 %v117, %v2139
    %v2141 = vpop.f32.mrf.mxu0
    %2142 = vmatprep.mubr.f32.mxu0 %v1538
    %2143 = vmatmul.mubr.f32.gmra.mxu0 %v1537
    %v2144 = vpop.f32.mrf.mxu0
    %v2145 = vadd.f32 %v117, %v2144
    %v2146 = vpop.f32.mrf.mxu0
    %2147 = vmatprep.mubr.f32.mxu0 %v1540
    %2148 = vmatmul.mubr.f32.gmra.mxu0 %v1539
    %v2149 = vpop.f32.mrf.mxu0
    %v2150 = vadd.f32 %v117, %v2149
    %v2151 = vpop.f32.mrf.mxu0
    %2152 = vmatprep.mubr.f32.mxu0 %v1542
    %2153 = vmatmul.mubr.f32.gmra.mxu0 %v1541
    %v2154 = vpop.f32.mrf.mxu0
    %v2155 = vadd.f32 %v117, %v2154
    %v2156 = vpop.f32.mrf.mxu0
    %2157 = vmatprep.mubr.f32.mxu0 %v1544
    %2158 = vmatmul.mubr.f32.gmra.mxu0 %v1543
    %v2159 = vpop.f32.mrf.mxu0
    %v2160 = vadd.f32 %v117, %v2159
    %v2161 = vpop.f32.mrf.mxu0
    %2162 = vmatprep.mubr.f32.mxu0 %v1546
    %2163 = vmatmul.mubr.f32.gmra.mxu0 %v1545
    %v2164 = vpop.f32.mrf.mxu0
    %v2165 = vadd.f32 %v117, %v2164
    %v2166 = vpop.f32.mrf.mxu0
    %2167 = vmatprep.mubr.f32.mxu0 %v1548
    %2168 = vmatmul.mubr.f32.gmra.mxu0 %v1547
    %v2169 = vpop.f32.mrf.mxu0
    %v2170 = vadd.f32 %v117, %v2169
    %v2171 = vpop.f32.mrf.mxu0
    %2172 = vmatprep.mubr.f32.mxu0 %v1550
    %2173 = vmatmul.mubr.f32.gmra.mxu0 %v1549
    %v2174 = vpop.f32.mrf.mxu0
    %v2175 = vadd.f32 %v117, %v2174
    %v2176 = vpop.f32.mrf.mxu0
    %2177 = vmatprep.mubr.f32.mxu0 %v1552
    %2178 = vmatmul.mubr.f32.gmra.mxu0 %v1551
    %v2179 = vpop.f32.mrf.mxu0
    %v2180 = vadd.f32 %v117, %v2179
    %v2181 = vpop.f32.mrf.mxu0
    %2182 = vmatprep.mubr.f32.mxu0 %v1554
    %2183 = vmatmul.mubr.f32.gmra.mxu0 %v1553
    %v2184 = vpop.f32.mrf.mxu0
    %v2185 = vadd.f32 %v117, %v2184
    %v2186 = vpop.f32.mrf.mxu0
    %2187 = vmatprep.mubr.f32.mxu0 %v1556
    %2188 = vmatmul.mubr.f32.gmra.mxu0 %v1555
    %v2189 = vpop.f32.mrf.mxu0
    %v2190 = vadd.f32 %v117, %v2189
    %v2191 = vpop.f32.mrf.mxu0
    %2192 = vmatprep.mubr.f32.mxu0 %v1558
    %2193 = vmatmul.mubr.f32.gmra.mxu0 %v1557
    %v2194 = vpop.f32.mrf.mxu0
    %v2195 = vadd.f32 %v117, %v2194
    %v2196 = vpop.f32.mrf.mxu0
    %2197 = vmatprep.mubr.f32.mxu0 %v1560
    %2198 = vmatmul.mubr.f32.gmra.mxu0 %v1559
    %v2199 = vpop.f32.mrf.mxu0
    %v2200 = vadd.f32 %v117, %v2199
    %v2201 = vpop.f32.mrf.mxu0
    %2202 = vmatprep.mubr.f32.mxu0 %v1562
    %2203 = vmatmul.mubr.f32.gmra.mxu0 %v1561
    %v2204 = vpop.f32.mrf.mxu0
    %v2205 = vadd.f32 %v117, %v2204
    %v2206 = vpop.f32.mrf.mxu0
    %2207 = vmatprep.mubr.f32.mxu0 %v1564
    %2208 = vmatmul.mubr.f32.gmra.mxu0 %v1563
    %v2209 = vpop.f32.mrf.mxu0
    %v2210 = vadd.f32 %v117, %v2209
    %v2211 = vpop.f32.mrf.mxu0
    %2212 = vmatprep.mubr.f32.mxu0 %v1566
    %2213 = vmatmul.mubr.f32.gmra.mxu0 %v1565
    %v2214 = vpop.f32.mrf.mxu0
    %v2215 = vadd.f32 %v117, %v2214
    %v2216 = vpop.f32.mrf.mxu0
    %2217 = vmatprep.mubr.f32.mxu0 %v1568
    %2218 = vmatmul.mubr.f32.gmra.mxu0 %v1567
    %v2219 = vpop.f32.mrf.mxu0
    %v2220 = vadd.f32 %v117, %v2219
    %v2221 = vpop.f32.mrf.mxu0
    %2222 = vmatprep.mubr.f32.mxu0 %v1570
    %2223 = vmatmul.mubr.f32.gmra.mxu0 %v1569
    %v2224 = vpop.f32.mrf.mxu0
    %v2225 = vadd.f32 %v117, %v2224
    %v2226 = vpop.f32.mrf.mxu0
    %2227 = vmatprep.mubr.f32.mxu0 %v1572
    %2228 = vmatmul.mubr.f32.gmra.mxu0 %v1571
    %v2229 = vpop.f32.mrf.mxu0
    %v2230 = vadd.f32 %v117, %v2229
    %v2231 = vpop.f32.mrf.mxu0
    %2232 = vmatprep.mubr.f32.mxu0 %v1574
    %2233 = vmatmul.mubr.f32.gmra.mxu0 %v1573
    %v2234 = vpop.f32.mrf.mxu0
    %v2235 = vadd.f32 %v117, %v2234
    %v2236 = vpop.f32.mrf.mxu0
    %2237 = vmatprep.mubr.f32.mxu0 %v1576
    %2238 = vmatmul.mubr.f32.gmra.mxu0 %v1575
    %v2239 = vpop.f32.mrf.mxu0
    %v2240 = vadd.f32 %v117, %v2239
    %v2241 = vpop.f32.mrf.mxu0
    %2242 = vmatprep.mubr.f32.mxu0 %v1578
    %2243 = vmatmul.mubr.f32.gmra.mxu0 %v1577
    %v2244 = vpop.f32.mrf.mxu0
    %v2245 = vadd.f32 %v117, %v2244
    %v2246 = vpop.f32.mrf.mxu0
    %2247 = vmatprep.mubr.f32.mxu0 %v1580
    %2248 = vmatmul.mubr.f32.gmra.mxu0 %v1579
    %v2249 = vpop.f32.mrf.mxu0
    %v2250 = vadd.f32 %v117, %v2249
    %v2251 = vpop.f32.mrf.mxu0
    %2252 = vmatprep.mubr.f32.mxu0 %v1582
    %2253 = vmatmul.mubr.f32.gmra.mxu0 %v1581
    %v2254 = vpop.f32.mrf.mxu0
    %v2255 = vadd.f32 %v117, %v2254
    %v2256 = vpop.f32.mrf.mxu0
    %2257 = vmatprep.mubr.f32.mxu0 %v1584
    %2258 = vmatmul.mubr.f32.gmra.mxu0 %v1583
    %v2259 = vpop.f32.mrf.mxu0
    %v2260 = vadd.f32 %v117, %v2259
    %v2261 = vpop.f32.mrf.mxu0
    %2262 = vmatprep.mubr.f32.mxu0 %v1586
    %2263 = vmatmul.mubr.f32.gmra.mxu0 %v1585
    %v2264 = vpop.f32.mrf.mxu0
    %v2265 = vadd.f32 %v117, %v2264
    %v2266 = vpop.f32.mrf.mxu0
    %2267 = vmatprep.mubr.f32.mxu0 %v1588
    %2268 = vmatmul.mubr.f32.gmra.mxu0 %v1587
    %v2269 = vpop.f32.mrf.mxu0
    %v2270 = vadd.f32 %v117, %v2269
    %v2271 = vpop.f32.mrf.mxu0
    %2272 = vmatprep.mubr.f32.mxu0 %v1590
    %2273 = vmatmul.mubr.f32.gmra.mxu0 %v1589
    %v2274 = vpop.f32.mrf.mxu0
    %v2275 = vadd.f32 %v117, %v2274
    %v2276 = vpop.f32.mrf.mxu0
    %2277 = vmatprep.mubr.f32.mxu0 %v1592
    %2278 = vmatmul.mubr.f32.gmra.mxu0 %v1591
    %v2279 = vpop.f32.mrf.mxu0
    %v2280 = vadd.f32 %v117, %v2279
    %v2281 = vpop.f32.mrf.mxu0
    %2282 = vmatprep.mubr.f32.mxu0 %v1594
    %2283 = vmatmul.mubr.f32.gmra.mxu0 %v1593
    %v2284 = vpop.f32.mrf.mxu0
    %v2285 = vadd.f32 %v117, %v2284
    %v2286 = vpop.f32.mrf.mxu0
    %2287 = vmatprep.mubr.f32.mxu0 %v1596
    %2288 = vmatmul.mubr.f32.gmra.mxu0 %v1595
    %v2289 = vpop.f32.mrf.mxu0
    %v2290 = vadd.f32 %v117, %v2289
    %v2291 = vpop.f32.mrf.mxu0
    %2292 = vmatprep.mubr.f32.mxu0 %v1598
    %2293 = vmatmul.mubr.f32.gmra.mxu0 %v1597
    %v2294 = vpop.f32.mrf.mxu0
    %v2295 = vadd.f32 %v117, %v2294
    %v2296 = vpop.f32.mrf.mxu0
    %2297 = vmatprep.mubr.f32.mxu0 %v1600
    %2298 = vmatmul.mubr.f32.gmra.mxu0 %v1599
    %v2299 = vpop.f32.mrf.mxu0
    %v2300 = vadd.f32 %v117, %v2299
    %v2301 = vpop.f32.mrf.mxu0
    %2302 = vmatprep.mubr.f32.mxu0 %v1602
    %2303 = vmatmul.mubr.f32.gmra.mxu0 %v1601
    %v2304 = vpop.f32.mrf.mxu0
    %v2305 = vadd.f32 %v117, %v2304
    %v2306 = vpop.f32.mrf.mxu0
    %2307 = vdwg.mxu0
    %v2308 = vtanh.pop %v1670
    %v2309 = vtanh.pop %v1675
    %v2310 = vtanh.pop %v1680
    %v2311 = vtanh.pop %v1685
    %v2312 = vtanh.pop %v1690
    %v2313 = vtanh.pop %v1695
    %v2314 = vtanh.pop %v1700
    %v2315 = vtanh.pop %v1705
    %v2316 = vtanh.pop %v1710
    %v2317 = vtanh.pop %v1715
    %v2318 = vtanh.pop %v1720
    %v2319 = vtanh.pop %v1725
    %v2320 = vtanh.pop %v1730
    %v2321 = vtanh.pop %v1735
    %v2322 = vtanh.pop %v1740
    %v2323 = vtanh.pop %v1745
    %v2324 = vtanh.pop %v1750
    %v2325 = vtanh.pop %v1755
    %v2326 = vtanh.pop %v1760
    %v2327 = vtanh.pop %v1765
    %v2328 = vtanh.pop %v1770
    %v2329 = vtanh.pop %v1775
    %v2330 = vtanh.pop %v1780
    %v2331 = vtanh.pop %v1785
    %v2332 = vtanh.pop %v1790
    %v2333 = vtanh.pop %v1795
    %v2334 = vtanh.pop %v1800
    %v2335 = vtanh.pop %v1805
    %v2336 = vtanh.pop %v1810
    %v2337 = vtanh.pop %v1815
    %v2338 = vtanh.pop %v1820
    %v2339 = vtanh.pop %v1825
    %v2340 = vtanh.pop %v1830
    %v2341 = vtanh.pop %v1835
    %v2342 = vtanh.pop %v1840
    %v2343 = vtanh.pop %v1845
    %v2344 = vtanh.pop %v1850
    %v2345 = vtanh.pop %v1855
    %v2346 = vtanh.pop %v1860
    %v2347 = vtanh.pop %v1865
    %v2348 = vtanh.pop %v1870
    %v2349 = vtanh.pop %v1875
    %v2350 = vtanh.pop %v1880
    %v2351 = vtanh.pop %v1885
    %v2352 = vtanh.pop %v1890
    %v2353 = vtanh.pop %v1895
    %v2354 = vtanh.pop %v1900
    %v2355 = vtanh.pop %v1905
    %v2356 = vtanh.pop %v1910
    %v2357 = vtanh.pop %v1915
    %v2358 = vtanh.pop %v1920
    %v2359 = vtanh.pop %v1925
    %v2360 = vtanh.pop %v1930
    %v2361 = vtanh.pop %v1935
    %v2362 = vtanh.pop %v1940
    %v2363 = vtanh.pop %v1945
    %v2364 = vtanh.pop %v1950
    %v2365 = vtanh.pop %v1955
    %v2366 = vtanh.pop %v1960
    %v2367 = vtanh.pop %v1965
    %v2368 = vtanh.pop %v1970
    %v2369 = vtanh.pop %v1975
    %v2370 = vtanh.pop %v1980
    %v2371 = vtanh.pop %v1985
    %v2372 = vtanh.pop %v1990
    %v2373 = vtanh.pop %v1995
    %v2374 = vtanh.pop %v2000
    %v2375 = vtanh.pop %v2005
    %v2376 = vtanh.pop %v2010
    %v2377 = vtanh.pop %v2015
    %v2378 = vtanh.pop %v2020
    %v2379 = vtanh.pop %v2025
    %v2380 = vtanh.pop %v2030
    %v2381 = vtanh.pop %v2035
    %v2382 = vtanh.pop %v2040
    %v2383 = vtanh.pop %v2045
    %v2384 = vtanh.pop %v2050
    %v2385 = vtanh.pop %v2055
    %v2386 = vtanh.pop %v2060
    %v2387 = vtanh.pop %v2065
    %v2388 = vtanh.pop %v2070
    %v2389 = vtanh.pop %v2075
    %v2390 = vtanh.pop %v2080
    %v2391 = vtanh.pop %v2085
    %v2392 = vtanh.pop %v2090
    %v2393 = vtanh.pop %v2095
    %v2394 = vtanh.pop %v2100
    %v2395 = vtanh.pop %v2105
    %v2396 = vtanh.pop %v2110
    %v2397 = vtanh.pop %v2115
    %v2398 = vtanh.pop %v2120
    %v2399 = vtanh.pop %v2125
    %v2400 = vtanh.pop %v2130
    %v2401 = vtanh.pop %v2135
    %v2402 = vtanh.pop %v2140
    %v2403 = vtanh.pop %v2145
    %v2404 = vtanh.pop %v2150
    %v2405 = vtanh.pop %v2155
    %v2406 = vtanh.pop %v2160
    %v2407 = vtanh.pop %v2165
    %v2408 = vtanh.pop %v2170
    %v2409 = vtanh.pop %v2175
    %v2410 = vtanh.pop %v2180
    %v2411 = vtanh.pop %v2185
    %v2412 = vtanh.pop %v2190
    %v2413 = vtanh.pop %v2195
    %v2414 = vtanh.pop %v2200
    %v2415 = vtanh.pop %v2205
    %v2416 = vtanh.pop %v2210
    %v2417 = vtanh.pop %v2215
    %v2418 = vtanh.pop %v2220
    %v2419 = vtanh.pop %v2225
    %v2420 = vtanh.pop %v2230
    %v2421 = vtanh.pop %v2235
    %v2422 = vtanh.pop %v2240
    %v2423 = vtanh.pop %v2245
    %v2424 = vtanh.pop %v2250
    %v2425 = vtanh.pop %v2255
    %v2426 = vtanh.pop %v2260
    %v2427 = vtanh.pop %v2265
    %v2428 = vtanh.pop %v2270
    %v2429 = vtanh.pop %v2275
    %v2430 = vtanh.pop %v2280
    %v2431 = vtanh.pop %v2285
    %v2432 = vtanh.pop %v2290
    %v2433 = vtanh.pop %v2295
    %v2434 = vtanh.pop %v2300
    %v2435 = vtanh.pop %v2305
    %v2436 = vadd.f32 %v2308, %v2309
    %v2437 = vadd.f32 %v2436, %v2310
    %v2438 = vadd.f32 %v2437, %v2311
    %v2439 = vadd.f32 %v2438, %v2312
    %v2440 = vadd.f32 %v2439, %v2313
    %v2441 = vadd.f32 %v2440, %v2314
    %v2442 = vadd.f32 %v2441, %v2315
    %v2443 = vadd.f32 %v2442, %v2316
    %v2444 = vadd.f32 %v2443, %v2317
    %v2445 = vadd.f32 %v2444, %v2318
    %v2446 = vadd.f32 %v2445, %v2319
    %v2447 = vadd.f32 %v2446, %v2320
    %v2448 = vadd.f32 %v2447, %v2321
    %v2449 = vadd.f32 %v2448, %v2322
    %v2450 = vadd.f32 %v2449, %v2323
    %v2451 = vadd.f32 %v2450, %v2324
    %v2452 = vadd.f32 %v2451, %v2325
    %v2453 = vadd.f32 %v2452, %v2326
    %v2454 = vadd.f32 %v2453, %v2327
    %v2455 = vadd.f32 %v2454, %v2328
    %v2456 = vadd.f32 %v2455, %v2329
    %v2457 = vadd.f32 %v2456, %v2330
    %v2458 = vadd.f32 %v2457, %v2331
    %v2459 = vadd.f32 %v2458, %v2332
    %v2460 = vadd.f32 %v2459, %v2333
    %v2461 = vadd.f32 %v2460, %v2334
    %v2462 = vadd.f32 %v2461, %v2335
    %v2463 = vadd.f32 %v2462, %v2336
    %v2464 = vadd.f32 %v2463, %v2337
    %v2465 = vadd.f32 %v2464, %v2338
    %v2466 = vadd.f32 %v2465, %v2339
    %v2467 = vadd.f32 %v2466, %v2340
    %v2468 = vadd.f32 %v2467, %v2341
    %v2469 = vadd.f32 %v2468, %v2342
    %v2470 = vadd.f32 %v2469, %v2343
    %v2471 = vadd.f32 %v2470, %v2344
    %v2472 = vadd.f32 %v2471, %v2345
    %v2473 = vadd.f32 %v2472, %v2346
    %v2474 = vadd.f32 %v2473, %v2347
    %v2475 = vadd.f32 %v2474, %v2348
    %v2476 = vadd.f32 %v2475, %v2349
    %v2477 = vadd.f32 %v2476, %v2350
    %v2478 = vadd.f32 %v2477, %v2351
    %v2479 = vadd.f32 %v2478, %v2352
    %v2480 = vadd.f32 %v2479, %v2353
    %v2481 = vadd.f32 %v2480, %v2354
    %v2482 = vadd.f32 %v2481, %v2355
    %v2483 = vadd.f32 %v2482, %v2356
    %v2484 = vadd.f32 %v2483, %v2357
    %v2485 = vadd.f32 %v2484, %v2358
    %v2486 = vadd.f32 %v2485, %v2359
    %v2487 = vadd.f32 %v2486, %v2360
    %v2488 = vadd.f32 %v2487, %v2361
    %v2489 = vadd.f32 %v2488, %v2362
    %v2490 = vadd.f32 %v2489, %v2363
    %v2491 = vadd.f32 %v2490, %v2364
    %v2492 = vadd.f32 %v2491, %v2365
    %v2493 = vadd.f32 %v2492, %v2366
    %v2494 = vadd.f32 %v2493, %v2367
    %v2495 = vadd.f32 %v2494, %v2368
    %v2496 = vadd.f32 %v2495, %v2369
    %v2497 = vadd.f32 %v2496, %v2370
    %v2498 = vadd.f32 %v2497, %v2371
    %v2499 = vadd.f32 %v2498, %v2372
    %v2500 = vadd.f32 %v2499, %v2373
    %v2501 = vadd.f32 %v2500, %v2374
    %v2502 = vadd.f32 %v2501, %v2375
    %v2503 = vadd.f32 %v2502, %v2376
    %v2504 = vadd.f32 %v2503, %v2377
    %v2505 = vadd.f32 %v2504, %v2378
    %v2506 = vadd.f32 %v2505, %v2379
    %v2507 = vadd.f32 %v2506, %v2380
    %v2508 = vadd.f32 %v2507, %v2381
    %v2509 = vadd.f32 %v2508, %v2382
    %v2510 = vadd.f32 %v2509, %v2383
    %v2511 = vadd.f32 %v2510, %v2384
    %v2512 = vadd.f32 %v2511, %v2385
    %v2513 = vadd.f32 %v2512, %v2386
    %v2514 = vadd.f32 %v2513, %v2387
    %v2515 = vadd.f32 %v2514, %v2388
    %v2516 = vadd.f32 %v2515, %v2389
    %v2517 = vadd.f32 %v2516, %v2390
    %v2518 = vadd.f32 %v2517, %v2391
    %v2519 = vadd.f32 %v2518, %v2392
    %v2520 = vadd.f32 %v2519, %v2393
    %v2521 = vadd.f32 %v2520, %v2394
    %v2522 = vadd.f32 %v2521, %v2395
    %v2523 = vadd.f32 %v2522, %v2396
    %v2524 = vadd.f32 %v2523, %v2397
    %v2525 = vadd.f32 %v2524, %v2398
    %v2526 = vadd.f32 %v2525, %v2399
    %v2527 = vadd.f32 %v2526, %v2400
    %v2528 = vadd.f32 %v2527, %v2401
    %v2529 = vadd.f32 %v2528, %v2402
    %v2530 = vadd.f32 %v2529, %v2403
    %v2531 = vadd.f32 %v2530, %v2404
    %v2532 = vadd.f32 %v2531, %v2405
    %v2533 = vadd.f32 %v2532, %v2406
    %v2534 = vadd.f32 %v2533, %v2407
    %v2535 = vadd.f32 %v2534, %v2408
    %v2536 = vadd.f32 %v2535, %v2409
    %v2537 = vadd.f32 %v2536, %v2410
    %v2538 = vadd.f32 %v2537, %v2411
    %v2539 = vadd.f32 %v2538, %v2412
    %v2540 = vadd.f32 %v2539, %v2413
    %v2541 = vadd.f32 %v2540, %v2414
    %v2542 = vadd.f32 %v2541, %v2415
    %v2543 = vadd.f32 %v2542, %v2416
    %v2544 = vadd.f32 %v2543, %v2417
    %v2545 = vadd.f32 %v2544, %v2418
    %v2546 = vadd.f32 %v2545, %v2419
    %v2547 = vadd.f32 %v2546, %v2420
    %v2548 = vadd.f32 %v2547, %v2421
    %v2549 = vadd.f32 %v2548, %v2422
    %v2550 = vadd.f32 %v2549, %v2423
    %v2551 = vadd.f32 %v2550, %v2424
    %v2552 = vadd.f32 %v2551, %v2425
    %v2553 = vadd.f32 %v2552, %v2426
    %v2554 = vadd.f32 %v2553, %v2427
    %v2555 = vadd.f32 %v2554, %v2428
    %v2556 = vadd.f32 %v2555, %v2429
    %v2557 = vadd.f32 %v2556, %v2430
    %v2558 = vadd.f32 %v2557, %v2431
    %v2559 = vadd.f32 %v2558, %v2432
    %v2560 = vadd.f32 %v2559, %v2433
    %v2561 = vadd.f32 %v2560, %v2434
    %v2562 = vadd.f32 %v2561, %v2435
    %v2563 = vrot.slane %v2562, 4
    %v2564 = vadd.f32 %v2562, %v2563
    %v2565 = vrot.slane %v2564, 2
    %v2566 = vadd.f32 %v2564, %v2565
    %v2567 = vrot.slane %v2566, 1
    %v2568 = vadd.f32 %v2566, %v2567
    %v2569 = vmul.f32 %v2568, 0.0009765625
    %v2570 = vmul.f32 %v2569, %v111
    %v2571 = vsel %vm1343, %v2570, 0.0
    %2572 = vadd.xlane.f32.xlu0 %v2571
    %v2573 = vpop.xlane.xlu0 %2572
    %v2574 = vld [vmem:[#allocation7] sm:$0xff]
    %v2575 = vld [vmem:[#allocation7 + $0x8] sm:$0xff]
    %v2576 = vld [vmem:[#allocation7 + $0x10] sm:$0xff]
    %v2577 = vld [vmem:[#allocation7 + $0x18] sm:$0xff]
    %v2578 = vld [vmem:[#allocation7 + $0x20] sm:$0xff]
    %v2579 = vld [vmem:[#allocation7 + $0x28] sm:$0xff]
    %v2580 = vld [vmem:[#allocation7 + $0x30] sm:$0xff]
    %v2581 = vld [vmem:[#allocation7 + $0x38] sm:$0xff]
    %v2582 = vld [vmem:[#allocation7 + $0x40] sm:$0xff]
    %v2583 = vld [vmem:[#allocation7 + $0x48] sm:$0xff]
    %v2584 = vld [vmem:[#allocation7 + $0x50] sm:$0xff]
    %v2585 = vld [vmem:[#allocation7 + $0x58] sm:$0xff]
    %v2586 = vld [vmem:[#allocation7 + $0x60] sm:$0xff]
    %v2587 = vld [vmem:[#allocation7 + $0x68] sm:$0xff]
    %v2588 = vld [vmem:[#allocation7 + $0x70] sm:$0xff]
    %v2589 = vld [vmem:[#allocation7 + $0x78] sm:$0xff]
    %v2590 = vld [vmem:[#allocation7 + $0x80] sm:$0xff]
    %v2591 = vld [vmem:[#allocation7 + $0x88] sm:$0xff]
    %v2592 = vld [vmem:[#allocation7 + $0x90] sm:$0xff]
    %v2593 = vld [vmem:[#allocation7 + $0x98] sm:$0xff]
    %v2594 = vld [vmem:[#allocation7 + $0xa0] sm:$0xff]
    %v2595 = vld [vmem:[#allocation7 + $0xa8] sm:$0xff]
    %v2596 = vld [vmem:[#allocation7 + $0xb0] sm:$0xff]
    %v2597 = vld [vmem:[#allocation7 + $0xb8] sm:$0xff]
    %v2598 = vld [vmem:[#allocation7 + $0xc0] sm:$0xff]
    %v2599 = vld [vmem:[#allocation7 + $0xc8] sm:$0xff]
    %v2600 = vld [vmem:[#allocation7 + $0xd0] sm:$0xff]
    %v2601 = vld [vmem:[#allocation7 + $0xd8] sm:$0xff]
    %v2602 = vld [vmem:[#allocation7 + $0xe0] sm:$0xff]
    %v2603 = vld [vmem:[#allocation7 + $0xe8] sm:$0xff]
    %v2604 = vld [vmem:[#allocation7 + $0xf0] sm:$0xff]
    %v2605 = vld [vmem:[#allocation7 + $0xf8] sm:$0xff]
    %v2606 = vld [vmem:[#allocation7 + $0x100] sm:$0xff]
    %v2607 = vld [vmem:[#allocation7 + $0x108] sm:$0xff]
    %v2608 = vld [vmem:[#allocation7 + $0x110] sm:$0xff]
    %v2609 = vld [vmem:[#allocation7 + $0x118] sm:$0xff]
    %v2610 = vld [vmem:[#allocation7 + $0x120] sm:$0xff]
    %v2611 = vld [vmem:[#allocation7 + $0x128] sm:$0xff]
    %v2612 = vld [vmem:[#allocation7 + $0x130] sm:$0xff]
    %v2613 = vld [vmem:[#allocation7 + $0x138] sm:$0xff]
    %v2614 = vld [vmem:[#allocation7 + $0x140] sm:$0xff]
    %v2615 = vld [vmem:[#allocation7 + $0x148] sm:$0xff]
    %v2616 = vld [vmem:[#allocation7 + $0x150] sm:$0xff]
    %v2617 = vld [vmem:[#allocation7 + $0x158] sm:$0xff]
    %v2618 = vld [vmem:[#allocation7 + $0x160] sm:$0xff]
    %v2619 = vld [vmem:[#allocation7 + $0x168] sm:$0xff]
    %v2620 = vld [vmem:[#allocation7 + $0x170] sm:$0xff]
    %v2621 = vld [vmem:[#allocation7 + $0x178] sm:$0xff]
    %v2622 = vld [vmem:[#allocation7 + $0x180] sm:$0xff]
    %v2623 = vld [vmem:[#allocation7 + $0x188] sm:$0xff]
    %v2624 = vld [vmem:[#allocation7 + $0x190] sm:$0xff]
    %v2625 = vld [vmem:[#allocation7 + $0x198] sm:$0xff]
    %v2626 = vld [vmem:[#allocation7 + $0x1a0] sm:$0xff]
    %v2627 = vld [vmem:[#allocation7 + $0x1a8] sm:$0xff]
    %v2628 = vld [vmem:[#allocation7 + $0x1b0] sm:$0xff]
    %v2629 = vld [vmem:[#allocation7 + $0x1b8] sm:$0xff]
    %v2630 = vld [vmem:[#allocation7 + $0x1c0] sm:$0xff]
    %v2631 = vld [vmem:[#allocation7 + $0x1c8] sm:$0xff]
    %v2632 = vld [vmem:[#allocation7 + $0x1d0] sm:$0xff]
    %v2633 = vld [vmem:[#allocation7 + $0x1d8] sm:$0xff]
    %v2634 = vld [vmem:[#allocation7 + $0x1e0] sm:$0xff]
    %v2635 = vld [vmem:[#allocation7 + $0x1e8] sm:$0xff]
    %v2636 = vld [vmem:[#allocation7 + $0x1f0] sm:$0xff]
    %v2637 = vld [vmem:[#allocation7 + $0x1f8] sm:$0xff]
    %v2638 = vld [vmem:[#allocation7 + $0x200] sm:$0xff]
    %v2639 = vld [vmem:[#allocation7 + $0x208] sm:$0xff]
    %v2640 = vld [vmem:[#allocation7 + $0x210] sm:$0xff]
    %v2641 = vld [vmem:[#allocation7 + $0x218] sm:$0xff]
    %v2642 = vld [vmem:[#allocation7 + $0x220] sm:$0xff]
    %v2643 = vld [vmem:[#allocation7 + $0x228] sm:$0xff]
    %v2644 = vld [vmem:[#allocation7 + $0x230] sm:$0xff]
    %v2645 = vld [vmem:[#allocation7 + $0x238] sm:$0xff]
    %v2646 = vld [vmem:[#allocation7 + $0x240] sm:$0xff]
    %v2647 = vld [vmem:[#allocation7 + $0x248] sm:$0xff]
    %v2648 = vld [vmem:[#allocation7 + $0x250] sm:$0xff]
    %v2649 = vld [vmem:[#allocation7 + $0x258] sm:$0xff]
    %v2650 = vld [vmem:[#allocation7 + $0x260] sm:$0xff]
    %v2651 = vld [vmem:[#allocation7 + $0x268] sm:$0xff]
    %v2652 = vld [vmem:[#allocation7 + $0x270] sm:$0xff]
    %v2653 = vld [vmem:[#allocation7 + $0x278] sm:$0xff]
    %v2654 = vld [vmem:[#allocation7 + $0x280] sm:$0xff]
    %v2655 = vld [vmem:[#allocation7 + $0x288] sm:$0xff]
    %v2656 = vld [vmem:[#allocation7 + $0x290] sm:$0xff]
    %v2657 = vld [vmem:[#allocation7 + $0x298] sm:$0xff]
    %v2658 = vld [vmem:[#allocation7 + $0x2a0] sm:$0xff]
    %v2659 = vld [vmem:[#allocation7 + $0x2a8] sm:$0xff]
    %v2660 = vld [vmem:[#allocation7 + $0x2b0] sm:$0xff]
    %v2661 = vld [vmem:[#allocation7 + $0x2b8] sm:$0xff]
    %v2662 = vld [vmem:[#allocation7 + $0x2c0] sm:$0xff]
    %v2663 = vld [vmem:[#allocation7 + $0x2c8] sm:$0xff]
    %v2664 = vld [vmem:[#allocation7 + $0x2d0] sm:$0xff]
    %v2665 = vld [vmem:[#allocation7 + $0x2d8] sm:$0xff]
    %v2666 = vld [vmem:[#allocation7 + $0x2e0] sm:$0xff]
    %v2667 = vld [vmem:[#allocation7 + $0x2e8] sm:$0xff]
    %v2668 = vld [vmem:[#allocation7 + $0x2f0] sm:$0xff]
    %v2669 = vld [vmem:[#allocation7 + $0x2f8] sm:$0xff]
    %v2670 = vld [vmem:[#allocation7 + $0x300] sm:$0xff]
    %v2671 = vld [vmem:[#allocation7 + $0x308] sm:$0xff]
    %v2672 = vld [vmem:[#allocation7 + $0x310] sm:$0xff]
    %v2673 = vld [vmem:[#allocation7 + $0x318] sm:$0xff]
    %v2674 = vld [vmem:[#allocation7 + $0x320] sm:$0xff]
    %v2675 = vld [vmem:[#allocation7 + $0x328] sm:$0xff]
    %v2676 = vld [vmem:[#allocation7 + $0x330] sm:$0xff]
    %v2677 = vld [vmem:[#allocation7 + $0x338] sm:$0xff]
    %v2678 = vld [vmem:[#allocation7 + $0x340] sm:$0xff]
    %v2679 = vld [vmem:[#allocation7 + $0x348] sm:$0xff]
    %v2680 = vld [vmem:[#allocation7 + $0x350] sm:$0xff]
    %v2681 = vld [vmem:[#allocation7 + $0x358] sm:$0xff]
    %v2682 = vld [vmem:[#allocation7 + $0x360] sm:$0xff]
    %v2683 = vld [vmem:[#allocation7 + $0x368] sm:$0xff]
    %v2684 = vld [vmem:[#allocation7 + $0x370] sm:$0xff]
    %v2685 = vld [vmem:[#allocation7 + $0x378] sm:$0xff]
    %v2686 = vld [vmem:[#allocation7 + $0x380] sm:$0xff]
    %v2687 = vld [vmem:[#allocation7 + $0x388] sm:$0xff]
    %v2688 = vld [vmem:[#allocation7 + $0x390] sm:$0xff]
    %v2689 = vld [vmem:[#allocation7 + $0x398] sm:$0xff]
    %v2690 = vld [vmem:[#allocation7 + $0x3a0] sm:$0xff]
    %v2691 = vld [vmem:[#allocation7 + $0x3a8] sm:$0xff]
    %v2692 = vld [vmem:[#allocation7 + $0x3b0] sm:$0xff]
    %v2693 = vld [vmem:[#allocation7 + $0x3b8] sm:$0xff]
    %v2694 = vld [vmem:[#allocation7 + $0x3c0] sm:$0xff]
    %v2695 = vld [vmem:[#allocation7 + $0x3c8] sm:$0xff]
    %v2696 = vld [vmem:[#allocation7 + $0x3d0] sm:$0xff]
    %v2697 = vld [vmem:[#allocation7 + $0x3d8] sm:$0xff]
    %v2698 = vld [vmem:[#allocation7 + $0x3e0] sm:$0xff]
    %v2699 = vld [vmem:[#allocation7 + $0x3e8] sm:$0xff]
    %v2700 = vld [vmem:[#allocation7 + $0x3f0] sm:$0xff]
    %v2701 = vld [vmem:[#allocation7 + $0x3f8] sm:$0xff]
    %v2702 = vld [vmem:[#allocation7 + $0x400] sm:$0xff]
    %v2703 = vld [vmem:[#allocation7 + $0x408] sm:$0xff]
    %v2704 = vld [vmem:[#allocation7 + $0x410] sm:$0xff]
    %v2705 = vld [vmem:[#allocation7 + $0x418] sm:$0xff]
    %v2706 = vld [vmem:[#allocation7 + $0x420] sm:$0xff]
    %v2707 = vld [vmem:[#allocation7 + $0x428] sm:$0xff]
    %v2708 = vld [vmem:[#allocation7 + $0x430] sm:$0xff]
    %v2709 = vld [vmem:[#allocation7 + $0x438] sm:$0xff]
    %v2710 = vld [vmem:[#allocation7 + $0x440] sm:$0xff]
    %v2711 = vld [vmem:[#allocation7 + $0x448] sm:$0xff]
    %v2712 = vld [vmem:[#allocation7 + $0x450] sm:$0xff]
    %v2713 = vld [vmem:[#allocation7 + $0x458] sm:$0xff]
    %v2714 = vld [vmem:[#allocation7 + $0x460] sm:$0xff]
    %v2715 = vld [vmem:[#allocation7 + $0x468] sm:$0xff]
    %v2716 = vld [vmem:[#allocation7 + $0x470] sm:$0xff]
    %v2717 = vld [vmem:[#allocation7 + $0x478] sm:$0xff]
    %v2718 = vld [vmem:[#allocation7 + $0x480] sm:$0xff]
    %v2719 = vld [vmem:[#allocation7 + $0x488] sm:$0xff]
    %v2720 = vld [vmem:[#allocation7 + $0x490] sm:$0xff]
    %v2721 = vld [vmem:[#allocation7 + $0x498] sm:$0xff]
    %v2722 = vld [vmem:[#allocation7 + $0x4a0] sm:$0xff]
    %v2723 = vld [vmem:[#allocation7 + $0x4a8] sm:$0xff]
    %v2724 = vld [vmem:[#allocation7 + $0x4b0] sm:$0xff]
    %v2725 = vld [vmem:[#allocation7 + $0x4b8] sm:$0xff]
    %v2726 = vld [vmem:[#allocation7 + $0x4c0] sm:$0xff]
    %v2727 = vld [vmem:[#allocation7 + $0x4c8] sm:$0xff]
    %v2728 = vld [vmem:[#allocation7 + $0x4d0] sm:$0xff]
    %v2729 = vld [vmem:[#allocation7 + $0x4d8] sm:$0xff]
    %v2730 = vld [vmem:[#allocation7 + $0x4e0] sm:$0xff]
    %v2731 = vld [vmem:[#allocation7 + $0x4e8] sm:$0xff]
    %v2732 = vld [vmem:[#allocation7 + $0x4f0] sm:$0xff]
    %v2733 = vld [vmem:[#allocation7 + $0x4f8] sm:$0xff]
    %v2734 = vld [vmem:[#allocation7 + $0x500] sm:$0xff]
    %v2735 = vld [vmem:[#allocation7 + $0x508] sm:$0xff]
    %v2736 = vld [vmem:[#allocation7 + $0x510] sm:$0xff]
    %v2737 = vld [vmem:[#allocation7 + $0x518] sm:$0xff]
    %v2738 = vld [vmem:[#allocation7 + $0x520] sm:$0xff]
    %v2739 = vld [vmem:[#allocation7 + $0x528] sm:$0xff]
    %v2740 = vld [vmem:[#allocation7 + $0x530] sm:$0xff]
    %v2741 = vld [vmem:[#allocation7 + $0x538] sm:$0xff]
    %v2742 = vld [vmem:[#allocation7 + $0x540] sm:$0xff]
    %v2743 = vld [vmem:[#allocation7 + $0x548] sm:$0xff]
    %v2744 = vld [vmem:[#allocation7 + $0x550] sm:$0xff]
    %v2745 = vld [vmem:[#allocation7 + $0x558] sm:$0xff]
    %v2746 = vld [vmem:[#allocation7 + $0x560] sm:$0xff]
    %v2747 = vld [vmem:[#allocation7 + $0x568] sm:$0xff]
    %v2748 = vld [vmem:[#allocation7 + $0x570] sm:$0xff]
    %v2749 = vld [vmem:[#allocation7 + $0x578] sm:$0xff]
    %v2750 = vld [vmem:[#allocation7 + $0x580] sm:$0xff]
    %v2751 = vld [vmem:[#allocation7 + $0x588] sm:$0xff]
    %v2752 = vld [vmem:[#allocation7 + $0x590] sm:$0xff]
    %v2753 = vld [vmem:[#allocation7 + $0x598] sm:$0xff]
    %v2754 = vld [vmem:[#allocation7 + $0x5a0] sm:$0xff]
    %v2755 = vld [vmem:[#allocation7 + $0x5a8] sm:$0xff]
    %v2756 = vld [vmem:[#allocation7 + $0x5b0] sm:$0xff]
    %v2757 = vld [vmem:[#allocation7 + $0x5b8] sm:$0xff]
    %v2758 = vld [vmem:[#allocation7 + $0x5c0] sm:$0xff]
    %v2759 = vld [vmem:[#allocation7 + $0x5c8] sm:$0xff]
    %v2760 = vld [vmem:[#allocation7 + $0x5d0] sm:$0xff]
    %v2761 = vld [vmem:[#allocation7 + $0x5d8] sm:$0xff]
    %v2762 = vld [vmem:[#allocation7 + $0x5e0] sm:$0xff]
    %v2763 = vld [vmem:[#allocation7 + $0x5e8] sm:$0xff]
    %v2764 = vld [vmem:[#allocation7 + $0x5f0] sm:$0xff]
    %v2765 = vld [vmem:[#allocation7 + $0x5f8] sm:$0xff]
    %v2766 = vld [vmem:[#allocation7 + $0x600] sm:$0xff]
    %v2767 = vld [vmem:[#allocation7 + $0x608] sm:$0xff]
    %v2768 = vld [vmem:[#allocation7 + $0x610] sm:$0xff]
    %v2769 = vld [vmem:[#allocation7 + $0x618] sm:$0xff]
    %v2770 = vld [vmem:[#allocation7 + $0x620] sm:$0xff]
    %v2771 = vld [vmem:[#allocation7 + $0x628] sm:$0xff]
    %v2772 = vld [vmem:[#allocation7 + $0x630] sm:$0xff]
    %v2773 = vld [vmem:[#allocation7 + $0x638] sm:$0xff]
    %v2774 = vld [vmem:[#allocation7 + $0x640] sm:$0xff]
    %v2775 = vld [vmem:[#allocation7 + $0x648] sm:$0xff]
    %v2776 = vld [vmem:[#allocation7 + $0x650] sm:$0xff]
    %v2777 = vld [vmem:[#allocation7 + $0x658] sm:$0xff]
    %v2778 = vld [vmem:[#allocation7 + $0x660] sm:$0xff]
    %v2779 = vld [vmem:[#allocation7 + $0x668] sm:$0xff]
    %v2780 = vld [vmem:[#allocation7 + $0x670] sm:$0xff]
    %v2781 = vld [vmem:[#allocation7 + $0x678] sm:$0xff]
    %v2782 = vld [vmem:[#allocation7 + $0x680] sm:$0xff]
    %v2783 = vld [vmem:[#allocation7 + $0x688] sm:$0xff]
    %v2784 = vld [vmem:[#allocation7 + $0x690] sm:$0xff]
    %v2785 = vld [vmem:[#allocation7 + $0x698] sm:$0xff]
    %v2786 = vld [vmem:[#allocation7 + $0x6a0] sm:$0xff]
    %v2787 = vld [vmem:[#allocation7 + $0x6a8] sm:$0xff]
    %v2788 = vld [vmem:[#allocation7 + $0x6b0] sm:$0xff]
    %v2789 = vld [vmem:[#allocation7 + $0x6b8] sm:$0xff]
    %v2790 = vld [vmem:[#allocation7 + $0x6c0] sm:$0xff]
    %v2791 = vld [vmem:[#allocation7 + $0x6c8] sm:$0xff]
    %v2792 = vld [vmem:[#allocation7 + $0x6d0] sm:$0xff]
    %v2793 = vld [vmem:[#allocation7 + $0x6d8] sm:$0xff]
    %v2794 = vld [vmem:[#allocation7 + $0x6e0] sm:$0xff]
    %v2795 = vld [vmem:[#allocation7 + $0x6e8] sm:$0xff]
    %v2796 = vld [vmem:[#allocation7 + $0x6f0] sm:$0xff]
    %v2797 = vld [vmem:[#allocation7 + $0x6f8] sm:$0xff]
    %v2798 = vld [vmem:[#allocation7 + $0x700] sm:$0xff]
    %v2799 = vld [vmem:[#allocation7 + $0x708] sm:$0xff]
    %v2800 = vld [vmem:[#allocation7 + $0x710] sm:$0xff]
    %v2801 = vld [vmem:[#allocation7 + $0x718] sm:$0xff]
    %v2802 = vld [vmem:[#allocation7 + $0x720] sm:$0xff]
    %v2803 = vld [vmem:[#allocation7 + $0x728] sm:$0xff]
    %v2804 = vld [vmem:[#allocation7 + $0x730] sm:$0xff]
    %v2805 = vld [vmem:[#allocation7 + $0x738] sm:$0xff]
    %v2806 = vld [vmem:[#allocation7 + $0x740] sm:$0xff]
    %v2807 = vld [vmem:[#allocation7 + $0x748] sm:$0xff]
    %v2808 = vld [vmem:[#allocation7 + $0x750] sm:$0xff]
    %v2809 = vld [vmem:[#allocation7 + $0x758] sm:$0xff]
    %v2810 = vld [vmem:[#allocation7 + $0x760] sm:$0xff]
    %v2811 = vld [vmem:[#allocation7 + $0x768] sm:$0xff]
    %v2812 = vld [vmem:[#allocation7 + $0x770] sm:$0xff]
    %v2813 = vld [vmem:[#allocation7 + $0x778] sm:$0xff]
    %v2814 = vld [vmem:[#allocation7 + $0x780] sm:$0xff]
    %v2815 = vld [vmem:[#allocation7 + $0x788] sm:$0xff]
    %v2816 = vld [vmem:[#allocation7 + $0x790] sm:$0xff]
    %v2817 = vld [vmem:[#allocation7 + $0x798] sm:$0xff]
    %v2818 = vld [vmem:[#allocation7 + $0x7a0] sm:$0xff]
    %v2819 = vld [vmem:[#allocation7 + $0x7a8] sm:$0xff]
    %v2820 = vld [vmem:[#allocation7 + $0x7b0] sm:$0xff]
    %v2821 = vld [vmem:[#allocation7 + $0x7b8] sm:$0xff]
    %v2822 = vld [vmem:[#allocation7 + $0x7c0] sm:$0xff]
    %v2823 = vld [vmem:[#allocation7 + $0x7c8] sm:$0xff]
    %v2824 = vld [vmem:[#allocation7 + $0x7d0] sm:$0xff]
    %v2825 = vld [vmem:[#allocation7 + $0x7d8] sm:$0xff]
    %v2826 = vld [vmem:[#allocation7 + $0x7e0] sm:$0xff]
    %v2827 = vld [vmem:[#allocation7 + $0x7e8] sm:$0xff]
    %v2828 = vld [vmem:[#allocation7 + $0x7f0] sm:$0xff]
    %v2829 = vld [vmem:[#allocation7 + $0x7f8] sm:$0xff]
    %2830 = vmatprep.subr.mxu0 0.0
    %2831 = vmatpush1.msra.mxu0 %v94
    %2832 = vmatprep.subr.mxu0 0.0
    %2833 = vmatpush1.msra.mxu0 %v93
    %2834 = vmatprep.subr.mxu0 0.0
    %2835 = vmatpush1.msra.mxu0 %v92
    %2836 = vmatprep.subr.mxu0 0.0
    %2837 = vmatpush1.msra.mxu0 %v91
    %2838 = vmatprep.subr.mxu0 0.0
    %2839 = vmatpush1.msra.mxu0 %v90
    %2840 = vmatprep.subr.mxu0 0.0
    %2841 = vmatpush1.msra.mxu0 %v89
    %2842 = vmatprep.subr.mxu0 0.0
    %2843 = vmatpush1.msra.mxu0 %v88
    %2844 = vmatprep.subr.mxu0 0.0
    %2845 = vmatpush1.msra.mxu0 %v87
    %2846 = vmatprep.subr.mxu0 0.0
    %2847 = vmatpush1.msra.mxu0 %v86
    %2848 = vmatprep.subr.mxu0 0.0
    %2849 = vmatpush1.msra.mxu0 %v85
    %2850 = vmatprep.subr.mxu0 0.0
    %2851 = vmatpush1.msra.mxu0 %v84
    %2852 = vmatprep.subr.mxu0 0.0
    %2853 = vmatpush1.msra.mxu0 %v83
    %2854 = vmatprep.subr.mxu0 0.0
    %2855 = vmatpush1.msra.mxu0 %v82
    %2856 = vmatprep.subr.mxu0 0.0
    %2857 = vmatpush1.msra.mxu0 %v81
    %2858 = vmatprep.subr.mxu0 0.0
    %2859 = vmatpush1.msra.mxu0 %v80
    %2860 = vmatprep.subr.mxu0 0.0
    %2861 = vmatpush1.msra.mxu0 %v79
    %2862 = vmatprep.subr.mxu0 0.0
    %2863 = vmatpush2.msra.mxu0 %v110
    %2864 = vmatprep.subr.mxu0 0.0
    %2865 = vmatpush2.msra.mxu0 %v109
    %2866 = vmatprep.subr.mxu0 0.0
    %2867 = vmatpush2.msra.mxu0 %v108
    %2868 = vmatprep.subr.mxu0 0.0
    %2869 = vmatpush2.msra.mxu0 %v107
    %2870 = vmatprep.subr.mxu0 0.0
    %2871 = vmatpush2.msra.mxu0 %v106
    %2872 = vmatprep.subr.mxu0 0.0
    %2873 = vmatpush2.msra.mxu0 %v105
    %2874 = vmatprep.subr.mxu0 0.0
    %2875 = vmatpush2.msra.mxu0 %v104
    %2876 = vmatprep.subr.mxu0 0.0
    %2877 = vmatpush2.msra.mxu0 %v103
    %2878 = vmatprep.subr.mxu0 0.0
    %2879 = vmatpush2.msra.mxu0 %v102
    %2880 = vmatprep.subr.mxu0 0.0
    %2881 = vmatpush2.msra.mxu0 %v101
    %2882 = vmatprep.subr.mxu0 0.0
    %2883 = vmatpush2.msra.mxu0 %v100
    %2884 = vmatprep.subr.mxu0 0.0
    %2885 = vmatpush2.msra.mxu0 %v99
    %2886 = vmatprep.subr.mxu0 0.0
    %2887 = vmatpush2.msra.mxu0 %v98
    %2888 = vmatprep.subr.mxu0 0.0
    %2889 = vmatpush2.msra.mxu0 %v97
    %2890 = vmatprep.subr.mxu0 0.0
    %2891 = vmatpush2.msra.mxu0 %v96
    %2892 = vmatprep.subr.mxu0 0.0
    %2893 = vmatpush2.msra.mxu0 %v95
    %2894 = vmatprep.mubr.f32.mxu0 %v2575
    %2895 = vmatmul.mubr.f32.gmra.mxu0 %v2574
    %v2896 = vpop.f32.mrf.mxu0
    %v2897 = vadd.f32 %v117, %v2896
    %v2898 = vpop.f32.mrf.mxu0
    %2899 = vmatprep.mubr.f32.mxu0 %v2577
    %2900 = vmatmul.mubr.f32.gmra.mxu0 %v2576
    %v2901 = vpop.f32.mrf.mxu0
    %v2902 = vadd.f32 %v117, %v2901
    %v2903 = vpop.f32.mrf.mxu0
    %2904 = vmatprep.mubr.f32.mxu0 %v2579
    %2905 = vmatmul.mubr.f32.gmra.mxu0 %v2578
    %v2906 = vpop.f32.mrf.mxu0
    %v2907 = vadd.f32 %v117, %v2906
    %v2908 = vpop.f32.mrf.mxu0
    %2909 = vmatprep.mubr.f32.mxu0 %v2581
    %2910 = vmatmul.mubr.f32.gmra.mxu0 %v2580
    %v2911 = vpop.f32.mrf.mxu0
    %v2912 = vadd.f32 %v117, %v2911
    %v2913 = vpop.f32.mrf.mxu0
    %2914 = vmatprep.mubr.f32.mxu0 %v2583
    %2915 = vmatmul.mubr.f32.gmra.mxu0 %v2582
    %v2916 = vpop.f32.mrf.mxu0
    %v2917 = vadd.f32 %v117, %v2916
    %v2918 = vpop.f32.mrf.mxu0
    %2919 = vmatprep.mubr.f32.mxu0 %v2585
    %2920 = vmatmul.mubr.f32.gmra.mxu0 %v2584
    %v2921 = vpop.f32.mrf.mxu0
    %v2922 = vadd.f32 %v117, %v2921
    %v2923 = vpop.f32.mrf.mxu0
    %2924 = vmatprep.mubr.f32.mxu0 %v2587
    %2925 = vmatmul.mubr.f32.gmra.mxu0 %v2586
    %v2926 = vpop.f32.mrf.mxu0
    %v2927 = vadd.f32 %v117, %v2926
    %v2928 = vpop.f32.mrf.mxu0
    %2929 = vmatprep.mubr.f32.mxu0 %v2589
    %2930 = vmatmul.mubr.f32.gmra.mxu0 %v2588
    %v2931 = vpop.f32.mrf.mxu0
    %v2932 = vadd.f32 %v117, %v2931
    %v2933 = vpop.f32.mrf.mxu0
    %2934 = vmatprep.mubr.f32.mxu0 %v2591
    %2935 = vmatmul.mubr.f32.gmra.mxu0 %v2590
    %v2936 = vpop.f32.mrf.mxu0
    %v2937 = vadd.f32 %v117, %v2936
    %v2938 = vpop.f32.mrf.mxu0
    %2939 = vmatprep.mubr.f32.mxu0 %v2593
    %2940 = vmatmul.mubr.f32.gmra.mxu0 %v2592
    %v2941 = vpop.f32.mrf.mxu0
    %v2942 = vadd.f32 %v117, %v2941
    %v2943 = vpop.f32.mrf.mxu0
    %2944 = vmatprep.mubr.f32.mxu0 %v2595
    %2945 = vmatmul.mubr.f32.gmra.mxu0 %v2594
    %v2946 = vpop.f32.mrf.mxu0
    %v2947 = vadd.f32 %v117, %v2946
    %v2948 = vpop.f32.mrf.mxu0
    %2949 = vmatprep.mubr.f32.mxu0 %v2597
    %2950 = vmatmul.mubr.f32.gmra.mxu0 %v2596
    %v2951 = vpop.f32.mrf.mxu0
    %v2952 = vadd.f32 %v117, %v2951
    %v2953 = vpop.f32.mrf.mxu0
    %2954 = vmatprep.mubr.f32.mxu0 %v2599
    %2955 = vmatmul.mubr.f32.gmra.mxu0 %v2598
    %v2956 = vpop.f32.mrf.mxu0
    %v2957 = vadd.f32 %v117, %v2956
    %v2958 = vpop.f32.mrf.mxu0
    %2959 = vmatprep.mubr.f32.mxu0 %v2601
    %2960 = vmatmul.mubr.f32.gmra.mxu0 %v2600
    %v2961 = vpop.f32.mrf.mxu0
    %v2962 = vadd.f32 %v117, %v2961
    %v2963 = vpop.f32.mrf.mxu0
    %2964 = vmatprep.mubr.f32.mxu0 %v2603
    %2965 = vmatmul.mubr.f32.gmra.mxu0 %v2602
    %v2966 = vpop.f32.mrf.mxu0
    %v2967 = vadd.f32 %v117, %v2966
    %v2968 = vpop.f32.mrf.mxu0
    %2969 = vmatprep.mubr.f32.mxu0 %v2605
    %2970 = vmatmul.mubr.f32.gmra.mxu0 %v2604
    %v2971 = vpop.f32.mrf.mxu0
    %v2972 = vadd.f32 %v117, %v2971
    %v2973 = vpop.f32.mrf.mxu0
    %2974 = vmatprep.mubr.f32.mxu0 %v2607
    %2975 = vmatmul.mubr.f32.gmra.mxu0 %v2606
    %v2976 = vpop.f32.mrf.mxu0
    %v2977 = vadd.f32 %v117, %v2976
    %v2978 = vpop.f32.mrf.mxu0
    %2979 = vmatprep.mubr.f32.mxu0 %v2609
    %2980 = vmatmul.mubr.f32.gmra.mxu0 %v2608
    %v2981 = vpop.f32.mrf.mxu0
    %v2982 = vadd.f32 %v117, %v2981
    %v2983 = vpop.f32.mrf.mxu0
    %2984 = vmatprep.mubr.f32.mxu0 %v2611
    %2985 = vmatmul.mubr.f32.gmra.mxu0 %v2610
    %v2986 = vpop.f32.mrf.mxu0
    %v2987 = vadd.f32 %v117, %v2986
    %v2988 = vpop.f32.mrf.mxu0
    %2989 = vmatprep.mubr.f32.mxu0 %v2613
    %2990 = vmatmul.mubr.f32.gmra.mxu0 %v2612
    %v2991 = vpop.f32.mrf.mxu0
    %v2992 = vadd.f32 %v117, %v2991
    %v2993 = vpop.f32.mrf.mxu0
    %2994 = vmatprep.mubr.f32.mxu0 %v2615
    %2995 = vmatmul.mubr.f32.gmra.mxu0 %v2614
    %v2996 = vpop.f32.mrf.mxu0
    %v2997 = vadd.f32 %v117, %v2996
    %v2998 = vpop.f32.mrf.mxu0
    %2999 = vmatprep.mubr.f32.mxu0 %v2617
    %3000 = vmatmul.mubr.f32.gmra.mxu0 %v2616
    %v3001 = vpop.f32.mrf.mxu0
    %v3002 = vadd.f32 %v117, %v3001
    %v3003 = vpop.f32.mrf.mxu0
    %3004 = vmatprep.mubr.f32.mxu0 %v2619
    %3005 = vmatmul.mubr.f32.gmra.mxu0 %v2618
    %v3006 = vpop.f32.mrf.mxu0
    %v3007 = vadd.f32 %v117, %v3006
    %v3008 = vpop.f32.mrf.mxu0
    %3009 = vmatprep.mubr.f32.mxu0 %v2621
    %3010 = vmatmul.mubr.f32.gmra.mxu0 %v2620
    %v3011 = vpop.f32.mrf.mxu0
    %v3012 = vadd.f32 %v117, %v3011
    %v3013 = vpop.f32.mrf.mxu0
    %3014 = vmatprep.mubr.f32.mxu0 %v2623
    %3015 = vmatmul.mubr.f32.gmra.mxu0 %v2622
    %v3016 = vpop.f32.mrf.mxu0
    %v3017 = vadd.f32 %v117, %v3016
    %v3018 = vpop.f32.mrf.mxu0
    %3019 = vmatprep.mubr.f32.mxu0 %v2625
    %3020 = vmatmul.mubr.f32.gmra.mxu0 %v2624
    %v3021 = vpop.f32.mrf.mxu0
    %v3022 = vadd.f32 %v117, %v3021
    %v3023 = vpop.f32.mrf.mxu0
    %3024 = vmatprep.mubr.f32.mxu0 %v2627
    %3025 = vmatmul.mubr.f32.gmra.mxu0 %v2626
    %v3026 = vpop.f32.mrf.mxu0
    %v3027 = vadd.f32 %v117, %v3026
    %v3028 = vpop.f32.mrf.mxu0
    %3029 = vmatprep.mubr.f32.mxu0 %v2629
    %3030 = vmatmul.mubr.f32.gmra.mxu0 %v2628
    %v3031 = vpop.f32.mrf.mxu0
    %v3032 = vadd.f32 %v117, %v3031
    %v3033 = vpop.f32.mrf.mxu0
    %3034 = vmatprep.mubr.f32.mxu0 %v2631
    %3035 = vmatmul.mubr.f32.gmra.mxu0 %v2630
    %v3036 = vpop.f32.mrf.mxu0
    %v3037 = vadd.f32 %v117, %v3036
    %v3038 = vpop.f32.mrf.mxu0
    %3039 = vmatprep.mubr.f32.mxu0 %v2633
    %3040 = vmatmul.mubr.f32.gmra.mxu0 %v2632
    %v3041 = vpop.f32.mrf.mxu0
    %v3042 = vadd.f32 %v117, %v3041
    %v3043 = vpop.f32.mrf.mxu0
    %3044 = vmatprep.mubr.f32.mxu0 %v2635
    %3045 = vmatmul.mubr.f32.gmra.mxu0 %v2634
    %v3046 = vpop.f32.mrf.mxu0
    %v3047 = vadd.f32 %v117, %v3046
    %v3048 = vpop.f32.mrf.mxu0
    %3049 = vmatprep.mubr.f32.mxu0 %v2637
    %3050 = vmatmul.mubr.f32.gmra.mxu0 %v2636
    %v3051 = vpop.f32.mrf.mxu0
    %v3052 = vadd.f32 %v117, %v3051
    %v3053 = vpop.f32.mrf.mxu0
    %3054 = vmatprep.mubr.f32.mxu0 %v2639
    %3055 = vmatmul.mubr.f32.gmra.mxu0 %v2638
    %v3056 = vpop.f32.mrf.mxu0
    %v3057 = vadd.f32 %v117, %v3056
    %v3058 = vpop.f32.mrf.mxu0
    %3059 = vmatprep.mubr.f32.mxu0 %v2641
    %3060 = vmatmul.mubr.f32.gmra.mxu0 %v2640
    %v3061 = vpop.f32.mrf.mxu0
    %v3062 = vadd.f32 %v117, %v3061
    %v3063 = vpop.f32.mrf.mxu0
    %3064 = vmatprep.mubr.f32.mxu0 %v2643
    %3065 = vmatmul.mubr.f32.gmra.mxu0 %v2642
    %v3066 = vpop.f32.mrf.mxu0
    %v3067 = vadd.f32 %v117, %v3066
    %v3068 = vpop.f32.mrf.mxu0
    %3069 = vmatprep.mubr.f32.mxu0 %v2645
    %3070 = vmatmul.mubr.f32.gmra.mxu0 %v2644
    %v3071 = vpop.f32.mrf.mxu0
    %v3072 = vadd.f32 %v117, %v3071
    %v3073 = vpop.f32.mrf.mxu0
    %3074 = vmatprep.mubr.f32.mxu0 %v2647
    %3075 = vmatmul.mubr.f32.gmra.mxu0 %v2646
    %v3076 = vpop.f32.mrf.mxu0
    %v3077 = vadd.f32 %v117, %v3076
    %v3078 = vpop.f32.mrf.mxu0
    %3079 = vmatprep.mubr.f32.mxu0 %v2649
    %3080 = vmatmul.mubr.f32.gmra.mxu0 %v2648
    %v3081 = vpop.f32.mrf.mxu0
    %v3082 = vadd.f32 %v117, %v3081
    %v3083 = vpop.f32.mrf.mxu0
    %3084 = vmatprep.mubr.f32.mxu0 %v2651
    %3085 = vmatmul.mubr.f32.gmra.mxu0 %v2650
    %v3086 = vpop.f32.mrf.mxu0
    %v3087 = vadd.f32 %v117, %v3086
    %v3088 = vpop.f32.mrf.mxu0
    %3089 = vmatprep.mubr.f32.mxu0 %v2653
    %3090 = vmatmul.mubr.f32.gmra.mxu0 %v2652
    %v3091 = vpop.f32.mrf.mxu0
    %v3092 = vadd.f32 %v117, %v3091
    %v3093 = vpop.f32.mrf.mxu0
    %3094 = vmatprep.mubr.f32.mxu0 %v2655
    %3095 = vmatmul.mubr.f32.gmra.mxu0 %v2654
    %v3096 = vpop.f32.mrf.mxu0
    %v3097 = vadd.f32 %v117, %v3096
    %v3098 = vpop.f32.mrf.mxu0
    %3099 = vmatprep.mubr.f32.mxu0 %v2657
    %3100 = vmatmul.mubr.f32.gmra.mxu0 %v2656
    %v3101 = vpop.f32.mrf.mxu0
    %v3102 = vadd.f32 %v117, %v3101
    %v3103 = vpop.f32.mrf.mxu0
    %3104 = vmatprep.mubr.f32.mxu0 %v2659
    %3105 = vmatmul.mubr.f32.gmra.mxu0 %v2658
    %v3106 = vpop.f32.mrf.mxu0
    %v3107 = vadd.f32 %v117, %v3106
    %v3108 = vpop.f32.mrf.mxu0
    %3109 = vmatprep.mubr.f32.mxu0 %v2661
    %3110 = vmatmul.mubr.f32.gmra.mxu0 %v2660
    %v3111 = vpop.f32.mrf.mxu0
    %v3112 = vadd.f32 %v117, %v3111
    %v3113 = vpop.f32.mrf.mxu0
    %3114 = vmatprep.mubr.f32.mxu0 %v2663
    %3115 = vmatmul.mubr.f32.gmra.mxu0 %v2662
    %v3116 = vpop.f32.mrf.mxu0
    %v3117 = vadd.f32 %v117, %v3116
    %v3118 = vpop.f32.mrf.mxu0
    %3119 = vmatprep.mubr.f32.mxu0 %v2665
    %3120 = vmatmul.mubr.f32.gmra.mxu0 %v2664
    %v3121 = vpop.f32.mrf.mxu0
    %v3122 = vadd.f32 %v117, %v3121
    %v3123 = vpop.f32.mrf.mxu0
    %3124 = vmatprep.mubr.f32.mxu0 %v2667
    %3125 = vmatmul.mubr.f32.gmra.mxu0 %v2666
    %v3126 = vpop.f32.mrf.mxu0
    %v3127 = vadd.f32 %v117, %v3126
    %v3128 = vpop.f32.mrf.mxu0
    %3129 = vmatprep.mubr.f32.mxu0 %v2669
    %3130 = vmatmul.mubr.f32.gmra.mxu0 %v2668
    %v3131 = vpop.f32.mrf.mxu0
    %v3132 = vadd.f32 %v117, %v3131
    %v3133 = vpop.f32.mrf.mxu0
    %3134 = vmatprep.mubr.f32.mxu0 %v2671
    %3135 = vmatmul.mubr.f32.gmra.mxu0 %v2670
    %v3136 = vpop.f32.mrf.mxu0
    %v3137 = vadd.f32 %v117, %v3136
    %v3138 = vpop.f32.mrf.mxu0
    %3139 = vmatprep.mubr.f32.mxu0 %v2673
    %3140 = vmatmul.mubr.f32.gmra.mxu0 %v2672
    %v3141 = vpop.f32.mrf.mxu0
    %v3142 = vadd.f32 %v117, %v3141
    %v3143 = vpop.f32.mrf.mxu0
    %3144 = vmatprep.mubr.f32.mxu0 %v2675
    %3145 = vmatmul.mubr.f32.gmra.mxu0 %v2674
    %v3146 = vpop.f32.mrf.mxu0
    %v3147 = vadd.f32 %v117, %v3146
    %v3148 = vpop.f32.mrf.mxu0
    %3149 = vmatprep.mubr.f32.mxu0 %v2677
    %3150 = vmatmul.mubr.f32.gmra.mxu0 %v2676
    %v3151 = vpop.f32.mrf.mxu0
    %v3152 = vadd.f32 %v117, %v3151
    %v3153 = vpop.f32.mrf.mxu0
    %3154 = vmatprep.mubr.f32.mxu0 %v2679
    %3155 = vmatmul.mubr.f32.gmra.mxu0 %v2678
    %v3156 = vpop.f32.mrf.mxu0
    %v3157 = vadd.f32 %v117, %v3156
    %v3158 = vpop.f32.mrf.mxu0
    %3159 = vmatprep.mubr.f32.mxu0 %v2681
    %3160 = vmatmul.mubr.f32.gmra.mxu0 %v2680
    %v3161 = vpop.f32.mrf.mxu0
    %v3162 = vadd.f32 %v117, %v3161
    %v3163 = vpop.f32.mrf.mxu0
    %3164 = vmatprep.mubr.f32.mxu0 %v2683
    %3165 = vmatmul.mubr.f32.gmra.mxu0 %v2682
    %v3166 = vpop.f32.mrf.mxu0
    %v3167 = vadd.f32 %v117, %v3166
    %v3168 = vpop.f32.mrf.mxu0
    %3169 = vmatprep.mubr.f32.mxu0 %v2685
    %3170 = vmatmul.mubr.f32.gmra.mxu0 %v2684
    %v3171 = vpop.f32.mrf.mxu0
    %v3172 = vadd.f32 %v117, %v3171
    %v3173 = vpop.f32.mrf.mxu0
    %3174 = vmatprep.mubr.f32.mxu0 %v2687
    %3175 = vmatmul.mubr.f32.gmra.mxu0 %v2686
    %v3176 = vpop.f32.mrf.mxu0
    %v3177 = vadd.f32 %v117, %v3176
    %v3178 = vpop.f32.mrf.mxu0
    %3179 = vmatprep.mubr.f32.mxu0 %v2689
    %3180 = vmatmul.mubr.f32.gmra.mxu0 %v2688
    %v3181 = vpop.f32.mrf.mxu0
    %v3182 = vadd.f32 %v117, %v3181
    %v3183 = vpop.f32.mrf.mxu0
    %3184 = vmatprep.mubr.f32.mxu0 %v2691
    %3185 = vmatmul.mubr.f32.gmra.mxu0 %v2690
    %v3186 = vpop.f32.mrf.mxu0
    %v3187 = vadd.f32 %v117, %v3186
    %v3188 = vpop.f32.mrf.mxu0
    %3189 = vmatprep.mubr.f32.mxu0 %v2693
    %3190 = vmatmul.mubr.f32.gmra.mxu0 %v2692
    %v3191 = vpop.f32.mrf.mxu0
    %v3192 = vadd.f32 %v117, %v3191
    %v3193 = vpop.f32.mrf.mxu0
    %3194 = vmatprep.mubr.f32.mxu0 %v2695
    %3195 = vmatmul.mubr.f32.gmra.mxu0 %v2694
    %v3196 = vpop.f32.mrf.mxu0
    %v3197 = vadd.f32 %v117, %v3196
    %v3198 = vpop.f32.mrf.mxu0
    %3199 = vmatprep.mubr.f32.mxu0 %v2697
    %3200 = vmatmul.mubr.f32.gmra.mxu0 %v2696
    %v3201 = vpop.f32.mrf.mxu0
    %v3202 = vadd.f32 %v117, %v3201
    %v3203 = vpop.f32.mrf.mxu0
    %3204 = vmatprep.mubr.f32.mxu0 %v2699
    %3205 = vmatmul.mubr.f32.gmra.mxu0 %v2698
    %v3206 = vpop.f32.mrf.mxu0
    %v3207 = vadd.f32 %v117, %v3206
    %v3208 = vpop.f32.mrf.mxu0
    %3209 = vmatprep.mubr.f32.mxu0 %v2701
    %3210 = vmatmul.mubr.f32.gmra.mxu0 %v2700
    %v3211 = vpop.f32.mrf.mxu0
    %v3212 = vadd.f32 %v117, %v3211
    %v3213 = vpop.f32.mrf.mxu0
    %3214 = vmatprep.mubr.f32.mxu0 %v2703
    %3215 = vmatmul.mubr.f32.gmra.mxu0 %v2702
    %v3216 = vpop.f32.mrf.mxu0
    %v3217 = vadd.f32 %v117, %v3216
    %v3218 = vpop.f32.mrf.mxu0
    %3219 = vmatprep.mubr.f32.mxu0 %v2705
    %3220 = vmatmul.mubr.f32.gmra.mxu0 %v2704
    %v3221 = vpop.f32.mrf.mxu0
    %v3222 = vadd.f32 %v117, %v3221
    %v3223 = vpop.f32.mrf.mxu0
    %3224 = vmatprep.mubr.f32.mxu0 %v2707
    %3225 = vmatmul.mubr.f32.gmra.mxu0 %v2706
    %v3226 = vpop.f32.mrf.mxu0
    %v3227 = vadd.f32 %v117, %v3226
    %v3228 = vpop.f32.mrf.mxu0
    %3229 = vmatprep.mubr.f32.mxu0 %v2709
    %3230 = vmatmul.mubr.f32.gmra.mxu0 %v2708
    %v3231 = vpop.f32.mrf.mxu0
    %v3232 = vadd.f32 %v117, %v3231
    %v3233 = vpop.f32.mrf.mxu0
    %3234 = vmatprep.mubr.f32.mxu0 %v2711
    %3235 = vmatmul.mubr.f32.gmra.mxu0 %v2710
    %v3236 = vpop.f32.mrf.mxu0
    %v3237 = vadd.f32 %v117, %v3236
    %v3238 = vpop.f32.mrf.mxu0
    %3239 = vmatprep.mubr.f32.mxu0 %v2713
    %3240 = vmatmul.mubr.f32.gmra.mxu0 %v2712
    %v3241 = vpop.f32.mrf.mxu0
    %v3242 = vadd.f32 %v117, %v3241
    %v3243 = vpop.f32.mrf.mxu0
    %3244 = vmatprep.mubr.f32.mxu0 %v2715
    %3245 = vmatmul.mubr.f32.gmra.mxu0 %v2714
    %v3246 = vpop.f32.mrf.mxu0
    %v3247 = vadd.f32 %v117, %v3246
    %v3248 = vpop.f32.mrf.mxu0
    %3249 = vmatprep.mubr.f32.mxu0 %v2717
    %3250 = vmatmul.mubr.f32.gmra.mxu0 %v2716
    %v3251 = vpop.f32.mrf.mxu0
    %v3252 = vadd.f32 %v117, %v3251
    %v3253 = vpop.f32.mrf.mxu0
    %3254 = vmatprep.mubr.f32.mxu0 %v2719
    %3255 = vmatmul.mubr.f32.gmra.mxu0 %v2718
    %v3256 = vpop.f32.mrf.mxu0
    %v3257 = vadd.f32 %v117, %v3256
    %v3258 = vpop.f32.mrf.mxu0
    %3259 = vmatprep.mubr.f32.mxu0 %v2721
    %3260 = vmatmul.mubr.f32.gmra.mxu0 %v2720
    %v3261 = vpop.f32.mrf.mxu0
    %v3262 = vadd.f32 %v117, %v3261
    %v3263 = vpop.f32.mrf.mxu0
    %3264 = vmatprep.mubr.f32.mxu0 %v2723
    %3265 = vmatmul.mubr.f32.gmra.mxu0 %v2722
    %v3266 = vpop.f32.mrf.mxu0
    %v3267 = vadd.f32 %v117, %v3266
    %v3268 = vpop.f32.mrf.mxu0
    %3269 = vmatprep.mubr.f32.mxu0 %v2725
    %3270 = vmatmul.mubr.f32.gmra.mxu0 %v2724
    %v3271 = vpop.f32.mrf.mxu0
    %v3272 = vadd.f32 %v117, %v3271
    %v3273 = vpop.f32.mrf.mxu0
    %3274 = vmatprep.mubr.f32.mxu0 %v2727
    %3275 = vmatmul.mubr.f32.gmra.mxu0 %v2726
    %v3276 = vpop.f32.mrf.mxu0
    %v3277 = vadd.f32 %v117, %v3276
    %v3278 = vpop.f32.mrf.mxu0
    %3279 = vmatprep.mubr.f32.mxu0 %v2729
    %3280 = vmatmul.mubr.f32.gmra.mxu0 %v2728
    %v3281 = vpop.f32.mrf.mxu0
    %v3282 = vadd.f32 %v117, %v3281
    %v3283 = vpop.f32.mrf.mxu0
    %3284 = vmatprep.mubr.f32.mxu0 %v2731
    %3285 = vmatmul.mubr.f32.gmra.mxu0 %v2730
    %v3286 = vpop.f32.mrf.mxu0
    %v3287 = vadd.f32 %v117, %v3286
    %v3288 = vpop.f32.mrf.mxu0
    %3289 = vmatprep.mubr.f32.mxu0 %v2733
    %3290 = vmatmul.mubr.f32.gmra.mxu0 %v2732
    %v3291 = vpop.f32.mrf.mxu0
    %v3292 = vadd.f32 %v117, %v3291
    %v3293 = vpop.f32.mrf.mxu0
    %3294 = vmatprep.mubr.f32.mxu0 %v2735
    %3295 = vmatmul.mubr.f32.gmra.mxu0 %v2734
    %v3296 = vpop.f32.mrf.mxu0
    %v3297 = vadd.f32 %v117, %v3296
    %v3298 = vpop.f32.mrf.mxu0
    %3299 = vmatprep.mubr.f32.mxu0 %v2737
    %3300 = vmatmul.mubr.f32.gmra.mxu0 %v2736
    %v3301 = vpop.f32.mrf.mxu0
    %v3302 = vadd.f32 %v117, %v3301
    %v3303 = vpop.f32.mrf.mxu0
    %3304 = vmatprep.mubr.f32.mxu0 %v2739
    %3305 = vmatmul.mubr.f32.gmra.mxu0 %v2738
    %v3306 = vpop.f32.mrf.mxu0
    %v3307 = vadd.f32 %v117, %v3306
    %v3308 = vpop.f32.mrf.mxu0
    %3309 = vmatprep.mubr.f32.mxu0 %v2741
    %3310 = vmatmul.mubr.f32.gmra.mxu0 %v2740
    %v3311 = vpop.f32.mrf.mxu0
    %v3312 = vadd.f32 %v117, %v3311
    %v3313 = vpop.f32.mrf.mxu0
    %3314 = vmatprep.mubr.f32.mxu0 %v2743
    %3315 = vmatmul.mubr.f32.gmra.mxu0 %v2742
    %v3316 = vpop.f32.mrf.mxu0
    %v3317 = vadd.f32 %v117, %v3316
    %v3318 = vpop.f32.mrf.mxu0
    %3319 = vmatprep.mubr.f32.mxu0 %v2745
    %3320 = vmatmul.mubr.f32.gmra.mxu0 %v2744
    %v3321 = vpop.f32.mrf.mxu0
    %v3322 = vadd.f32 %v117, %v3321
    %v3323 = vpop.f32.mrf.mxu0
    %3324 = vmatprep.mubr.f32.mxu0 %v2747
    %3325 = vmatmul.mubr.f32.gmra.mxu0 %v2746
    %v3326 = vpop.f32.mrf.mxu0
    %v3327 = vadd.f32 %v117, %v3326
    %v3328 = vpop.f32.mrf.mxu0
    %3329 = vmatprep.mubr.f32.mxu0 %v2749
    %3330 = vmatmul.mubr.f32.gmra.mxu0 %v2748
    %v3331 = vpop.f32.mrf.mxu0
    %v3332 = vadd.f32 %v117, %v3331
    %v3333 = vpop.f32.mrf.mxu0
    %3334 = vmatprep.mubr.f32.mxu0 %v2751
    %3335 = vmatmul.mubr.f32.gmra.mxu0 %v2750
    %v3336 = vpop.f32.mrf.mxu0
    %v3337 = vadd.f32 %v117, %v3336
    %v3338 = vpop.f32.mrf.mxu0
    %3339 = vmatprep.mubr.f32.mxu0 %v2753
    %3340 = vmatmul.mubr.f32.gmra.mxu0 %v2752
    %v3341 = vpop.f32.mrf.mxu0
    %v3342 = vadd.f32 %v117, %v3341
    %v3343 = vpop.f32.mrf.mxu0
    %3344 = vmatprep.mubr.f32.mxu0 %v2755
    %3345 = vmatmul.mubr.f32.gmra.mxu0 %v2754
    %v3346 = vpop.f32.mrf.mxu0
    %v3347 = vadd.f32 %v117, %v3346
    %v3348 = vpop.f32.mrf.mxu0
    %3349 = vmatprep.mubr.f32.mxu0 %v2757
    %3350 = vmatmul.mubr.f32.gmra.mxu0 %v2756
    %v3351 = vpop.f32.mrf.mxu0
    %v3352 = vadd.f32 %v117, %v3351
    %v3353 = vpop.f32.mrf.mxu0
    %3354 = vmatprep.mubr.f32.mxu0 %v2759
    %3355 = vmatmul.mubr.f32.gmra.mxu0 %v2758
    %v3356 = vpop.f32.mrf.mxu0
    %v3357 = vadd.f32 %v117, %v3356
    %v3358 = vpop.f32.mrf.mxu0
    %3359 = vmatprep.mubr.f32.mxu0 %v2761
    %3360 = vmatmul.mubr.f32.gmra.mxu0 %v2760
    %v3361 = vpop.f32.mrf.mxu0
    %v3362 = vadd.f32 %v117, %v3361
    %v3363 = vpop.f32.mrf.mxu0
    %3364 = vmatprep.mubr.f32.mxu0 %v2763
    %3365 = vmatmul.mubr.f32.gmra.mxu0 %v2762
    %v3366 = vpop.f32.mrf.mxu0
    %v3367 = vadd.f32 %v117, %v3366
    %v3368 = vpop.f32.mrf.mxu0
    %3369 = vmatprep.mubr.f32.mxu0 %v2765
    %3370 = vmatmul.mubr.f32.gmra.mxu0 %v2764
    %v3371 = vpop.f32.mrf.mxu0
    %v3372 = vadd.f32 %v117, %v3371
    %v3373 = vpop.f32.mrf.mxu0
    %3374 = vmatprep.mubr.f32.mxu0 %v2767
    %3375 = vmatmul.mubr.f32.gmra.mxu0 %v2766
    %v3376 = vpop.f32.mrf.mxu0
    %v3377 = vadd.f32 %v117, %v3376
    %v3378 = vpop.f32.mrf.mxu0
    %3379 = vmatprep.mubr.f32.mxu0 %v2769
    %3380 = vmatmul.mubr.f32.gmra.mxu0 %v2768
    %v3381 = vpop.f32.mrf.mxu0
    %v3382 = vadd.f32 %v117, %v3381
    %v3383 = vpop.f32.mrf.mxu0
    %3384 = vmatprep.mubr.f32.mxu0 %v2771
    %3385 = vmatmul.mubr.f32.gmra.mxu0 %v2770
    %v3386 = vpop.f32.mrf.mxu0
    %v3387 = vadd.f32 %v117, %v3386
    %v3388 = vpop.f32.mrf.mxu0
    %3389 = vmatprep.mubr.f32.mxu0 %v2773
    %3390 = vmatmul.mubr.f32.gmra.mxu0 %v2772
    %v3391 = vpop.f32.mrf.mxu0
    %v3392 = vadd.f32 %v117, %v3391
    %v3393 = vpop.f32.mrf.mxu0
    %3394 = vmatprep.mubr.f32.mxu0 %v2775
    %3395 = vmatmul.mubr.f32.gmra.mxu0 %v2774
    %v3396 = vpop.f32.mrf.mxu0
    %v3397 = vadd.f32 %v117, %v3396
    %v3398 = vpop.f32.mrf.mxu0
    %3399 = vmatprep.mubr.f32.mxu0 %v2777
    %3400 = vmatmul.mubr.f32.gmra.mxu0 %v2776
    %v3401 = vpop.f32.mrf.mxu0
    %v3402 = vadd.f32 %v117, %v3401
    %v3403 = vpop.f32.mrf.mxu0
    %3404 = vmatprep.mubr.f32.mxu0 %v2779
    %3405 = vmatmul.mubr.f32.gmra.mxu0 %v2778
    %v3406 = vpop.f32.mrf.mxu0
    %v3407 = vadd.f32 %v117, %v3406
    %v3408 = vpop.f32.mrf.mxu0
    %3409 = vmatprep.mubr.f32.mxu0 %v2781
    %3410 = vmatmul.mubr.f32.gmra.mxu0 %v2780
    %v3411 = vpop.f32.mrf.mxu0
    %v3412 = vadd.f32 %v117, %v3411
    %v3413 = vpop.f32.mrf.mxu0
    %3414 = vmatprep.mubr.f32.mxu0 %v2783
    %3415 = vmatmul.mubr.f32.gmra.mxu0 %v2782
    %v3416 = vpop.f32.mrf.mxu0
    %v3417 = vadd.f32 %v117, %v3416
    %v3418 = vpop.f32.mrf.mxu0
    %3419 = vmatprep.mubr.f32.mxu0 %v2785
    %3420 = vmatmul.mubr.f32.gmra.mxu0 %v2784
    %v3421 = vpop.f32.mrf.mxu0
    %v3422 = vadd.f32 %v117, %v3421
    %v3423 = vpop.f32.mrf.mxu0
    %3424 = vmatprep.mubr.f32.mxu0 %v2787
    %3425 = vmatmul.mubr.f32.gmra.mxu0 %v2786
    %v3426 = vpop.f32.mrf.mxu0
    %v3427 = vadd.f32 %v117, %v3426
    %v3428 = vpop.f32.mrf.mxu0
    %3429 = vmatprep.mubr.f32.mxu0 %v2789
    %3430 = vmatmul.mubr.f32.gmra.mxu0 %v2788
    %v3431 = vpop.f32.mrf.mxu0
    %v3432 = vadd.f32 %v117, %v3431
    %v3433 = vpop.f32.mrf.mxu0
    %3434 = vmatprep.mubr.f32.mxu0 %v2791
    %3435 = vmatmul.mubr.f32.gmra.mxu0 %v2790
    %v3436 = vpop.f32.mrf.mxu0
    %v3437 = vadd.f32 %v117, %v3436
    %v3438 = vpop.f32.mrf.mxu0
    %3439 = vmatprep.mubr.f32.mxu0 %v2793
    %3440 = vmatmul.mubr.f32.gmra.mxu0 %v2792
    %v3441 = vpop.f32.mrf.mxu0
    %v3442 = vadd.f32 %v117, %v3441
    %v3443 = vpop.f32.mrf.mxu0
    %3444 = vmatprep.mubr.f32.mxu0 %v2795
    %3445 = vmatmul.mubr.f32.gmra.mxu0 %v2794
    %v3446 = vpop.f32.mrf.mxu0
    %v3447 = vadd.f32 %v117, %v3446
    %v3448 = vpop.f32.mrf.mxu0
    %3449 = vmatprep.mubr.f32.mxu0 %v2797
    %3450 = vmatmul.mubr.f32.gmra.mxu0 %v2796
    %v3451 = vpop.f32.mrf.mxu0
    %v3452 = vadd.f32 %v117, %v3451
    %v3453 = vpop.f32.mrf.mxu0
    %3454 = vmatprep.mubr.f32.mxu0 %v2799
    %3455 = vmatmul.mubr.f32.gmra.mxu0 %v2798
    %v3456 = vpop.f32.mrf.mxu0
    %v3457 = vadd.f32 %v117, %v3456
    %v3458 = vpop.f32.mrf.mxu0
    %3459 = vmatprep.mubr.f32.mxu0 %v2801
    %3460 = vmatmul.mubr.f32.gmra.mxu0 %v2800
    %v3461 = vpop.f32.mrf.mxu0
    %v3462 = vadd.f32 %v117, %v3461
    %v3463 = vpop.f32.mrf.mxu0
    %3464 = vmatprep.mubr.f32.mxu0 %v2803
    %3465 = vmatmul.mubr.f32.gmra.mxu0 %v2802
    %v3466 = vpop.f32.mrf.mxu0
    %v3467 = vadd.f32 %v117, %v3466
    %v3468 = vpop.f32.mrf.mxu0
    %3469 = vmatprep.mubr.f32.mxu0 %v2805
    %3470 = vmatmul.mubr.f32.gmra.mxu0 %v2804
    %v3471 = vpop.f32.mrf.mxu0
    %v3472 = vadd.f32 %v117, %v3471
    %v3473 = vpop.f32.mrf.mxu0
    %3474 = vmatprep.mubr.f32.mxu0 %v2807
    %3475 = vmatmul.mubr.f32.gmra.mxu0 %v2806
    %v3476 = vpop.f32.mrf.mxu0
    %v3477 = vadd.f32 %v117, %v3476
    %v3478 = vpop.f32.mrf.mxu0
    %3479 = vmatprep.mubr.f32.mxu0 %v2809
    %3480 = vmatmul.mubr.f32.gmra.mxu0 %v2808
    %v3481 = vpop.f32.mrf.mxu0
    %v3482 = vadd.f32 %v117, %v3481
    %v3483 = vpop.f32.mrf.mxu0
    %3484 = vmatprep.mubr.f32.mxu0 %v2811
    %3485 = vmatmul.mubr.f32.gmra.mxu0 %v2810
    %v3486 = vpop.f32.mrf.mxu0
    %v3487 = vadd.f32 %v117, %v3486
    %v3488 = vpop.f32.mrf.mxu0
    %3489 = vmatprep.mubr.f32.mxu0 %v2813
    %3490 = vmatmul.mubr.f32.gmra.mxu0 %v2812
    %v3491 = vpop.f32.mrf.mxu0
    %v3492 = vadd.f32 %v117, %v3491
    %v3493 = vpop.f32.mrf.mxu0
    %3494 = vmatprep.mubr.f32.mxu0 %v2815
    %3495 = vmatmul.mubr.f32.gmra.mxu0 %v2814
    %v3496 = vpop.f32.mrf.mxu0
    %v3497 = vadd.f32 %v117, %v3496
    %v3498 = vpop.f32.mrf.mxu0
    %3499 = vmatprep.mubr.f32.mxu0 %v2817
    %3500 = vmatmul.mubr.f32.gmra.mxu0 %v2816
    %v3501 = vpop.f32.mrf.mxu0
    %v3502 = vadd.f32 %v117, %v3501
    %v3503 = vpop.f32.mrf.mxu0
    %3504 = vmatprep.mubr.f32.mxu0 %v2819
    %3505 = vmatmul.mubr.f32.gmra.mxu0 %v2818
    %v3506 = vpop.f32.mrf.mxu0
    %v3507 = vadd.f32 %v117, %v3506
    %v3508 = vpop.f32.mrf.mxu0
    %3509 = vmatprep.mubr.f32.mxu0 %v2821
    %3510 = vmatmul.mubr.f32.gmra.mxu0 %v2820
    %v3511 = vpop.f32.mrf.mxu0
    %v3512 = vadd.f32 %v117, %v3511
    %v3513 = vpop.f32.mrf.mxu0
    %3514 = vmatprep.mubr.f32.mxu0 %v2823
    %3515 = vmatmul.mubr.f32.gmra.mxu0 %v2822
    %v3516 = vpop.f32.mrf.mxu0
    %v3517 = vadd.f32 %v117, %v3516
    %v3518 = vpop.f32.mrf.mxu0
    %3519 = vmatprep.mubr.f32.mxu0 %v2825
    %3520 = vmatmul.mubr.f32.gmra.mxu0 %v2824
    %v3521 = vpop.f32.mrf.mxu0
    %v3522 = vadd.f32 %v117, %v3521
    %v3523 = vpop.f32.mrf.mxu0
    %3524 = vmatprep.mubr.f32.mxu0 %v2827
    %3525 = vmatmul.mubr.f32.gmra.mxu0 %v2826
    %v3526 = vpop.f32.mrf.mxu0
    %v3527 = vadd.f32 %v117, %v3526
    %v3528 = vpop.f32.mrf.mxu0
    %3529 = vmatprep.mubr.f32.mxu0 %v2829
    %3530 = vmatmul.mubr.f32.gmra.mxu0 %v2828
    %v3531 = vpop.f32.mrf.mxu0
    %v3532 = vadd.f32 %v117, %v3531
    %v3533 = vpop.f32.mrf.mxu0
    %3534 = vdwg.mxu0
    %v3535 = vtanh.pop %v2897
    %v3536 = vtanh.pop %v2902
    %v3537 = vtanh.pop %v2907
    %v3538 = vtanh.pop %v2912
    %v3539 = vtanh.pop %v2917
    %v3540 = vtanh.pop %v2922
    %v3541 = vtanh.pop %v2927
    %v3542 = vtanh.pop %v2932
    %v3543 = vtanh.pop %v2937
    %v3544 = vtanh.pop %v2942
    %v3545 = vtanh.pop %v2947
    %v3546 = vtanh.pop %v2952
    %v3547 = vtanh.pop %v2957
    %v3548 = vtanh.pop %v2962
    %v3549 = vtanh.pop %v2967
    %v3550 = vtanh.pop %v2972
    %v3551 = vtanh.pop %v2977
    %v3552 = vtanh.pop %v2982
    %v3553 = vtanh.pop %v2987
    %v3554 = vtanh.pop %v2992
    %v3555 = vtanh.pop %v2997
    %v3556 = vtanh.pop %v3002
    %v3557 = vtanh.pop %v3007
    %v3558 = vtanh.pop %v3012
    %v3559 = vtanh.pop %v3017
    %v3560 = vtanh.pop %v3022
    %v3561 = vtanh.pop %v3027
    %v3562 = vtanh.pop %v3032
    %v3563 = vtanh.pop %v3037
    %v3564 = vtanh.pop %v3042
    %v3565 = vtanh.pop %v3047
    %v3566 = vtanh.pop %v3052
    %v3567 = vtanh.pop %v3057
    %v3568 = vtanh.pop %v3062
    %v3569 = vtanh.pop %v3067
    %v3570 = vtanh.pop %v3072
    %v3571 = vtanh.pop %v3077
    %v3572 = vtanh.pop %v3082
    %v3573 = vtanh.pop %v3087
    %v3574 = vtanh.pop %v3092
    %v3575 = vtanh.pop %v3097
    %v3576 = vtanh.pop %v3102
    %v3577 = vtanh.pop %v3107
    %v3578 = vtanh.pop %v3112
    %v3579 = vtanh.pop %v3117
    %v3580 = vtanh.pop %v3122
    %v3581 = vtanh.pop %v3127
    %v3582 = vtanh.pop %v3132
    %v3583 = vtanh.pop %v3137
    %v3584 = vtanh.pop %v3142
    %v3585 = vtanh.pop %v3147
    %v3586 = vtanh.pop %v3152
    %v3587 = vtanh.pop %v3157
    %v3588 = vtanh.pop %v3162
    %v3589 = vtanh.pop %v3167
    %v3590 = vtanh.pop %v3172
    %v3591 = vtanh.pop %v3177
    %v3592 = vtanh.pop %v3182
    %v3593 = vtanh.pop %v3187
    %v3594 = vtanh.pop %v3192
    %v3595 = vtanh.pop %v3197
    %v3596 = vtanh.pop %v3202
    %v3597 = vtanh.pop %v3207
    %v3598 = vtanh.pop %v3212
    %v3599 = vtanh.pop %v3217
    %v3600 = vtanh.pop %v3222
    %v3601 = vtanh.pop %v3227
    %v3602 = vtanh.pop %v3232
    %v3603 = vtanh.pop %v3237
    %v3604 = vtanh.pop %v3242
    %v3605 = vtanh.pop %v3247
    %v3606 = vtanh.pop %v3252
    %v3607 = vtanh.pop %v3257
    %v3608 = vtanh.pop %v3262
    %v3609 = vtanh.pop %v3267
    %v3610 = vtanh.pop %v3272
    %v3611 = vtanh.pop %v3277
    %v3612 = vtanh.pop %v3282
    %v3613 = vtanh.pop %v3287
    %v3614 = vtanh.pop %v3292
    %v3615 = vtanh.pop %v3297
    %v3616 = vtanh.pop %v3302
    %v3617 = vtanh.pop %v3307
    %v3618 = vtanh.pop %v3312
    %v3619 = vtanh.pop %v3317
    %v3620 = vtanh.pop %v3322
    %v3621 = vtanh.pop %v3327
    %v3622 = vtanh.pop %v3332
    %v3623 = vtanh.pop %v3337
    %v3624 = vtanh.pop %v3342
    %v3625 = vtanh.pop %v3347
    %v3626 = vtanh.pop %v3352
    %v3627 = vtanh.pop %v3357
    %v3628 = vtanh.pop %v3362
    %v3629 = vtanh.pop %v3367
    %v3630 = vtanh.pop %v3372
    %v3631 = vtanh.pop %v3377
    %v3632 = vtanh.pop %v3382
    %v3633 = vtanh.pop %v3387
    %v3634 = vtanh.pop %v3392
    %v3635 = vtanh.pop %v3397
    %v3636 = vtanh.pop %v3402
    %v3637 = vtanh.pop %v3407
    %v3638 = vtanh.pop %v3412
    %v3639 = vtanh.pop %v3417
    %v3640 = vtanh.pop %v3422
    %v3641 = vtanh.pop %v3427
    %v3642 = vtanh.pop %v3432
    %v3643 = vtanh.pop %v3437
    %v3644 = vtanh.pop %v3442
    %v3645 = vtanh.pop %v3447
    %v3646 = vtanh.pop %v3452
    %v3647 = vtanh.pop %v3457
    %v3648 = vtanh.pop %v3462
    %v3649 = vtanh.pop %v3467
    %v3650 = vtanh.pop %v3472
    %v3651 = vtanh.pop %v3477
    %v3652 = vtanh.pop %v3482
    %v3653 = vtanh.pop %v3487
    %v3654 = vtanh.pop %v3492
    %v3655 = vtanh.pop %v3497
    %v3656 = vtanh.pop %v3502
    %v3657 = vtanh.pop %v3507
    %v3658 = vtanh.pop %v3512
    %v3659 = vtanh.pop %v3517
    %v3660 = vtanh.pop %v3522
    %v3661 = vtanh.pop %v3527
    %v3662 = vtanh.pop %v3532
    %v3663 = vadd.f32 %v3535, %v3536
    %v3664 = vadd.f32 %v3663, %v3537
    %v3665 = vadd.f32 %v3664, %v3538
    %v3666 = vadd.f32 %v3665, %v3539
    %v3667 = vadd.f32 %v3666, %v3540
    %v3668 = vadd.f32 %v3667, %v3541
    %v3669 = vadd.f32 %v3668, %v3542
    %v3670 = vadd.f32 %v3669, %v3543
    %v3671 = vadd.f32 %v3670, %v3544
    %v3672 = vadd.f32 %v3671, %v3545
    %v3673 = vadd.f32 %v3672, %v3546
    %v3674 = vadd.f32 %v3673, %v3547
    %v3675 = vadd.f32 %v3674, %v3548
    %v3676 = vadd.f32 %v3675, %v3549
    %v3677 = vadd.f32 %v3676, %v3550
    %v3678 = vadd.f32 %v3677, %v3551
    %v3679 = vadd.f32 %v3678, %v3552
    %v3680 = vadd.f32 %v3679, %v3553
    %v3681 = vadd.f32 %v3680, %v3554
    %v3682 = vadd.f32 %v3681, %v3555
    %v3683 = vadd.f32 %v3682, %v3556
    %v3684 = vadd.f32 %v3683, %v3557
    %v3685 = vadd.f32 %v3684, %v3558
    %v3686 = vadd.f32 %v3685, %v3559
    %v3687 = vadd.f32 %v3686, %v3560
    %v3688 = vadd.f32 %v3687, %v3561
    %v3689 = vadd.f32 %v3688, %v3562
    %v3690 = vadd.f32 %v3689, %v3563
    %v3691 = vadd.f32 %v3690, %v3564
    %v3692 = vadd.f32 %v3691, %v3565
    %v3693 = vadd.f32 %v3692, %v3566
    %v3694 = vadd.f32 %v3693, %v3567
    %v3695 = vadd.f32 %v3694, %v3568
    %v3696 = vadd.f32 %v3695, %v3569
    %v3697 = vadd.f32 %v3696, %v3570
    %v3698 = vadd.f32 %v3697, %v3571
    %v3699 = vadd.f32 %v3698, %v3572
    %v3700 = vadd.f32 %v3699, %v3573
    %v3701 = vadd.f32 %v3700, %v3574
    %v3702 = vadd.f32 %v3701, %v3575
    %v3703 = vadd.f32 %v3702, %v3576
    %v3704 = vadd.f32 %v3703, %v3577
    %v3705 = vadd.f32 %v3704, %v3578
    %v3706 = vadd.f32 %v3705, %v3579
    %v3707 = vadd.f32 %v3706, %v3580
    %v3708 = vadd.f32 %v3707, %v3581
    %v3709 = vadd.f32 %v3708, %v3582
    %v3710 = vadd.f32 %v3709, %v3583
    %v3711 = vadd.f32 %v3710, %v3584
    %v3712 = vadd.f32 %v3711, %v3585
    %v3713 = vadd.f32 %v3712, %v3586
    %v3714 = vadd.f32 %v3713, %v3587
    %v3715 = vadd.f32 %v3714, %v3588
    %v3716 = vadd.f32 %v3715, %v3589
    %v3717 = vadd.f32 %v3716, %v3590
    %v3718 = vadd.f32 %v3717, %v3591
    %v3719 = vadd.f32 %v3718, %v3592
    %v3720 = vadd.f32 %v3719, %v3593
    %v3721 = vadd.f32 %v3720, %v3594
    %v3722 = vadd.f32 %v3721, %v3595
    %v3723 = vadd.f32 %v3722, %v3596
    %v3724 = vadd.f32 %v3723, %v3597
    %v3725 = vadd.f32 %v3724, %v3598
    %v3726 = vadd.f32 %v3725, %v3599
    %v3727 = vadd.f32 %v3726, %v3600
    %v3728 = vadd.f32 %v3727, %v3601
    %v3729 = vadd.f32 %v3728, %v3602
    %v3730 = vadd.f32 %v3729, %v3603
    %v3731 = vadd.f32 %v3730, %v3604
    %v3732 = vadd.f32 %v3731, %v3605
    %v3733 = vadd.f32 %v3732, %v3606
    %v3734 = vadd.f32 %v3733, %v3607
    %v3735 = vadd.f32 %v3734, %v3608
    %v3736 = vadd.f32 %v3735, %v3609
    %v3737 = vadd.f32 %v3736, %v3610
    %v3738 = vadd.f32 %v3737, %v3611
    %v3739 = vadd.f32 %v3738, %v3612
    %v3740 = vadd.f32 %v3739, %v3613
    %v3741 = vadd.f32 %v3740, %v3614
    %v3742 = vadd.f32 %v3741, %v3615
    %v3743 = vadd.f32 %v3742, %v3616
    %v3744 = vadd.f32 %v3743, %v3617
    %v3745 = vadd.f32 %v3744, %v3618
    %v3746 = vadd.f32 %v3745, %v3619
    %v3747 = vadd.f32 %v3746, %v3620
    %v3748 = vadd.f32 %v3747, %v3621
    %v3749 = vadd.f32 %v3748, %v3622
    %v3750 = vadd.f32 %v3749, %v3623
    %v3751 = vadd.f32 %v3750, %v3624
    %v3752 = vadd.f32 %v3751, %v3625
    %v3753 = vadd.f32 %v3752, %v3626
    %v3754 = vadd.f32 %v3753, %v3627
    %v3755 = vadd.f32 %v3754, %v3628
    %v3756 = vadd.f32 %v3755, %v3629
    %v3757 = vadd.f32 %v3756, %v3630
    %v3758 = vadd.f32 %v3757, %v3631
    %v3759 = vadd.f32 %v3758, %v3632
    %v3760 = vadd.f32 %v3759, %v3633
    %v3761 = vadd.f32 %v3760, %v3634
    %v3762 = vadd.f32 %v3761, %v3635
    %v3763 = vadd.f32 %v3762, %v3636
    %v3764 = vadd.f32 %v3763, %v3637
    %v3765 = vadd.f32 %v3764, %v3638
    %v3766 = vadd.f32 %v3765, %v3639
    %v3767 = vadd.f32 %v3766, %v3640
    %v3768 = vadd.f32 %v3767, %v3641
    %v3769 = vadd.f32 %v3768, %v3642
    %v3770 = vadd.f32 %v3769, %v3643
    %v3771 = vadd.f32 %v3770, %v3644
    %v3772 = vadd.f32 %v3771, %v3645
    %v3773 = vadd.f32 %v3772, %v3646
    %v3774 = vadd.f32 %v3773, %v3647
    %v3775 = vadd.f32 %v3774, %v3648
    %v3776 = vadd.f32 %v3775, %v3649
    %v3777 = vadd.f32 %v3776, %v3650
    %v3778 = vadd.f32 %v3777, %v3651
    %v3779 = vadd.f32 %v3778, %v3652
    %v3780 = vadd.f32 %v3779, %v3653
    %v3781 = vadd.f32 %v3780, %v3654
    %v3782 = vadd.f32 %v3781, %v3655
    %v3783 = vadd.f32 %v3782, %v3656
    %v3784 = vadd.f32 %v3783, %v3657
    %v3785 = vadd.f32 %v3784, %v3658
    %v3786 = vadd.f32 %v3785, %v3659
    %v3787 = vadd.f32 %v3786, %v3660
    %v3788 = vadd.f32 %v3787, %v3661
    %v3789 = vadd.f32 %v3788, %v3662
    %v3790 = vrot.slane %v3789, 4
    %v3791 = vadd.f32 %v3789, %v3790
    %v3792 = vrot.slane %v3791, 2
    %v3793 = vadd.f32 %v3791, %v3792
    %v3794 = vrot.slane %v3793, 1
    %v3795 = vadd.f32 %v3793, %v3794
    %v3796 = vmul.f32 %v3795, 0.0009765625
    %v3797 = vmul.f32 %v3796, %v111
    %v3798 = vsel %vm1343, %v3797, 0.0
    %3799 = vadd.xlane.f32.xlu0 %v3798
    %v3800 = vpop.xlane.xlu0 %3799
    %v3801 = vmax.f32 %v1346, %v2573
    %v3802 = vmax.f32 %v3801, %v3800
    %v3803 = vsub.f32 %v1346, %v3802
    %v3804 = vmul.f32 %v3803, 1.442695
    %v3805 = vpow.pop %v3804
    %v3806 = vsub.f32 %v2573, %v3802
    %v3807 = vmul.f32 %v3806, 1.442695
    %v3808 = vpow.pop %v3807
    %v3809 = vsub.f32 %v3800, %v3802
    %v3810 = vmul.f32 %v3809, 1.442695
    %v3811 = vpow.pop %v3810
    %v3812 = vadd.f32 %v3805, %v3808
    %v3813 = vadd.f32 %v3812, %v3811
    %v3814 = vrcp.pop %v3813
    %v3815 = vmul.f32 %v3805, %v3814
    %v3816 = vlaneseq
    %v3817 = vshrl.u32 %v3816, 7
    %v3818 = vsub.s32 0, %v3817
    %v3819 = vrot.slane %v3815, %v3818
    %v3820 = vmul.f32 %v3819, %v119
    %v3821 = vmul.f32 %v3819, %v120
    %v3822 = vmul.f32 %v3819, %v121
    %v3823 = vmul.f32 %v3819, %v122
    %v3824 = vmul.f32 %v3819, %v123
    %v3825 = vmul.f32 %v3819, %v124
    %v3826 = vmul.f32 %v3819, %v125
    %v3827 = vmul.f32 %v3819, %v126
    %v3828 = vmul.f32 %v3819, %v127
    %v3829 = vmul.f32 %v3819, %v128
    %v3830 = vmul.f32 %v3819, %v129
    %v3831 = vmul.f32 %v3819, %v130
    %v3832 = vmul.f32 %v3819, %v131
    %v3833 = vmul.f32 %v3819, %v132
    %v3834 = vmul.f32 %v3819, %v133
    %v3835 = vmul.f32 %v3819, %v134
    %v3836 = vmul.f32 %v3819, %v135
    %v3837 = vmul.f32 %v3819, %v136
    %v3838 = vmul.f32 %v3819, %v137
    %v3839 = vmul.f32 %v3819, %v138
    %v3840 = vmul.f32 %v3819, %v139
    %v3841 = vmul.f32 %v3819, %v140
    %v3842 = vmul.f32 %v3819, %v141
    %v3843 = vmul.f32 %v3819, %v142
    %v3844 = vmul.f32 %v3819, %v143
    %v3845 = vmul.f32 %v3819, %v144
    %v3846 = vmul.f32 %v3819, %v145
    %v3847 = vmul.f32 %v3819, %v146
    %v3848 = vmul.f32 %v3819, %v147
    %v3849 = vmul.f32 %v3819, %v148
    %v3850 = vmul.f32 %v3819, %v149
    %v3851 = vmul.f32 %v3819, %v150
    %v3852 = vmul.f32 %v3819, %v151
    %v3853 = vmul.f32 %v3819, %v152
    %v3854 = vmul.f32 %v3819, %v153
    %v3855 = vmul.f32 %v3819, %v154
    %v3856 = vmul.f32 %v3819, %v155
    %v3857 = vmul.f32 %v3819, %v156
    %v3858 = vmul.f32 %v3819, %v157
    %v3859 = vmul.f32 %v3819, %v158
    %v3860 = vmul.f32 %v3819, %v159
    %v3861 = vmul.f32 %v3819, %v160
    %v3862 = vmul.f32 %v3819, %v161
    %v3863 = vmul.f32 %v3819, %v162
    %v3864 = vmul.f32 %v3819, %v163
    %v3865 = vmul.f32 %v3819, %v164
    %v3866 = vmul.f32 %v3819, %v165
    %v3867 = vmul.f32 %v3819, %v166
    %v3868 = vmul.f32 %v3819, %v167
    %v3869 = vmul.f32 %v3819, %v168
    %v3870 = vmul.f32 %v3819, %v169
    %v3871 = vmul.f32 %v3819, %v170
    %v3872 = vmul.f32 %v3819, %v171
    %v3873 = vmul.f32 %v3819, %v172
    %v3874 = vmul.f32 %v3819, %v173
    %v3875 = vmul.f32 %v3819, %v174
    %v3876 = vmul.f32 %v3819, %v175
    %v3877 = vmul.f32 %v3819, %v176
    %v3878 = vmul.f32 %v3819, %v177
    %v3879 = vmul.f32 %v3819, %v178
    %v3880 = vmul.f32 %v3819, %v179
    %v3881 = vmul.f32 %v3819, %v180
    %v3882 = vmul.f32 %v3819, %v181
    %v3883 = vmul.f32 %v3819, %v182
    %v3884 = vmul.f32 %v3819, %v183
    %v3885 = vmul.f32 %v3819, %v184
    %v3886 = vmul.f32 %v3819, %v185
    %v3887 = vmul.f32 %v3819, %v186
    %v3888 = vmul.f32 %v3819, %v187
    %v3889 = vmul.f32 %v3819, %v188
    %v3890 = vmul.f32 %v3819, %v189
    %v3891 = vmul.f32 %v3819, %v190
    %v3892 = vmul.f32 %v3819, %v191
    %v3893 = vmul.f32 %v3819, %v192
    %v3894 = vmul.f32 %v3819, %v193
    %v3895 = vmul.f32 %v3819, %v194
    %v3896 = vmul.f32 %v3819, %v195
    %v3897 = vmul.f32 %v3819, %v196
    %v3898 = vmul.f32 %v3819, %v197
    %v3899 = vmul.f32 %v3819, %v198
    %v3900 = vmul.f32 %v3819, %v199
    %v3901 = vmul.f32 %v3819, %v200
    %v3902 = vmul.f32 %v3819, %v201
    %v3903 = vmul.f32 %v3819, %v202
    %v3904 = vmul.f32 %v3819, %v203
    %v3905 = vmul.f32 %v3819, %v204
    %v3906 = vmul.f32 %v3819, %v205
    %v3907 = vmul.f32 %v3819, %v206
    %v3908 = vmul.f32 %v3819, %v207
    %v3909 = vmul.f32 %v3819, %v208
    %v3910 = vmul.f32 %v3819, %v209
    %v3911 = vmul.f32 %v3819, %v210
    %v3912 = vmul.f32 %v3819, %v211
    %v3913 = vmul.f32 %v3819, %v212
    %v3914 = vmul.f32 %v3819, %v213
    %v3915 = vmul.f32 %v3819, %v214
    %v3916 = vmul.f32 %v3819, %v215
    %v3917 = vmul.f32 %v3819, %v216
    %v3918 = vmul.f32 %v3819, %v217
    %v3919 = vmul.f32 %v3819, %v218
    %v3920 = vmul.f32 %v3819, %v219
    %v3921 = vmul.f32 %v3819, %v220
    %v3922 = vmul.f32 %v3819, %v221
    %v3923 = vmul.f32 %v3819, %v222
    %v3924 = vmul.f32 %v3819, %v223
    %v3925 = vmul.f32 %v3819, %v224
    %v3926 = vmul.f32 %v3819, %v225
    %v3927 = vmul.f32 %v3819, %v226
    %v3928 = vmul.f32 %v3819, %v227
    %v3929 = vmul.f32 %v3819, %v228
    %v3930 = vmul.f32 %v3819, %v229
    %v3931 = vmul.f32 %v3819, %v230
    %v3932 = vmul.f32 %v3819, %v231
    %v3933 = vmul.f32 %v3819, %v232
    %v3934 = vmul.f32 %v3819, %v233
    %v3935 = vmul.f32 %v3819, %v234
    %v3936 = vmul.f32 %v3819, %v235
    %v3937 = vmul.f32 %v3819, %v236
    %v3938 = vmul.f32 %v3819, %v237
    %v3939 = vmul.f32 %v3819, %v238
    %v3940 = vmul.f32 %v3819, %v239
    %v3941 = vmul.f32 %v3819, %v240
    %v3942 = vmul.f32 %v3819, %v241
    %v3943 = vmul.f32 %v3819, %v242
    %v3944 = vmul.f32 %v3819, %v243
    %v3945 = vmul.f32 %v3819, %v244
    %v3946 = vmul.f32 %v3819, %v245
    %v3947 = vmul.f32 %v3819, %v246
    %v3948 = vmul.f32 %v3819, %v247
    %v3949 = vmul.f32 %v3819, %v248
    %v3950 = vmul.f32 %v3819, %v249
    %v3951 = vmul.f32 %v3819, %v250
    %v3952 = vmul.f32 %v3819, %v251
    %v3953 = vmul.f32 %v3819, %v252
    %v3954 = vmul.f32 %v3819, %v253
    %v3955 = vmul.f32 %v3819, %v254
    %v3956 = vmul.f32 %v3819, %v255
    %v3957 = vmul.f32 %v3819, %v256
    %v3958 = vmul.f32 %v3819, %v257
    %v3959 = vmul.f32 %v3819, %v258
    %v3960 = vmul.f32 %v3819, %v259
    %v3961 = vmul.f32 %v3819, %v260
    %v3962 = vmul.f32 %v3819, %v261
    %v3963 = vmul.f32 %v3819, %v262
    %v3964 = vmul.f32 %v3819, %v263
    %v3965 = vmul.f32 %v3819, %v264
    %v3966 = vmul.f32 %v3819, %v265
    %v3967 = vmul.f32 %v3819, %v266
    %v3968 = vmul.f32 %v3819, %v267
    %v3969 = vmul.f32 %v3819, %v268
    %v3970 = vmul.f32 %v3819, %v269
    %v3971 = vmul.f32 %v3819, %v270
    %v3972 = vmul.f32 %v3819, %v271
    %v3973 = vmul.f32 %v3819, %v272
    %v3974 = vmul.f32 %v3819, %v273
    %v3975 = vmul.f32 %v3819, %v274
    %v3976 = vmul.f32 %v3819, %v275
    %v3977 = vmul.f32 %v3819, %v276
    %v3978 = vmul.f32 %v3819, %v277
    %v3979 = vmul.f32 %v3819, %v278
    %v3980 = vmul.f32 %v3819, %v279
    %v3981 = vmul.f32 %v3819, %v280
    %v3982 = vmul.f32 %v3819, %v281
    %v3983 = vmul.f32 %v3819, %v282
    %v3984 = vmul.f32 %v3819, %v283
    %v3985 = vmul.f32 %v3819, %v284
    %v3986 = vmul.f32 %v3819, %v285
    %v3987 = vmul.f32 %v3819, %v286
    %v3988 = vmul.f32 %v3819, %v287
    %v3989 = vmul.f32 %v3819, %v288
    %v3990 = vmul.f32 %v3819, %v289
    %v3991 = vmul.f32 %v3819, %v290
    %v3992 = vmul.f32 %v3819, %v291
    %v3993 = vmul.f32 %v3819, %v292
    %v3994 = vmul.f32 %v3819, %v293
    %v3995 = vmul.f32 %v3819, %v294
    %v3996 = vmul.f32 %v3819, %v295
    %v3997 = vmul.f32 %v3819, %v296
    %v3998 = vmul.f32 %v3819, %v297
    %v3999 = vmul.f32 %v3819, %v298
    %v4000 = vmul.f32 %v3819, %v299
    %v4001 = vmul.f32 %v3819, %v300
    %v4002 = vmul.f32 %v3819, %v301
    %v4003 = vmul.f32 %v3819, %v302
    %v4004 = vmul.f32 %v3819, %v303
    %v4005 = vmul.f32 %v3819, %v304
    %v4006 = vmul.f32 %v3819, %v305
    %v4007 = vmul.f32 %v3819, %v306
    %v4008 = vmul.f32 %v3819, %v307
    %v4009 = vmul.f32 %v3819, %v308
    %v4010 = vmul.f32 %v3819, %v309
    %v4011 = vmul.f32 %v3819, %v310
    %v4012 = vmul.f32 %v3819, %v311
    %v4013 = vmul.f32 %v3819, %v312
    %v4014 = vmul.f32 %v3819, %v313
    %v4015 = vmul.f32 %v3819, %v314
    %v4016 = vmul.f32 %v3819, %v315
    %v4017 = vmul.f32 %v3819, %v316
    %v4018 = vmul.f32 %v3819, %v317
    %v4019 = vmul.f32 %v3819, %v318
    %v4020 = vmul.f32 %v3819, %v319
    %v4021 = vmul.f32 %v3819, %v320
    %v4022 = vmul.f32 %v3819, %v321
    %v4023 = vmul.f32 %v3819, %v322
    %v4024 = vmul.f32 %v3819, %v323
    %v4025 = vmul.f32 %v3819, %v324
    %v4026 = vmul.f32 %v3819, %v325
    %v4027 = vmul.f32 %v3819, %v326
    %v4028 = vmul.f32 %v3819, %v327
    %v4029 = vmul.f32 %v3819, %v328
    %v4030 = vmul.f32 %v3819, %v329
    %v4031 = vmul.f32 %v3819, %v330
    %v4032 = vmul.f32 %v3819, %v331
    %v4033 = vmul.f32 %v3819, %v332
    %v4034 = vmul.f32 %v3819, %v333
    %v4035 = vmul.f32 %v3819, %v334
    %v4036 = vmul.f32 %v3819, %v335
    %v4037 = vmul.f32 %v3819, %v336
    %v4038 = vmul.f32 %v3819, %v337
    %v4039 = vmul.f32 %v3819, %v338
    %v4040 = vmul.f32 %v3819, %v339
    %v4041 = vmul.f32 %v3819, %v340
    %v4042 = vmul.f32 %v3819, %v341
    %v4043 = vmul.f32 %v3819, %v342
    %v4044 = vmul.f32 %v3819, %v343
    %v4045 = vmul.f32 %v3819, %v344
    %v4046 = vmul.f32 %v3819, %v345
    %v4047 = vmul.f32 %v3819, %v346
    %v4048 = vmul.f32 %v3819, %v347
    %v4049 = vmul.f32 %v3819, %v348
    %v4050 = vmul.f32 %v3819, %v349
    %v4051 = vmul.f32 %v3819, %v350
    %v4052 = vmul.f32 %v3819, %v351
    %v4053 = vmul.f32 %v3819, %v352
    %v4054 = vmul.f32 %v3819, %v353
    %v4055 = vmul.f32 %v3819, %v354
    %v4056 = vmul.f32 %v3819, %v355
    %v4057 = vmul.f32 %v3819, %v356
    %v4058 = vmul.f32 %v3819, %v357
    %v4059 = vmul.f32 %v3819, %v358
    %v4060 = vmul.f32 %v3819, %v359
    %v4061 = vmul.f32 %v3819, %v360
    %v4062 = vmul.f32 %v3819, %v361
    %v4063 = vmul.f32 %v3819, %v362
    %v4064 = vmul.f32 %v3819, %v363
    %v4065 = vmul.f32 %v3819, %v364
    %v4066 = vmul.f32 %v3819, %v365
    %v4067 = vmul.f32 %v3819, %v366
    %v4068 = vmul.f32 %v3819, %v367
    %v4069 = vmul.f32 %v3819, %v368
    %v4070 = vmul.f32 %v3819, %v369
    %v4071 = vmul.f32 %v3819, %v370
    %v4072 = vmul.f32 %v3819, %v371
    %v4073 = vmul.f32 %v3819, %v372
    %v4074 = vmul.f32 %v3819, %v373
    %v4075 = vmul.f32 %v3819, %v374
    %v4076 = vmul.f32 %v3808, %v3814
    %v4077 = vlaneseq
    %v4078 = vshrl.u32 %v4077, 7
    %v4079 = vsub.s32 0, %v4078
    %v4080 = vrot.slane %v4076, %v4079
    %v4081 = vmul.f32 %v4080, %v1347
    %v4082 = vmul.f32 %v4080, %v1348
    %v4083 = vmul.f32 %v4080, %v1349
    %v4084 = vmul.f32 %v4080, %v1350
    %v4085 = vmul.f32 %v4080, %v1351
    %v4086 = vmul.f32 %v4080, %v1352
    %v4087 = vmul.f32 %v4080, %v1353
    %v4088 = vmul.f32 %v4080, %v1354
    %v4089 = vmul.f32 %v4080, %v1355
    %v4090 = vmul.f32 %v4080, %v1356
    %v4091 = vmul.f32 %v4080, %v1357
    %v4092 = vmul.f32 %v4080, %v1358
    %v4093 = vmul.f32 %v4080, %v1359
    %v4094 = vmul.f32 %v4080, %v1360
    %v4095 = vmul.f32 %v4080, %v1361
    %v4096 = vmul.f32 %v4080, %v1362
    %v4097 = vmul.f32 %v4080, %v1363
    %v4098 = vmul.f32 %v4080, %v1364
    %v4099 = vmul.f32 %v4080, %v1365
    %v4100 = vmul.f32 %v4080, %v1366
    %v4101 = vmul.f32 %v4080, %v1367
    %v4102 = vmul.f32 %v4080, %v1368
    %v4103 = vmul.f32 %v4080, %v1369
    %v4104 = vmul.f32 %v4080, %v1370
    %v4105 = vmul.f32 %v4080, %v1371
    %v4106 = vmul.f32 %v4080, %v1372
    %v4107 = vmul.f32 %v4080, %v1373
    %v4108 = vmul.f32 %v4080, %v1374
    %v4109 = vmul.f32 %v4080, %v1375
    %v4110 = vmul.f32 %v4080, %v1376
    %v4111 = vmul.f32 %v4080, %v1377
    %v4112 = vmul.f32 %v4080, %v1378
    %v4113 = vmul.f32 %v4080, %v1379
    %v4114 = vmul.f32 %v4080, %v1380
    %v4115 = vmul.f32 %v4080, %v1381
    %v4116 = vmul.f32 %v4080, %v1382
    %v4117 = vmul.f32 %v4080, %v1383
    %v4118 = vmul.f32 %v4080, %v1384
    %v4119 = vmul.f32 %v4080, %v1385
    %v4120 = vmul.f32 %v4080, %v1386
    %v4121 = vmul.f32 %v4080, %v1387
    %v4122 = vmul.f32 %v4080, %v1388
    %v4123 = vmul.f32 %v4080, %v1389
    %v4124 = vmul.f32 %v4080, %v1390
    %v4125 = vmul.f32 %v4080, %v1391
    %v4126 = vmul.f32 %v4080, %v1392
    %v4127 = vmul.f32 %v4080, %v1393
    %v4128 = vmul.f32 %v4080, %v1394
    %v4129 = vmul.f32 %v4080, %v1395
    %v4130 = vmul.f32 %v4080, %v1396
    %v4131 = vmul.f32 %v4080, %v1397
    %v4132 = vmul.f32 %v4080, %v1398
    %v4133 = vmul.f32 %v4080, %v1399
    %v4134 = vmul.f32 %v4080, %v1400
    %v4135 = vmul.f32 %v4080, %v1401
    %v4136 = vmul.f32 %v4080, %v1402
    %v4137 = vmul.f32 %v4080, %v1403
    %v4138 = vmul.f32 %v4080, %v1404
    %v4139 = vmul.f32 %v4080, %v1405
    %v4140 = vmul.f32 %v4080, %v1406
    %v4141 = vmul.f32 %v4080, %v1407
    %v4142 = vmul.f32 %v4080, %v1408
    %v4143 = vmul.f32 %v4080, %v1409
    %v4144 = vmul.f32 %v4080, %v1410
    %v4145 = vmul.f32 %v4080, %v1411
    %v4146 = vmul.f32 %v4080, %v1412
    %v4147 = vmul.f32 %v4080, %v1413
    %v4148 = vmul.f32 %v4080, %v1414
    %v4149 = vmul.f32 %v4080, %v1415
    %v4150 = vmul.f32 %v4080, %v1416
    %v4151 = vmul.f32 %v4080, %v1417
    %v4152 = vmul.f32 %v4080, %v1418
    %v4153 = vmul.f32 %v4080, %v1419
    %v4154 = vmul.f32 %v4080, %v1420
    %v4155 = vmul.f32 %v4080, %v1421
    %v4156 = vmul.f32 %v4080, %v1422
    %v4157 = vmul.f32 %v4080, %v1423
    %v4158 = vmul.f32 %v4080, %v1424
    %v4159 = vmul.f32 %v4080, %v1425
    %v4160 = vmul.f32 %v4080, %v1426
    %v4161 = vmul.f32 %v4080, %v1427
    %v4162 = vmul.f32 %v4080, %v1428
    %v4163 = vmul.f32 %v4080, %v1429
    %v4164 = vmul.f32 %v4080, %v1430
    %v4165 = vmul.f32 %v4080, %v1431
    %v4166 = vmul.f32 %v4080, %v1432
    %v4167 = vmul.f32 %v4080, %v1433
    %v4168 = vmul.f32 %v4080, %v1434
    %v4169 = vmul.f32 %v4080, %v1435
    %v4170 = vmul.f32 %v4080, %v1436
    %v4171 = vmul.f32 %v4080, %v1437
    %v4172 = vmul.f32 %v4080, %v1438
    %v4173 = vmul.f32 %v4080, %v1439
    %v4174 = vmul.f32 %v4080, %v1440
    %v4175 = vmul.f32 %v4080, %v1441
    %v4176 = vmul.f32 %v4080, %v1442
    %v4177 = vmul.f32 %v4080, %v1443
    %v4178 = vmul.f32 %v4080, %v1444
    %v4179 = vmul.f32 %v4080, %v1445
    %v4180 = vmul.f32 %v4080, %v1446
    %v4181 = vmul.f32 %v4080, %v1447
    %v4182 = vmul.f32 %v4080, %v1448
    %v4183 = vmul.f32 %v4080, %v1449
    %v4184 = vmul.f32 %v4080, %v1450
    %v4185 = vmul.f32 %v4080, %v1451
    %v4186 = vmul.f32 %v4080, %v1452
    %v4187 = vmul.f32 %v4080, %v1453
    %v4188 = vmul.f32 %v4080, %v1454
    %v4189 = vmul.f32 %v4080, %v1455
    %v4190 = vmul.f32 %v4080, %v1456
    %v4191 = vmul.f32 %v4080, %v1457
    %v4192 = vmul.f32 %v4080, %v1458
    %v4193 = vmul.f32 %v4080, %v1459
    %v4194 = vmul.f32 %v4080, %v1460
    %v4195 = vmul.f32 %v4080, %v1461
    %v4196 = vmul.f32 %v4080, %v1462
    %v4197 = vmul.f32 %v4080, %v1463
    %v4198 = vmul.f32 %v4080, %v1464
    %v4199 = vmul.f32 %v4080, %v1465
    %v4200 = vmul.f32 %v4080, %v1466
    %v4201 = vmul.f32 %v4080, %v1467
    %v4202 = vmul.f32 %v4080, %v1468
    %v4203 = vmul.f32 %v4080, %v1469
    %v4204 = vmul.f32 %v4080, %v1470
    %v4205 = vmul.f32 %v4080, %v1471
    %v4206 = vmul.f32 %v4080, %v1472
    %v4207 = vmul.f32 %v4080, %v1473
    %v4208 = vmul.f32 %v4080, %v1474
    %v4209 = vmul.f32 %v4080, %v1475
    %v4210 = vmul.f32 %v4080, %v1476
    %v4211 = vmul.f32 %v4080, %v1477
    %v4212 = vmul.f32 %v4080, %v1478
    %v4213 = vmul.f32 %v4080, %v1479
    %v4214 = vmul.f32 %v4080, %v1480
    %v4215 = vmul.f32 %v4080, %v1481
    %v4216 = vmul.f32 %v4080, %v1482
    %v4217 = vmul.f32 %v4080, %v1483
    %v4218 = vmul.f32 %v4080, %v1484
    %v4219 = vmul.f32 %v4080, %v1485
    %v4220 = vmul.f32 %v4080, %v1486
    %v4221 = vmul.f32 %v4080, %v1487
    %v4222 = vmul.f32 %v4080, %v1488
    %v4223 = vmul.f32 %v4080, %v1489
    %v4224 = vmul.f32 %v4080, %v1490
    %v4225 = vmul.f32 %v4080, %v1491
    %v4226 = vmul.f32 %v4080, %v1492
    %v4227 = vmul.f32 %v4080, %v1493
    %v4228 = vmul.f32 %v4080, %v1494
    %v4229 = vmul.f32 %v4080, %v1495
    %v4230 = vmul.f32 %v4080, %v1496
    %v4231 = vmul.f32 %v4080, %v1497
    %v4232 = vmul.f32 %v4080, %v1498
    %v4233 = vmul.f32 %v4080, %v1499
    %v4234 = vmul.f32 %v4080, %v1500
    %v4235 = vmul.f32 %v4080, %v1501
    %v4236 = vmul.f32 %v4080, %v1502
    %v4237 = vmul.f32 %v4080, %v1503
    %v4238 = vmul.f32 %v4080, %v1504
    %v4239 = vmul.f32 %v4080, %v1505
    %v4240 = vmul.f32 %v4080, %v1506
    %v4241 = vmul.f32 %v4080, %v1507
    %v4242 = vmul.f32 %v4080, %v1508
    %v4243 = vmul.f32 %v4080, %v1509
    %v4244 = vmul.f32 %v4080, %v1510
    %v4245 = vmul.f32 %v4080, %v1511
    %v4246 = vmul.f32 %v4080, %v1512
    %v4247 = vmul.f32 %v4080, %v1513
    %v4248 = vmul.f32 %v4080, %v1514
    %v4249 = vmul.f32 %v4080, %v1515
    %v4250 = vmul.f32 %v4080, %v1516
    %v4251 = vmul.f32 %v4080, %v1517
    %v4252 = vmul.f32 %v4080, %v1518
    %v4253 = vmul.f32 %v4080, %v1519
    %v4254 = vmul.f32 %v4080, %v1520
    %v4255 = vmul.f32 %v4080, %v1521
    %v4256 = vmul.f32 %v4080, %v1522
    %v4257 = vmul.f32 %v4080, %v1523
    %v4258 = vmul.f32 %v4080, %v1524
    %v4259 = vmul.f32 %v4080, %v1525
    %v4260 = vmul.f32 %v4080, %v1526
    %v4261 = vmul.f32 %v4080, %v1527
    %v4262 = vmul.f32 %v4080, %v1528
    %v4263 = vmul.f32 %v4080, %v1529
    %v4264 = vmul.f32 %v4080, %v1530
    %v4265 = vmul.f32 %v4080, %v1531
    %v4266 = vmul.f32 %v4080, %v1532
    %v4267 = vmul.f32 %v4080, %v1533
    %v4268 = vmul.f32 %v4080, %v1534
    %v4269 = vmul.f32 %v4080, %v1535
    %v4270 = vmul.f32 %v4080, %v1536
    %v4271 = vmul.f32 %v4080, %v1537
    %v4272 = vmul.f32 %v4080, %v1538
    %v4273 = vmul.f32 %v4080, %v1539
    %v4274 = vmul.f32 %v4080, %v1540
    %v4275 = vmul.f32 %v4080, %v1541
    %v4276 = vmul.f32 %v4080, %v1542
    %v4277 = vmul.f32 %v4080, %v1543
    %v4278 = vmul.f32 %v4080, %v1544
    %v4279 = vmul.f32 %v4080, %v1545
    %v4280 = vmul.f32 %v4080, %v1546
    %v4281 = vmul.f32 %v4080, %v1547
    %v4282 = vmul.f32 %v4080, %v1548
    %v4283 = vmul.f32 %v4080, %v1549
    %v4284 = vmul.f32 %v4080, %v1550
    %v4285 = vmul.f32 %v4080, %v1551
    %v4286 = vmul.f32 %v4080, %v1552
    %v4287 = vmul.f32 %v4080, %v1553
    %v4288 = vmul.f32 %v4080, %v1554
    %v4289 = vmul.f32 %v4080, %v1555
    %v4290 = vmul.f32 %v4080, %v1556
    %v4291 = vmul.f32 %v4080, %v1557
    %v4292 = vmul.f32 %v4080, %v1558
    %v4293 = vmul.f32 %v4080, %v1559
    %v4294 = vmul.f32 %v4080, %v1560
    %v4295 = vmul.f32 %v4080, %v1561
    %v4296 = vmul.f32 %v4080, %v1562
    %v4297 = vmul.f32 %v4080, %v1563
    %v4298 = vmul.f32 %v4080, %v1564
    %v4299 = vmul.f32 %v4080, %v1565
    %v4300 = vmul.f32 %v4080, %v1566
    %v4301 = vmul.f32 %v4080, %v1567
    %v4302 = vmul.f32 %v4080, %v1568
    %v4303 = vmul.f32 %v4080, %v1569
    %v4304 = vmul.f32 %v4080, %v1570
    %v4305 = vmul.f32 %v4080, %v1571
    %v4306 = vmul.f32 %v4080, %v1572
    %v4307 = vmul.f32 %v4080, %v1573
    %v4308 = vmul.f32 %v4080, %v1574
    %v4309 = vmul.f32 %v4080, %v1575
    %v4310 = vmul.f32 %v4080, %v1576
    %v4311 = vmul.f32 %v4080, %v1577
    %v4312 = vmul.f32 %v4080, %v1578
    %v4313 = vmul.f32 %v4080, %v1579
    %v4314 = vmul.f32 %v4080, %v1580
    %v4315 = vmul.f32 %v4080, %v1581
    %v4316 = vmul.f32 %v4080, %v1582
    %v4317 = vmul.f32 %v4080, %v1583
    %v4318 = vmul.f32 %v4080, %v1584
    %v4319 = vmul.f32 %v4080, %v1585
    %v4320 = vmul.f32 %v4080, %v1586
    %v4321 = vmul.f32 %v4080, %v1587
    %v4322 = vmul.f32 %v4080, %v1588
    %v4323 = vmul.f32 %v4080, %v1589
    %v4324 = vmul.f32 %v4080, %v1590
    %v4325 = vmul.f32 %v4080, %v1591
    %v4326 = vmul.f32 %v4080, %v1592
    %v4327 = vmul.f32 %v4080, %v1593
    %v4328 = vmul.f32 %v4080, %v1594
    %v4329 = vmul.f32 %v4080, %v1595
    %v4330 = vmul.f32 %v4080, %v1596
    %v4331 = vmul.f32 %v4080, %v1597
    %v4332 = vmul.f32 %v4080, %v1598
    %v4333 = vmul.f32 %v4080, %v1599
    %v4334 = vmul.f32 %v4080, %v1600
    %v4335 = vmul.f32 %v4080, %v1601
    %v4336 = vmul.f32 %v4080, %v1602
    %v4337 = vadd.f32 %v3820, %v4081
    %v4338 = vadd.f32 %v3821, %v4082
    %v4339 = vadd.f32 %v3822, %v4083
    %v4340 = vadd.f32 %v3823, %v4084
    %v4341 = vadd.f32 %v3824, %v4085
    %v4342 = vadd.f32 %v3825, %v4086
    %v4343 = vadd.f32 %v3826, %v4087
    %v4344 = vadd.f32 %v3827, %v4088
    %v4345 = vadd.f32 %v3828, %v4089
    %v4346 = vadd.f32 %v3829, %v4090
    %v4347 = vadd.f32 %v3830, %v4091
    %v4348 = vadd.f32 %v3831, %v4092
    %v4349 = vadd.f32 %v3832, %v4093
    %v4350 = vadd.f32 %v3833, %v4094
    %v4351 = vadd.f32 %v3834, %v4095
    %v4352 = vadd.f32 %v3835, %v4096
    %v4353 = vadd.f32 %v3836, %v4097
    %v4354 = vadd.f32 %v3837, %v4098
    %v4355 = vadd.f32 %v3838, %v4099
    %v4356 = vadd.f32 %v3839, %v4100
    %v4357 = vadd.f32 %v3840, %v4101
    %v4358 = vadd.f32 %v3841, %v4102
    %v4359 = vadd.f32 %v3842, %v4103
    %v4360 = vadd.f32 %v3843, %v4104
    %v4361 = vadd.f32 %v3844, %v4105
    %v4362 = vadd.f32 %v3845, %v4106
    %v4363 = vadd.f32 %v3846, %v4107
    %v4364 = vadd.f32 %v3847, %v4108
    %v4365 = vadd.f32 %v3848, %v4109
    %v4366 = vadd.f32 %v3849, %v4110
    %v4367 = vadd.f32 %v3850, %v4111
    %v4368 = vadd.f32 %v3851, %v4112
    %v4369 = vadd.f32 %v3852, %v4113
    %v4370 = vadd.f32 %v3853, %v4114
    %v4371 = vadd.f32 %v3854, %v4115
    %v4372 = vadd.f32 %v3855, %v4116
    %v4373 = vadd.f32 %v3856, %v4117
    %v4374 = vadd.f32 %v3857, %v4118
    %v4375 = vadd.f32 %v3858, %v4119
    %v4376 = vadd.f32 %v3859, %v4120
    %v4377 = vadd.f32 %v3860, %v4121
    %v4378 = vadd.f32 %v3861, %v4122
    %v4379 = vadd.f32 %v3862, %v4123
    %v4380 = vadd.f32 %v3863, %v4124
    %v4381 = vadd.f32 %v3864, %v4125
    %v4382 = vadd.f32 %v3865, %v4126
    %v4383 = vadd.f32 %v3866, %v4127
    %v4384 = vadd.f32 %v3867, %v4128
    %v4385 = vadd.f32 %v3868, %v4129
    %v4386 = vadd.f32 %v3869, %v4130
    %v4387 = vadd.f32 %v3870, %v4131
    %v4388 = vadd.f32 %v3871, %v4132
    %v4389 = vadd.f32 %v3872, %v4133
    %v4390 = vadd.f32 %v3873, %v4134
    %v4391 = vadd.f32 %v3874, %v4135
    %v4392 = vadd.f32 %v3875, %v4136
    %v4393 = vadd.f32 %v3876, %v4137
    %v4394 = vadd.f32 %v3877, %v4138
    %v4395 = vadd.f32 %v3878, %v4139
    %v4396 = vadd.f32 %v3879, %v4140
    %v4397 = vadd.f32 %v3880, %v4141
    %v4398 = vadd.f32 %v3881, %v4142
    %v4399 = vadd.f32 %v3882, %v4143
    %v4400 = vadd.f32 %v3883, %v4144
    %v4401 = vadd.f32 %v3884, %v4145
    %v4402 = vadd.f32 %v3885, %v4146
    %v4403 = vadd.f32 %v3886, %v4147
    %v4404 = vadd.f32 %v3887, %v4148
    %v4405 = vadd.f32 %v3888, %v4149
    %v4406 = vadd.f32 %v3889, %v4150
    %v4407 = vadd.f32 %v3890, %v4151
    %v4408 = vadd.f32 %v3891, %v4152
    %v4409 = vadd.f32 %v3892, %v4153
    %v4410 = vadd.f32 %v3893, %v4154
    %v4411 = vadd.f32 %v3894, %v4155
    %v4412 = vadd.f32 %v3895, %v4156
    %v4413 = vadd.f32 %v3896, %v4157
    %v4414 = vadd.f32 %v3897, %v4158
    %v4415 = vadd.f32 %v3898, %v4159
    %v4416 = vadd.f32 %v3899, %v4160
    %v4417 = vadd.f32 %v3900, %v4161
    %v4418 = vadd.f32 %v3901, %v4162
    %v4419 = vadd.f32 %v3902, %v4163
    %v4420 = vadd.f32 %v3903, %v4164
    %v4421 = vadd.f32 %v3904, %v4165
    %v4422 = vadd.f32 %v3905, %v4166
    %v4423 = vadd.f32 %v3906, %v4167
    %v4424 = vadd.f32 %v3907, %v4168
    %v4425 = vadd.f32 %v3908, %v4169
    %v4426 = vadd.f32 %v3909, %v4170
    %v4427 = vadd.f32 %v3910, %v4171
    %v4428 = vadd.f32 %v3911, %v4172
    %v4429 = vadd.f32 %v3912, %v4173
    %v4430 = vadd.f32 %v3913, %v4174
    %v4431 = vadd.f32 %v3914, %v4175
    %v4432 = vadd.f32 %v3915, %v4176
    %v4433 = vadd.f32 %v3916, %v4177
    %v4434 = vadd.f32 %v3917, %v4178
    %v4435 = vadd.f32 %v3918, %v4179
    %v4436 = vadd.f32 %v3919, %v4180
    %v4437 = vadd.f32 %v3920, %v4181
    %v4438 = vadd.f32 %v3921, %v4182
    %v4439 = vadd.f32 %v3922, %v4183
    %v4440 = vadd.f32 %v3923, %v4184
    %v4441 = vadd.f32 %v3924, %v4185
    %v4442 = vadd.f32 %v3925, %v4186
    %v4443 = vadd.f32 %v3926, %v4187
    %v4444 = vadd.f32 %v3927, %v4188
    %v4445 = vadd.f32 %v3928, %v4189
    %v4446 = vadd.f32 %v3929, %v4190
    %v4447 = vadd.f32 %v3930, %v4191
    %v4448 = vadd.f32 %v3931, %v4192
    %v4449 = vadd.f32 %v3932, %v4193
    %v4450 = vadd.f32 %v3933, %v4194
    %v4451 = vadd.f32 %v3934, %v4195
    %v4452 = vadd.f32 %v3935, %v4196
    %v4453 = vadd.f32 %v3936, %v4197
    %v4454 = vadd.f32 %v3937, %v4198
    %v4455 = vadd.f32 %v3938, %v4199
    %v4456 = vadd.f32 %v3939, %v4200
    %v4457 = vadd.f32 %v3940, %v4201
    %v4458 = vadd.f32 %v3941, %v4202
    %v4459 = vadd.f32 %v3942, %v4203
    %v4460 = vadd.f32 %v3943, %v4204
    %v4461 = vadd.f32 %v3944, %v4205
    %v4462 = vadd.f32 %v3945, %v4206
    %v4463 = vadd.f32 %v3946, %v4207
    %v4464 = vadd.f32 %v3947, %v4208
    %v4465 = vadd.f32 %v3948, %v4209
    %v4466 = vadd.f32 %v3949, %v4210
    %v4467 = vadd.f32 %v3950, %v4211
    %v4468 = vadd.f32 %v3951, %v4212
    %v4469 = vadd.f32 %v3952, %v4213
    %v4470 = vadd.f32 %v3953, %v4214
    %v4471 = vadd.f32 %v3954, %v4215
    %v4472 = vadd.f32 %v3955, %v4216
    %v4473 = vadd.f32 %v3956, %v4217
    %v4474 = vadd.f32 %v3957, %v4218
    %v4475 = vadd.f32 %v3958, %v4219
    %v4476 = vadd.f32 %v3959, %v4220
    %v4477 = vadd.f32 %v3960, %v4221
    %v4478 = vadd.f32 %v3961, %v4222
    %v4479 = vadd.f32 %v3962, %v4223
    %v4480 = vadd.f32 %v3963, %v4224
    %v4481 = vadd.f32 %v3964, %v4225
    %v4482 = vadd.f32 %v3965, %v4226
    %v4483 = vadd.f32 %v3966, %v4227
    %v4484 = vadd.f32 %v3967, %v4228
    %v4485 = vadd.f32 %v3968, %v4229
    %v4486 = vadd.f32 %v3969, %v4230
    %v4487 = vadd.f32 %v3970, %v4231
    %v4488 = vadd.f32 %v3971, %v4232
    %v4489 = vadd.f32 %v3972, %v4233
    %v4490 = vadd.f32 %v3973, %v4234
    %v4491 = vadd.f32 %v3974, %v4235
    %v4492 = vadd.f32 %v3975, %v4236
    %v4493 = vadd.f32 %v3976, %v4237
    %v4494 = vadd.f32 %v3977, %v4238
    %v4495 = vadd.f32 %v3978, %v4239
    %v4496 = vadd.f32 %v3979, %v4240
    %v4497 = vadd.f32 %v3980, %v4241
    %v4498 = vadd.f32 %v3981, %v4242
    %v4499 = vadd.f32 %v3982, %v4243
    %v4500 = vadd.f32 %v3983, %v4244
    %v4501 = vadd.f32 %v3984, %v4245
    %v4502 = vadd.f32 %v3985, %v4246
    %v4503 = vadd.f32 %v3986, %v4247
    %v4504 = vadd.f32 %v3987, %v4248
    %v4505 = vadd.f32 %v3988, %v4249
    %v4506 = vadd.f32 %v3989, %v4250
    %v4507 = vadd.f32 %v3990, %v4251
    %v4508 = vadd.f32 %v3991, %v4252
    %v4509 = vadd.f32 %v3992, %v4253
    %v4510 = vadd.f32 %v3993, %v4254
    %v4511 = vadd.f32 %v3994, %v4255
    %v4512 = vadd.f32 %v3995, %v4256
    %v4513 = vadd.f32 %v3996, %v4257
    %v4514 = vadd.f32 %v3997, %v4258
    %v4515 = vadd.f32 %v3998, %v4259
    %v4516 = vadd.f32 %v3999, %v4260
    %v4517 = vadd.f32 %v4000, %v4261
    %v4518 = vadd.f32 %v4001, %v4262
    %v4519 = vadd.f32 %v4002, %v4263
    %v4520 = vadd.f32 %v4003, %v4264
    %v4521 = vadd.f32 %v4004, %v4265
    %v4522 = vadd.f32 %v4005, %v4266
    %v4523 = vadd.f32 %v4006, %v4267
    %v4524 = vadd.f32 %v4007, %v4268
    %v4525 = vadd.f32 %v4008, %v4269
    %v4526 = vadd.f32 %v4009, %v4270
    %v4527 = vadd.f32 %v4010, %v4271
    %v4528 = vadd.f32 %v4011, %v4272
    %v4529 = vadd.f32 %v4012, %v4273
    %v4530 = vadd.f32 %v4013, %v4274
    %v4531 = vadd.f32 %v4014, %v4275
    %v4532 = vadd.f32 %v4015, %v4276
    %v4533 = vadd.f32 %v4016, %v4277
    %v4534 = vadd.f32 %v4017, %v4278
    %v4535 = vadd.f32 %v4018, %v4279
    %v4536 = vadd.f32 %v4019, %v4280
    %v4537 = vadd.f32 %v4020, %v4281
    %v4538 = vadd.f32 %v4021, %v4282
    %v4539 = vadd.f32 %v4022, %v4283
    %v4540 = vadd.f32 %v4023, %v4284
    %v4541 = vadd.f32 %v4024, %v4285
    %v4542 = vadd.f32 %v4025, %v4286
    %v4543 = vadd.f32 %v4026, %v4287
    %v4544 = vadd.f32 %v4027, %v4288
    %v4545 = vadd.f32 %v4028, %v4289
    %v4546 = vadd.f32 %v4029, %v4290
    %v4547 = vadd.f32 %v4030, %v4291
    %v4548 = vadd.f32 %v4031, %v4292
    %v4549 = vadd.f32 %v4032, %v4293
    %v4550 = vadd.f32 %v4033, %v4294
    %v4551 = vadd.f32 %v4034, %v4295
    %v4552 = vadd.f32 %v4035, %v4296
    %v4553 = vadd.f32 %v4036, %v4297
    %v4554 = vadd.f32 %v4037, %v4298
    %v4555 = vadd.f32 %v4038, %v4299
    %v4556 = vadd.f32 %v4039, %v4300
    %v4557 = vadd.f32 %v4040, %v4301
    %v4558 = vadd.f32 %v4041, %v4302
    %v4559 = vadd.f32 %v4042, %v4303
    %v4560 = vadd.f32 %v4043, %v4304
    %v4561 = vadd.f32 %v4044, %v4305
    %v4562 = vadd.f32 %v4045, %v4306
    %v4563 = vadd.f32 %v4046, %v4307
    %v4564 = vadd.f32 %v4047, %v4308
    %v4565 = vadd.f32 %v4048, %v4309
    %v4566 = vadd.f32 %v4049, %v4310
    %v4567 = vadd.f32 %v4050, %v4311
    %v4568 = vadd.f32 %v4051, %v4312
    %v4569 = vadd.f32 %v4052, %v4313
    %v4570 = vadd.f32 %v4053, %v4314
    %v4571 = vadd.f32 %v4054, %v4315
    %v4572 = vadd.f32 %v4055, %v4316
    %v4573 = vadd.f32 %v4056, %v4317
    %v4574 = vadd.f32 %v4057, %v4318
    %v4575 = vadd.f32 %v4058, %v4319
    %v4576 = vadd.f32 %v4059, %v4320
    %v4577 = vadd.f32 %v4060, %v4321
    %v4578 = vadd.f32 %v4061, %v4322
    %v4579 = vadd.f32 %v4062, %v4323
    %v4580 = vadd.f32 %v4063, %v4324
    %v4581 = vadd.f32 %v4064, %v4325
    %v4582 = vadd.f32 %v4065, %v4326
    %v4583 = vadd.f32 %v4066, %v4327
    %v4584 = vadd.f32 %v4067, %v4328
    %v4585 = vadd.f32 %v4068, %v4329
    %v4586 = vadd.f32 %v4069, %v4330
    %v4587 = vadd.f32 %v4070, %v4331
    %v4588 = vadd.f32 %v4071, %v4332
    %v4589 = vadd.f32 %v4072, %v4333
    %v4590 = vadd.f32 %v4073, %v4334
    %v4591 = vadd.f32 %v4074, %v4335
    %v4592 = vadd.f32 %v4075, %v4336
    %v4593 = vmul.f32 %v3811, %v3814
    %v4594 = vlaneseq
    %v4595 = vshrl.u32 %v4594, 7
    %v4596 = vsub.s32 0, %v4595
    %v4597 = vrot.slane %v4593, %v4596
    %v4598 = vmul.f32 %v4597, %v2574
    %v4599 = vmul.f32 %v4597, %v2575
    %v4600 = vmul.f32 %v4597, %v2576
    %v4601 = vmul.f32 %v4597, %v2577
    %v4602 = vmul.f32 %v4597, %v2578
    %v4603 = vmul.f32 %v4597, %v2579
    %v4604 = vmul.f32 %v4597, %v2580
    %v4605 = vmul.f32 %v4597, %v2581
    %v4606 = vmul.f32 %v4597, %v2582
    %v4607 = vmul.f32 %v4597, %v2583
    %v4608 = vmul.f32 %v4597, %v2584
    %v4609 = vmul.f32 %v4597, %v2585
    %v4610 = vmul.f32 %v4597, %v2586
    %v4611 = vmul.f32 %v4597, %v2587
    %v4612 = vmul.f32 %v4597, %v2588
    %v4613 = vmul.f32 %v4597, %v2589
    %v4614 = vmul.f32 %v4597, %v2590
    %v4615 = vmul.f32 %v4597, %v2591
    %v4616 = vmul.f32 %v4597, %v2592
    %v4617 = vmul.f32 %v4597, %v2593
    %v4618 = vmul.f32 %v4597, %v2594
    %v4619 = vmul.f32 %v4597, %v2595
    %v4620 = vmul.f32 %v4597, %v2596
    %v4621 = vmul.f32 %v4597, %v2597
    %v4622 = vmul.f32 %v4597, %v2598
    %v4623 = vmul.f32 %v4597, %v2599
    %v4624 = vmul.f32 %v4597, %v2600
    %v4625 = vmul.f32 %v4597, %v2601
    %v4626 = vmul.f32 %v4597, %v2602
    %v4627 = vmul.f32 %v4597, %v2603
    %v4628 = vmul.f32 %v4597, %v2604
    %v4629 = vmul.f32 %v4597, %v2605
    %v4630 = vmul.f32 %v4597, %v2606
    %v4631 = vmul.f32 %v4597, %v2607
    %v4632 = vmul.f32 %v4597, %v2608
    %v4633 = vmul.f32 %v4597, %v2609
    %v4634 = vmul.f32 %v4597, %v2610
    %v4635 = vmul.f32 %v4597, %v2611
    %v4636 = vmul.f32 %v4597, %v2612
    %v4637 = vmul.f32 %v4597, %v2613
    %v4638 = vmul.f32 %v4597, %v2614
    %v4639 = vmul.f32 %v4597, %v2615
    %v4640 = vmul.f32 %v4597, %v2616
    %v4641 = vmul.f32 %v4597, %v2617
    %v4642 = vmul.f32 %v4597, %v2618
    %v4643 = vmul.f32 %v4597, %v2619
    %v4644 = vmul.f32 %v4597, %v2620
    %v4645 = vmul.f32 %v4597, %v2621
    %v4646 = vmul.f32 %v4597, %v2622
    %v4647 = vmul.f32 %v4597, %v2623
    %v4648 = vmul.f32 %v4597, %v2624
    %v4649 = vmul.f32 %v4597, %v2625
    %v4650 = vmul.f32 %v4597, %v2626
    %v4651 = vmul.f32 %v4597, %v2627
    %v4652 = vmul.f32 %v4597, %v2628
    %v4653 = vmul.f32 %v4597, %v2629
    %v4654 = vmul.f32 %v4597, %v2630
    %v4655 = vmul.f32 %v4597, %v2631
    %v4656 = vmul.f32 %v4597, %v2632
    %v4657 = vmul.f32 %v4597, %v2633
    %v4658 = vmul.f32 %v4597, %v2634
    %v4659 = vmul.f32 %v4597, %v2635
    %v4660 = vmul.f32 %v4597, %v2636
    %v4661 = vmul.f32 %v4597, %v2637
    %v4662 = vmul.f32 %v4597, %v2638
    %v4663 = vmul.f32 %v4597, %v2639
    %v4664 = vmul.f32 %v4597, %v2640
    %v4665 = vmul.f32 %v4597, %v2641
    %v4666 = vmul.f32 %v4597, %v2642
    %v4667 = vmul.f32 %v4597, %v2643
    %v4668 = vmul.f32 %v4597, %v2644
    %v4669 = vmul.f32 %v4597, %v2645
    %v4670 = vmul.f32 %v4597, %v2646
    %v4671 = vmul.f32 %v4597, %v2647
    %v4672 = vmul.f32 %v4597, %v2648
    %v4673 = vmul.f32 %v4597, %v2649
    %v4674 = vmul.f32 %v4597, %v2650
    %v4675 = vmul.f32 %v4597, %v2651
    %v4676 = vmul.f32 %v4597, %v2652
    %v4677 = vmul.f32 %v4597, %v2653
    %v4678 = vmul.f32 %v4597, %v2654
    %v4679 = vmul.f32 %v4597, %v2655
    %v4680 = vmul.f32 %v4597, %v2656
    %v4681 = vmul.f32 %v4597, %v2657
    %v4682 = vmul.f32 %v4597, %v2658
    %v4683 = vmul.f32 %v4597, %v2659
    %v4684 = vmul.f32 %v4597, %v2660
    %v4685 = vmul.f32 %v4597, %v2661
    %v4686 = vmul.f32 %v4597, %v2662
    %v4687 = vmul.f32 %v4597, %v2663
    %v4688 = vmul.f32 %v4597, %v2664
    %v4689 = vmul.f32 %v4597, %v2665
    %v4690 = vmul.f32 %v4597, %v2666
    %v4691 = vmul.f32 %v4597, %v2667
    %v4692 = vmul.f32 %v4597, %v2668
    %v4693 = vmul.f32 %v4597, %v2669
    %v4694 = vmul.f32 %v4597, %v2670
    %v4695 = vmul.f32 %v4597, %v2671
    %v4696 = vmul.f32 %v4597, %v2672
    %v4697 = vmul.f32 %v4597, %v2673
    %v4698 = vmul.f32 %v4597, %v2674
    %v4699 = vmul.f32 %v4597, %v2675
    %v4700 = vmul.f32 %v4597, %v2676
    %v4701 = vmul.f32 %v4597, %v2677
    %v4702 = vmul.f32 %v4597, %v2678
    %v4703 = vmul.f32 %v4597, %v2679
    %v4704 = vmul.f32 %v4597, %v2680
    %v4705 = vmul.f32 %v4597, %v2681
    %v4706 = vmul.f32 %v4597, %v2682
    %v4707 = vmul.f32 %v4597, %v2683
    %v4708 = vmul.f32 %v4597, %v2684
    %v4709 = vmul.f32 %v4597, %v2685
    %v4710 = vmul.f32 %v4597, %v2686
    %v4711 = vmul.f32 %v4597, %v2687
    %v4712 = vmul.f32 %v4597, %v2688
    %v4713 = vmul.f32 %v4597, %v2689
    %v4714 = vmul.f32 %v4597, %v2690
    %v4715 = vmul.f32 %v4597, %v2691
    %v4716 = vmul.f32 %v4597, %v2692
    %v4717 = vmul.f32 %v4597, %v2693
    %v4718 = vmul.f32 %v4597, %v2694
    %v4719 = vmul.f32 %v4597, %v2695
    %v4720 = vmul.f32 %v4597, %v2696
    %v4721 = vmul.f32 %v4597, %v2697
    %v4722 = vmul.f32 %v4597, %v2698
    %v4723 = vmul.f32 %v4597, %v2699
    %v4724 = vmul.f32 %v4597, %v2700
    %v4725 = vmul.f32 %v4597, %v2701
    %v4726 = vmul.f32 %v4597, %v2702
    %v4727 = vmul.f32 %v4597, %v2703
    %v4728 = vmul.f32 %v4597, %v2704
    %v4729 = vmul.f32 %v4597, %v2705
    %v4730 = vmul.f32 %v4597, %v2706
    %v4731 = vmul.f32 %v4597, %v2707
    %v4732 = vmul.f32 %v4597, %v2708
    %v4733 = vmul.f32 %v4597, %v2709
    %v4734 = vmul.f32 %v4597, %v2710
    %v4735 = vmul.f32 %v4597, %v2711
    %v4736 = vmul.f32 %v4597, %v2712
    %v4737 = vmul.f32 %v4597, %v2713
    %v4738 = vmul.f32 %v4597, %v2714
    %v4739 = vmul.f32 %v4597, %v2715
    %v4740 = vmul.f32 %v4597, %v2716
    %v4741 = vmul.f32 %v4597, %v2717
    %v4742 = vmul.f32 %v4597, %v2718
    %v4743 = vmul.f32 %v4597, %v2719
    %v4744 = vmul.f32 %v4597, %v2720
    %v4745 = vmul.f32 %v4597, %v2721
    %v4746 = vmul.f32 %v4597, %v2722
    %v4747 = vmul.f32 %v4597, %v2723
    %v4748 = vmul.f32 %v4597, %v2724
    %v4749 = vmul.f32 %v4597, %v2725
    %v4750 = vmul.f32 %v4597, %v2726
    %v4751 = vmul.f32 %v4597, %v2727
    %v4752 = vmul.f32 %v4597, %v2728
    %v4753 = vmul.f32 %v4597, %v2729
    %v4754 = vmul.f32 %v4597, %v2730
    %v4755 = vmul.f32 %v4597, %v2731
    %v4756 = vmul.f32 %v4597, %v2732
    %v4757 = vmul.f32 %v4597, %v2733
    %v4758 = vmul.f32 %v4597, %v2734
    %v4759 = vmul.f32 %v4597, %v2735
    %v4760 = vmul.f32 %v4597, %v2736
    %v4761 = vmul.f32 %v4597, %v2737
    %v4762 = vmul.f32 %v4597, %v2738
    %v4763 = vmul.f32 %v4597, %v2739
    %v4764 = vmul.f32 %v4597, %v2740
    %v4765 = vmul.f32 %v4597, %v2741
    %v4766 = vmul.f32 %v4597, %v2742
    %v4767 = vmul.f32 %v4597, %v2743
    %v4768 = vmul.f32 %v4597, %v2744
    %v4769 = vmul.f32 %v4597, %v2745
    %v4770 = vmul.f32 %v4597, %v2746
    %v4771 = vmul.f32 %v4597, %v2747
    %v4772 = vmul.f32 %v4597, %v2748
    %v4773 = vmul.f32 %v4597, %v2749
    %v4774 = vmul.f32 %v4597, %v2750
    %v4775 = vmul.f32 %v4597, %v2751
    %v4776 = vmul.f32 %v4597, %v2752
    %v4777 = vmul.f32 %v4597, %v2753
    %v4778 = vmul.f32 %v4597, %v2754
    %v4779 = vmul.f32 %v4597, %v2755
    %v4780 = vmul.f32 %v4597, %v2756
    %v4781 = vmul.f32 %v4597, %v2757
    %v4782 = vmul.f32 %v4597, %v2758
    %v4783 = vmul.f32 %v4597, %v2759
    %v4784 = vmul.f32 %v4597, %v2760
    %v4785 = vmul.f32 %v4597, %v2761
    %v4786 = vmul.f32 %v4597, %v2762
    %v4787 = vmul.f32 %v4597, %v2763
    %v4788 = vmul.f32 %v4597, %v2764
    %v4789 = vmul.f32 %v4597, %v2765
    %v4790 = vmul.f32 %v4597, %v2766
    %v4791 = vmul.f32 %v4597, %v2767
    %v4792 = vmul.f32 %v4597, %v2768
    %v4793 = vmul.f32 %v4597, %v2769
    %v4794 = vmul.f32 %v4597, %v2770
    %v4795 = vmul.f32 %v4597, %v2771
    %v4796 = vmul.f32 %v4597, %v2772
    %v4797 = vmul.f32 %v4597, %v2773
    %v4798 = vmul.f32 %v4597, %v2774
    %v4799 = vmul.f32 %v4597, %v2775
    %v4800 = vmul.f32 %v4597, %v2776
    %v4801 = vmul.f32 %v4597, %v2777
    %v4802 = vmul.f32 %v4597, %v2778
    %v4803 = vmul.f32 %v4597, %v2779
    %v4804 = vmul.f32 %v4597, %v2780
    %v4805 = vmul.f32 %v4597, %v2781
    %v4806 = vmul.f32 %v4597, %v2782
    %v4807 = vmul.f32 %v4597, %v2783
    %v4808 = vmul.f32 %v4597, %v2784
    %v4809 = vmul.f32 %v4597, %v2785
    %v4810 = vmul.f32 %v4597, %v2786
    %v4811 = vmul.f32 %v4597, %v2787
    %v4812 = vmul.f32 %v4597, %v2788
    %v4813 = vmul.f32 %v4597, %v2789
    %v4814 = vmul.f32 %v4597, %v2790
    %v4815 = vmul.f32 %v4597, %v2791
    %v4816 = vmul.f32 %v4597, %v2792
    %v4817 = vmul.f32 %v4597, %v2793
    %v4818 = vmul.f32 %v4597, %v2794
    %v4819 = vmul.f32 %v4597, %v2795
    %v4820 = vmul.f32 %v4597, %v2796
    %v4821 = vmul.f32 %v4597, %v2797
    %v4822 = vmul.f32 %v4597, %v2798
    %v4823 = vmul.f32 %v4597, %v2799
    %v4824 = vmul.f32 %v4597, %v2800
    %v4825 = vmul.f32 %v4597, %v2801
    %v4826 = vmul.f32 %v4597, %v2802
    %v4827 = vmul.f32 %v4597, %v2803
    %v4828 = vmul.f32 %v4597, %v2804
    %v4829 = vmul.f32 %v4597, %v2805
    %v4830 = vmul.f32 %v4597, %v2806
    %v4831 = vmul.f32 %v4597, %v2807
    %v4832 = vmul.f32 %v4597, %v2808
    %v4833 = vmul.f32 %v4597, %v2809
    %v4834 = vmul.f32 %v4597, %v2810
    %v4835 = vmul.f32 %v4597, %v2811
    %v4836 = vmul.f32 %v4597, %v2812
    %v4837 = vmul.f32 %v4597, %v2813
    %v4838 = vmul.f32 %v4597, %v2814
    %v4839 = vmul.f32 %v4597, %v2815
    %v4840 = vmul.f32 %v4597, %v2816
    %v4841 = vmul.f32 %v4597, %v2817
    %v4842 = vmul.f32 %v4597, %v2818
    %v4843 = vmul.f32 %v4597, %v2819
    %v4844 = vmul.f32 %v4597, %v2820
    %v4845 = vmul.f32 %v4597, %v2821
    %v4846 = vmul.f32 %v4597, %v2822
    %v4847 = vmul.f32 %v4597, %v2823
    %v4848 = vmul.f32 %v4597, %v2824
    %v4849 = vmul.f32 %v4597, %v2825
    %v4850 = vmul.f32 %v4597, %v2826
    %v4851 = vmul.f32 %v4597, %v2827
    %v4852 = vmul.f32 %v4597, %v2828
    %v4853 = vmul.f32 %v4597, %v2829
    %v4854 = vadd.f32 %v4337, %v4598
    %v4855 = vadd.f32 %v4338, %v4599
    %v4856 = vadd.f32 %v4339, %v4600
    %v4857 = vadd.f32 %v4340, %v4601
    %v4858 = vadd.f32 %v4341, %v4602
    %v4859 = vadd.f32 %v4342, %v4603
    %v4860 = vadd.f32 %v4343, %v4604
    %v4861 = vadd.f32 %v4344, %v4605
    %v4862 = vadd.f32 %v4345, %v4606
    %v4863 = vadd.f32 %v4346, %v4607
    %v4864 = vadd.f32 %v4347, %v4608
    %v4865 = vadd.f32 %v4348, %v4609
    %v4866 = vadd.f32 %v4349, %v4610
    %v4867 = vadd.f32 %v4350, %v4611
    %v4868 = vadd.f32 %v4351, %v4612
    %v4869 = vadd.f32 %v4352, %v4613
    %v4870 = vadd.f32 %v4353, %v4614
    %v4871 = vadd.f32 %v4354, %v4615
    %v4872 = vadd.f32 %v4355, %v4616
    %v4873 = vadd.f32 %v4356, %v4617
    %v4874 = vadd.f32 %v4357, %v4618
    %v4875 = vadd.f32 %v4358, %v4619
    %v4876 = vadd.f32 %v4359, %v4620
    %v4877 = vadd.f32 %v4360, %v4621
    %v4878 = vadd.f32 %v4361, %v4622
    %v4879 = vadd.f32 %v4362, %v4623
    %v4880 = vadd.f32 %v4363, %v4624
    %v4881 = vadd.f32 %v4364, %v4625
    %v4882 = vadd.f32 %v4365, %v4626
    %v4883 = vadd.f32 %v4366, %v4627
    %v4884 = vadd.f32 %v4367, %v4628
    %v4885 = vadd.f32 %v4368, %v4629
    %v4886 = vadd.f32 %v4369, %v4630
    %v4887 = vadd.f32 %v4370, %v4631
    %v4888 = vadd.f32 %v4371, %v4632
    %v4889 = vadd.f32 %v4372, %v4633
    %v4890 = vadd.f32 %v4373, %v4634
    %v4891 = vadd.f32 %v4374, %v4635
    %v4892 = vadd.f32 %v4375, %v4636
    %v4893 = vadd.f32 %v4376, %v4637
    %v4894 = vadd.f32 %v4377, %v4638
    %v4895 = vadd.f32 %v4378, %v4639
    %v4896 = vadd.f32 %v4379, %v4640
    %v4897 = vadd.f32 %v4380, %v4641
    %v4898 = vadd.f32 %v4381, %v4642
    %v4899 = vadd.f32 %v4382, %v4643
    %v4900 = vadd.f32 %v4383, %v4644
    %v4901 = vadd.f32 %v4384, %v4645
    %v4902 = vadd.f32 %v4385, %v4646
    %v4903 = vadd.f32 %v4386, %v4647
    %v4904 = vadd.f32 %v4387, %v4648
    %v4905 = vadd.f32 %v4388, %v4649
    %v4906 = vadd.f32 %v4389, %v4650
    %v4907 = vadd.f32 %v4390, %v4651
    %v4908 = vadd.f32 %v4391, %v4652
    %v4909 = vadd.f32 %v4392, %v4653
    %v4910 = vadd.f32 %v4393, %v4654
    %v4911 = vadd.f32 %v4394, %v4655
    %v4912 = vadd.f32 %v4395, %v4656
    %v4913 = vadd.f32 %v4396, %v4657
    %v4914 = vadd.f32 %v4397, %v4658
    %v4915 = vadd.f32 %v4398, %v4659
    %v4916 = vadd.f32 %v4399, %v4660
    %v4917 = vadd.f32 %v4400, %v4661
    %v4918 = vadd.f32 %v4401, %v4662
    %v4919 = vadd.f32 %v4402, %v4663
    %v4920 = vadd.f32 %v4403, %v4664
    %v4921 = vadd.f32 %v4404, %v4665
    %v4922 = vadd.f32 %v4405, %v4666
    %v4923 = vadd.f32 %v4406, %v4667
    %v4924 = vadd.f32 %v4407, %v4668
    %v4925 = vadd.f32 %v4408, %v4669
    %v4926 = vadd.f32 %v4409, %v4670
    %v4927 = vadd.f32 %v4410, %v4671
    %v4928 = vadd.f32 %v4411, %v4672
    %v4929 = vadd.f32 %v4412, %v4673
    %v4930 = vadd.f32 %v4413, %v4674
    %v4931 = vadd.f32 %v4414, %v4675
    %v4932 = vadd.f32 %v4415, %v4676
    %v4933 = vadd.f32 %v4416, %v4677
    %v4934 = vadd.f32 %v4417, %v4678
    %v4935 = vadd.f32 %v4418, %v4679
    %v4936 = vadd.f32 %v4419, %v4680
    %v4937 = vadd.f32 %v4420, %v4681
    %v4938 = vadd.f32 %v4421, %v4682
    %v4939 = vadd.f32 %v4422, %v4683
    %v4940 = vadd.f32 %v4423, %v4684
    %v4941 = vadd.f32 %v4424, %v4685
    %v4942 = vadd.f32 %v4425, %v4686
    %v4943 = vadd.f32 %v4426, %v4687
    %v4944 = vadd.f32 %v4427, %v4688
    %v4945 = vadd.f32 %v4428, %v4689
    %v4946 = vadd.f32 %v4429, %v4690
    %v4947 = vadd.f32 %v4430, %v4691
    %v4948 = vadd.f32 %v4431, %v4692
    %v4949 = vadd.f32 %v4432, %v4693
    %v4950 = vadd.f32 %v4433, %v4694
    %v4951 = vadd.f32 %v4434, %v4695
    %v4952 = vadd.f32 %v4435, %v4696
    %v4953 = vadd.f32 %v4436, %v4697
    %v4954 = vadd.f32 %v4437, %v4698
    %v4955 = vadd.f32 %v4438, %v4699
    %v4956 = vadd.f32 %v4439, %v4700
    %v4957 = vadd.f32 %v4440, %v4701
    %v4958 = vadd.f32 %v4441, %v4702
    %v4959 = vadd.f32 %v4442, %v4703
    %v4960 = vadd.f32 %v4443, %v4704
    %v4961 = vadd.f32 %v4444, %v4705
    %v4962 = vadd.f32 %v4445, %v4706
    %v4963 = vadd.f32 %v4446, %v4707
    %v4964 = vadd.f32 %v4447, %v4708
    %v4965 = vadd.f32 %v4448, %v4709
    %v4966 = vadd.f32 %v4449, %v4710
    %v4967 = vadd.f32 %v4450, %v4711
    %v4968 = vadd.f32 %v4451, %v4712
    %v4969 = vadd.f32 %v4452, %v4713
    %v4970 = vadd.f32 %v4453, %v4714
    %v4971 = vadd.f32 %v4454, %v4715
    %v4972 = vadd.f32 %v4455, %v4716
    %v4973 = vadd.f32 %v4456, %v4717
    %v4974 = vadd.f32 %v4457, %v4718
    %v4975 = vadd.f32 %v4458, %v4719
    %v4976 = vadd.f32 %v4459, %v4720
    %v4977 = vadd.f32 %v4460, %v4721
    %v4978 = vadd.f32 %v4461, %v4722
    %v4979 = vadd.f32 %v4462, %v4723
    %v4980 = vadd.f32 %v4463, %v4724
    %v4981 = vadd.f32 %v4464, %v4725
    %v4982 = vadd.f32 %v4465, %v4726
    %v4983 = vadd.f32 %v4466, %v4727
    %v4984 = vadd.f32 %v4467, %v4728
    %v4985 = vadd.f32 %v4468, %v4729
    %v4986 = vadd.f32 %v4469, %v4730
    %v4987 = vadd.f32 %v4470, %v4731
    %v4988 = vadd.f32 %v4471, %v4732
    %v4989 = vadd.f32 %v4472, %v4733
    %v4990 = vadd.f32 %v4473, %v4734
    %v4991 = vadd.f32 %v4474, %v4735
    %v4992 = vadd.f32 %v4475, %v4736
    %v4993 = vadd.f32 %v4476, %v4737
    %v4994 = vadd.f32 %v4477, %v4738
    %v4995 = vadd.f32 %v4478, %v4739
    %v4996 = vadd.f32 %v4479, %v4740
    %v4997 = vadd.f32 %v4480, %v4741
    %v4998 = vadd.f32 %v4481, %v4742
    %v4999 = vadd.f32 %v4482, %v4743
    %v5000 = vadd.f32 %v4483, %v4744
    %v5001 = vadd.f32 %v4484, %v4745
    %v5002 = vadd.f32 %v4485, %v4746
    %v5003 = vadd.f32 %v4486, %v4747
    %v5004 = vadd.f32 %v4487, %v4748
    %v5005 = vadd.f32 %v4488, %v4749
    %v5006 = vadd.f32 %v4489, %v4750
    %v5007 = vadd.f32 %v4490, %v4751
    %v5008 = vadd.f32 %v4491, %v4752
    %v5009 = vadd.f32 %v4492, %v4753
    %v5010 = vadd.f32 %v4493, %v4754
    %v5011 = vadd.f32 %v4494, %v4755
    %v5012 = vadd.f32 %v4495, %v4756
    %v5013 = vadd.f32 %v4496, %v4757
    %v5014 = vadd.f32 %v4497, %v4758
    %v5015 = vadd.f32 %v4498, %v4759
    %v5016 = vadd.f32 %v4499, %v4760
    %v5017 = vadd.f32 %v4500, %v4761
    %v5018 = vadd.f32 %v4501, %v4762
    %v5019 = vadd.f32 %v4502, %v4763
    %v5020 = vadd.f32 %v4503, %v4764
    %v5021 = vadd.f32 %v4504, %v4765
    %v5022 = vadd.f32 %v4505, %v4766
    %v5023 = vadd.f32 %v4506, %v4767
    %v5024 = vadd.f32 %v4507, %v4768
    %v5025 = vadd.f32 %v4508, %v4769
    %v5026 = vadd.f32 %v4509, %v4770
    %v5027 = vadd.f32 %v4510, %v4771
    %v5028 = vadd.f32 %v4511, %v4772
    %v5029 = vadd.f32 %v4512, %v4773
    %v5030 = vadd.f32 %v4513, %v4774
    %v5031 = vadd.f32 %v4514, %v4775
    %v5032 = vadd.f32 %v4515, %v4776
    %v5033 = vadd.f32 %v4516, %v4777
    %v5034 = vadd.f32 %v4517, %v4778
    %v5035 = vadd.f32 %v4518, %v4779
    %v5036 = vadd.f32 %v4519, %v4780
    %v5037 = vadd.f32 %v4520, %v4781
    %v5038 = vadd.f32 %v4521, %v4782
    %v5039 = vadd.f32 %v4522, %v4783
    %v5040 = vadd.f32 %v4523, %v4784
    %v5041 = vadd.f32 %v4524, %v4785
    %v5042 = vadd.f32 %v4525, %v4786
    %v5043 = vadd.f32 %v4526, %v4787
    %v5044 = vadd.f32 %v4527, %v4788
    %v5045 = vadd.f32 %v4528, %v4789
    %v5046 = vadd.f32 %v4529, %v4790
    %v5047 = vadd.f32 %v4530, %v4791
    %v5048 = vadd.f32 %v4531, %v4792
    %v5049 = vadd.f32 %v4532, %v4793
    %v5050 = vadd.f32 %v4533, %v4794
    %v5051 = vadd.f32 %v4534, %v4795
    %v5052 = vadd.f32 %v4535, %v4796
    %v5053 = vadd.f32 %v4536, %v4797
    %v5054 = vadd.f32 %v4537, %v4798
    %v5055 = vadd.f32 %v4538, %v4799
    %v5056 = vadd.f32 %v4539, %v4800
    %v5057 = vadd.f32 %v4540, %v4801
    %v5058 = vadd.f32 %v4541, %v4802
    %v5059 = vadd.f32 %v4542, %v4803
    %v5060 = vadd.f32 %v4543, %v4804
    %v5061 = vadd.f32 %v4544, %v4805
    %v5062 = vadd.f32 %v4545, %v4806
    %v5063 = vadd.f32 %v4546, %v4807
    %v5064 = vadd.f32 %v4547, %v4808
    %v5065 = vadd.f32 %v4548, %v4809
    %v5066 = vadd.f32 %v4549, %v4810
    %v5067 = vadd.f32 %v4550, %v4811
    %v5068 = vadd.f32 %v4551, %v4812
    %v5069 = vadd.f32 %v4552, %v4813
    %v5070 = vadd.f32 %v4553, %v4814
    %v5071 = vadd.f32 %v4554, %v4815
    %v5072 = vadd.f32 %v4555, %v4816
    %v5073 = vadd.f32 %v4556, %v4817
    %v5074 = vadd.f32 %v4557, %v4818
    %v5075 = vadd.f32 %v4558, %v4819
    %v5076 = vadd.f32 %v4559, %v4820
    %v5077 = vadd.f32 %v4560, %v4821
    %v5078 = vadd.f32 %v4561, %v4822
    %v5079 = vadd.f32 %v4562, %v4823
    %v5080 = vadd.f32 %v4563, %v4824
    %v5081 = vadd.f32 %v4564, %v4825
    %v5082 = vadd.f32 %v4565, %v4826
    %v5083 = vadd.f32 %v4566, %v4827
    %v5084 = vadd.f32 %v4567, %v4828
    %v5085 = vadd.f32 %v4568, %v4829
    %v5086 = vadd.f32 %v4569, %v4830
    %v5087 = vadd.f32 %v4570, %v4831
    %v5088 = vadd.f32 %v4571, %v4832
    %v5089 = vadd.f32 %v4572, %v4833
    %v5090 = vadd.f32 %v4573, %v4834
    %v5091 = vadd.f32 %v4574, %v4835
    %v5092 = vadd.f32 %v4575, %v4836
    %v5093 = vadd.f32 %v4576, %v4837
    %v5094 = vadd.f32 %v4577, %v4838
    %v5095 = vadd.f32 %v4578, %v4839
    %v5096 = vadd.f32 %v4579, %v4840
    %v5097 = vadd.f32 %v4580, %v4841
    %v5098 = vadd.f32 %v4581, %v4842
    %v5099 = vadd.f32 %v4582, %v4843
    %v5100 = vadd.f32 %v4583, %v4844
    %v5101 = vadd.f32 %v4584, %v4845
    %v5102 = vadd.f32 %v4585, %v4846
    %v5103 = vadd.f32 %v4586, %v4847
    %v5104 = vadd.f32 %v4587, %v4848
    %v5105 = vadd.f32 %v4588, %v4849
    %v5106 = vadd.f32 %v4589, %v4850
    %v5107 = vadd.f32 %v4590, %v4851
    %v5108 = vadd.f32 %v4591, %v4852
    %v5109 = vadd.f32 %v4592, %v4853
    %5110 = vst [vmem:[#allocation10] sm:$0xff] %v4854
    %5111 = vst [vmem:[#allocation10 + $0x8] sm:$0xff] %v4855
    %5112 = vst [vmem:[#allocation10 + $0x10] sm:$0xff] %v4856
    %5113 = vst [vmem:[#allocation10 + $0x18] sm:$0xff] %v4857
    %5114 = vst [vmem:[#allocation10 + $0x20] sm:$0xff] %v4858
    %5115 = vst [vmem:[#allocation10 + $0x28] sm:$0xff] %v4859
    %5116 = vst [vmem:[#allocation10 + $0x30] sm:$0xff] %v4860
    %5117 = vst [vmem:[#allocation10 + $0x38] sm:$0xff] %v4861
    %5118 = vst [vmem:[#allocation10 + $0x40] sm:$0xff] %v4862
    %5119 = vst [vmem:[#allocation10 + $0x48] sm:$0xff] %v4863
    %5120 = vst [vmem:[#allocation10 + $0x50] sm:$0xff] %v4864
    %5121 = vst [vmem:[#allocation10 + $0x58] sm:$0xff] %v4865
    %5122 = vst [vmem:[#allocation10 + $0x60] sm:$0xff] %v4866
    %5123 = vst [vmem:[#allocation10 + $0x68] sm:$0xff] %v4867
    %5124 = vst [vmem:[#allocation10 + $0x70] sm:$0xff] %v4868
    %5125 = vst [vmem:[#allocation10 + $0x78] sm:$0xff] %v4869
    %5126 = vst [vmem:[#allocation10 + $0x80] sm:$0xff] %v4870
    %5127 = vst [vmem:[#allocation10 + $0x88] sm:$0xff] %v4871
    %5128 = vst [vmem:[#allocation10 + $0x90] sm:$0xff] %v4872
    %5129 = vst [vmem:[#allocation10 + $0x98] sm:$0xff] %v4873
    %5130 = vst [vmem:[#allocation10 + $0xa0] sm:$0xff] %v4874
    %5131 = vst [vmem:[#allocation10 + $0xa8] sm:$0xff] %v4875
    %5132 = vst [vmem:[#allocation10 + $0xb0] sm:$0xff] %v4876
    %5133 = vst [vmem:[#allocation10 + $0xb8] sm:$0xff] %v4877
    %5134 = vst [vmem:[#allocation10 + $0xc0] sm:$0xff] %v4878
    %5135 = vst [vmem:[#allocation10 + $0xc8] sm:$0xff] %v4879
    %5136 = vst [vmem:[#allocation10 + $0xd0] sm:$0xff] %v4880
    %5137 = vst [vmem:[#allocation10 + $0xd8] sm:$0xff] %v4881
    %5138 = vst [vmem:[#allocation10 + $0xe0] sm:$0xff] %v4882
    %5139 = vst [vmem:[#allocation10 + $0xe8] sm:$0xff] %v4883
    %5140 = vst [vmem:[#allocation10 + $0xf0] sm:$0xff] %v4884
    %5141 = vst [vmem:[#allocation10 + $0xf8] sm:$0xff] %v4885
    %5142 = vst [vmem:[#allocation10 + $0x100] sm:$0xff] %v4886
    %5143 = vst [vmem:[#allocation10 + $0x108] sm:$0xff] %v4887
    %5144 = vst [vmem:[#allocation10 + $0x110] sm:$0xff] %v4888
    %5145 = vst [vmem:[#allocation10 + $0x118] sm:$0xff] %v4889
    %5146 = vst [vmem:[#allocation10 + $0x120] sm:$0xff] %v4890
    %5147 = vst [vmem:[#allocation10 + $0x128] sm:$0xff] %v4891
    %5148 = vst [vmem:[#allocation10 + $0x130] sm:$0xff] %v4892
    %5149 = vst [vmem:[#allocation10 + $0x138] sm:$0xff] %v4893
    %5150 = vst [vmem:[#allocation10 + $0x140] sm:$0xff] %v4894
    %5151 = vst [vmem:[#allocation10 + $0x148] sm:$0xff] %v4895
    %5152 = vst [vmem:[#allocation10 + $0x150] sm:$0xff] %v4896
    %5153 = vst [vmem:[#allocation10 + $0x158] sm:$0xff] %v4897
    %5154 = vst [vmem:[#allocation10 + $0x160] sm:$0xff] %v4898
    %5155 = vst [vmem:[#allocation10 + $0x168] sm:$0xff] %v4899
    %5156 = vst [vmem:[#allocation10 + $0x170] sm:$0xff] %v4900
    %5157 = vst [vmem:[#allocation10 + $0x178] sm:$0xff] %v4901
    %5158 = vst [vmem:[#allocation10 + $0x180] sm:$0xff] %v4902
    %5159 = vst [vmem:[#allocation10 + $0x188] sm:$0xff] %v4903
    %5160 = vst [vmem:[#allocation10 + $0x190] sm:$0xff] %v4904
    %5161 = vst [vmem:[#allocation10 + $0x198] sm:$0xff] %v4905
    %5162 = vst [vmem:[#allocation10 + $0x1a0] sm:$0xff] %v4906
    %5163 = vst [vmem:[#allocation10 + $0x1a8] sm:$0xff] %v4907
    %5164 = vst [vmem:[#allocation10 + $0x1b0] sm:$0xff] %v4908
    %5165 = vst [vmem:[#allocation10 + $0x1b8] sm:$0xff] %v4909
    %5166 = vst [vmem:[#allocation10 + $0x1c0] sm:$0xff] %v4910
    %5167 = vst [vmem:[#allocation10 + $0x1c8] sm:$0xff] %v4911
    %5168 = vst [vmem:[#allocation10 + $0x1d0] sm:$0xff] %v4912
    %5169 = vst [vmem:[#allocation10 + $0x1d8] sm:$0xff] %v4913
    %5170 = vst [vmem:[#allocation10 + $0x1e0] sm:$0xff] %v4914
    %5171 = vst [vmem:[#allocation10 + $0x1e8] sm:$0xff] %v4915
    %5172 = vst [vmem:[#allocation10 + $0x1f0] sm:$0xff] %v4916
    %5173 = vst [vmem:[#allocation10 + $0x1f8] sm:$0xff] %v4917
    %5174 = vst [vmem:[#allocation10 + $0x200] sm:$0xff] %v4918
    %5175 = vst [vmem:[#allocation10 + $0x208] sm:$0xff] %v4919
    %5176 = vst [vmem:[#allocation10 + $0x210] sm:$0xff] %v4920
    %5177 = vst [vmem:[#allocation10 + $0x218] sm:$0xff] %v4921
    %5178 = vst [vmem:[#allocation10 + $0x220] sm:$0xff] %v4922
    %5179 = vst [vmem:[#allocation10 + $0x228] sm:$0xff] %v4923
    %5180 = vst [vmem:[#allocation10 + $0x230] sm:$0xff] %v4924
    %5181 = vst [vmem:[#allocation10 + $0x238] sm:$0xff] %v4925
    %5182 = vst [vmem:[#allocation10 + $0x240] sm:$0xff] %v4926
    %5183 = vst [vmem:[#allocation10 + $0x248] sm:$0xff] %v4927
    %5184 = vst [vmem:[#allocation10 + $0x250] sm:$0xff] %v4928
    %5185 = vst [vmem:[#allocation10 + $0x258] sm:$0xff] %v4929
    %5186 = vst [vmem:[#allocation10 + $0x260] sm:$0xff] %v4930
    %5187 = vst [vmem:[#allocation10 + $0x268] sm:$0xff] %v4931
    %5188 = vst [vmem:[#allocation10 + $0x270] sm:$0xff] %v4932
    %5189 = vst [vmem:[#allocation10 + $0x278] sm:$0xff] %v4933
    %5190 = vst [vmem:[#allocation10 + $0x280] sm:$0xff] %v4934
    %5191 = vst [vmem:[#allocation10 + $0x288] sm:$0xff] %v4935
    %5192 = vst [vmem:[#allocation10 + $0x290] sm:$0xff] %v4936
    %5193 = vst [vmem:[#allocation10 + $0x298] sm:$0xff] %v4937
    %5194 = vst [vmem:[#allocation10 + $0x2a0] sm:$0xff] %v4938
    %5195 = vst [vmem:[#allocation10 + $0x2a8] sm:$0xff] %v4939
    %5196 = vst [vmem:[#allocation10 + $0x2b0] sm:$0xff] %v4940
    %5197 = vst [vmem:[#allocation10 + $0x2b8] sm:$0xff] %v4941
    %5198 = vst [vmem:[#allocation10 + $0x2c0] sm:$0xff] %v4942
    %5199 = vst [vmem:[#allocation10 + $0x2c8] sm:$0xff] %v4943
    %5200 = vst [vmem:[#allocation10 + $0x2d0] sm:$0xff] %v4944
    %5201 = vst [vmem:[#allocation10 + $0x2d8] sm:$0xff] %v4945
    %5202 = vst [vmem:[#allocation10 + $0x2e0] sm:$0xff] %v4946
    %5203 = vst [vmem:[#allocation10 + $0x2e8] sm:$0xff] %v4947
    %5204 = vst [vmem:[#allocation10 + $0x2f0] sm:$0xff] %v4948
    %5205 = vst [vmem:[#allocation10 + $0x2f8] sm:$0xff] %v4949
    %5206 = vst [vmem:[#allocation10 + $0x300] sm:$0xff] %v4950
    %5207 = vst [vmem:[#allocation10 + $0x308] sm:$0xff] %v4951
    %5208 = vst [vmem:[#allocation10 + $0x310] sm:$0xff] %v4952
    %5209 = vst [vmem:[#allocation10 + $0x318] sm:$0xff] %v4953
    %5210 = vst [vmem:[#allocation10 + $0x320] sm:$0xff] %v4954
    %5211 = vst [vmem:[#allocation10 + $0x328] sm:$0xff] %v4955
    %5212 = vst [vmem:[#allocation10 + $0x330] sm:$0xff] %v4956
    %5213 = vst [vmem:[#allocation10 + $0x338] sm:$0xff] %v4957
    %5214 = vst [vmem:[#allocation10 + $0x340] sm:$0xff] %v4958
    %5215 = vst [vmem:[#allocation10 + $0x348] sm:$0xff] %v4959
    %5216 = vst [vmem:[#allocation10 + $0x350] sm:$0xff] %v4960
    %5217 = vst [vmem:[#allocation10 + $0x358] sm:$0xff] %v4961
    %5218 = vst [vmem:[#allocation10 + $0x360] sm:$0xff] %v4962
    %5219 = vst [vmem:[#allocation10 + $0x368] sm:$0xff] %v4963
    %5220 = vst [vmem:[#allocation10 + $0x370] sm:$0xff] %v4964
    %5221 = vst [vmem:[#allocation10 + $0x378] sm:$0xff] %v4965
    %5222 = vst [vmem:[#allocation10 + $0x380] sm:$0xff] %v4966
    %5223 = vst [vmem:[#allocation10 + $0x388] sm:$0xff] %v4967
    %5224 = vst [vmem:[#allocation10 + $0x390] sm:$0xff] %v4968
    %5225 = vst [vmem:[#allocation10 + $0x398] sm:$0xff] %v4969
    %5226 = vst [vmem:[#allocation10 + $0x3a0] sm:$0xff] %v4970
    %5227 = vst [vmem:[#allocation10 + $0x3a8] sm:$0xff] %v4971
    %5228 = vst [vmem:[#allocation10 + $0x3b0] sm:$0xff] %v4972
    %5229 = vst [vmem:[#allocation10 + $0x3b8] sm:$0xff] %v4973
    %5230 = vst [vmem:[#allocation10 + $0x3c0] sm:$0xff] %v4974
    %5231 = vst [vmem:[#allocation10 + $0x3c8] sm:$0xff] %v4975
    %5232 = vst [vmem:[#allocation10 + $0x3d0] sm:$0xff] %v4976
    %5233 = vst [vmem:[#allocation10 + $0x3d8] sm:$0xff] %v4977
    %5234 = vst [vmem:[#allocation10 + $0x3e0] sm:$0xff] %v4978
    %5235 = vst [vmem:[#allocation10 + $0x3e8] sm:$0xff] %v4979
    %5236 = vst [vmem:[#allocation10 + $0x3f0] sm:$0xff] %v4980
    %5237 = vst [vmem:[#allocation10 + $0x3f8] sm:$0xff] %v4981
    %5238 = vst [vmem:[#allocation10 + $0x400] sm:$0xff] %v4982
    %5239 = vst [vmem:[#allocation10 + $0x408] sm:$0xff] %v4983
    %5240 = vst [vmem:[#allocation10 + $0x410] sm:$0xff] %v4984
    %5241 = vst [vmem:[#allocation10 + $0x418] sm:$0xff] %v4985
    %5242 = vst [vmem:[#allocation10 + $0x420] sm:$0xff] %v4986
    %5243 = vst [vmem:[#allocation10 + $0x428] sm:$0xff] %v4987
    %5244 = vst [vmem:[#allocation10 + $0x430] sm:$0xff] %v4988
    %5245 = vst [vmem:[#allocation10 + $0x438] sm:$0xff] %v4989
    %5246 = vst [vmem:[#allocation10 + $0x440] sm:$0xff] %v4990
    %5247 = vst [vmem:[#allocation10 + $0x448] sm:$0xff] %v4991
    %5248 = vst [vmem:[#allocation10 + $0x450] sm:$0xff] %v4992
    %5249 = vst [vmem:[#allocation10 + $0x458] sm:$0xff] %v4993
    %5250 = vst [vmem:[#allocation10 + $0x460] sm:$0xff] %v4994
    %5251 = vst [vmem:[#allocation10 + $0x468] sm:$0xff] %v4995
    %5252 = vst [vmem:[#allocation10 + $0x470] sm:$0xff] %v4996
    %5253 = vst [vmem:[#allocation10 + $0x478] sm:$0xff] %v4997
    %5254 = vst [vmem:[#allocation10 + $0x480] sm:$0xff] %v4998
    %5255 = vst [vmem:[#allocation10 + $0x488] sm:$0xff] %v4999
    %5256 = vst [vmem:[#allocation10 + $0x490] sm:$0xff] %v5000
    %5257 = vst [vmem:[#allocation10 + $0x498] sm:$0xff] %v5001
    %5258 = vst [vmem:[#allocation10 + $0x4a0] sm:$0xff] %v5002
    %5259 = vst [vmem:[#allocation10 + $0x4a8] sm:$0xff] %v5003
    %5260 = vst [vmem:[#allocation10 + $0x4b0] sm:$0xff] %v5004
    %5261 = vst [vmem:[#allocation10 + $0x4b8] sm:$0xff] %v5005
    %5262 = vst [vmem:[#allocation10 + $0x4c0] sm:$0xff] %v5006
    %5263 = vst [vmem:[#allocation10 + $0x4c8] sm:$0xff] %v5007
    %5264 = vst [vmem:[#allocation10 + $0x4d0] sm:$0xff] %v5008
    %5265 = vst [vmem:[#allocation10 + $0x4d8] sm:$0xff] %v5009
    %5266 = vst [vmem:[#allocation10 + $0x4e0] sm:$0xff] %v5010
    %5267 = vst [vmem:[#allocation10 + $0x4e8] sm:$0xff] %v5011
    %5268 = vst [vmem:[#allocation10 + $0x4f0] sm:$0xff] %v5012
    %5269 = vst [vmem:[#allocation10 + $0x4f8] sm:$0xff] %v5013
    %5270 = vst [vmem:[#allocation10 + $0x500] sm:$0xff] %v5014
    %5271 = vst [vmem:[#allocation10 + $0x508] sm:$0xff] %v5015
    %5272 = vst [vmem:[#allocation10 + $0x510] sm:$0xff] %v5016
    %5273 = vst [vmem:[#allocation10 + $0x518] sm:$0xff] %v5017
    %5274 = vst [vmem:[#allocation10 + $0x520] sm:$0xff] %v5018
    %5275 = vst [vmem:[#allocation10 + $0x528] sm:$0xff] %v5019
    %5276 = vst [vmem:[#allocation10 + $0x530] sm:$0xff] %v5020
    %5277 = vst [vmem:[#allocation10 + $0x538] sm:$0xff] %v5021
    %5278 = vst [vmem:[#allocation10 + $0x540] sm:$0xff] %v5022
    %5279 = vst [vmem:[#allocation10 + $0x548] sm:$0xff] %v5023
    %5280 = vst [vmem:[#allocation10 + $0x550] sm:$0xff] %v5024
    %5281 = vst [vmem:[#allocation10 + $0x558] sm:$0xff] %v5025
    %5282 = vst [vmem:[#allocation10 + $0x560] sm:$0xff] %v5026
    %5283 = vst [vmem:[#allocation10 + $0x568] sm:$0xff] %v5027
    %5284 = vst [vmem:[#allocation10 + $0x570] sm:$0xff] %v5028
    %5285 = vst [vmem:[#allocation10 + $0x578] sm:$0xff] %v5029
    %5286 = vst [vmem:[#allocation10 + $0x580] sm:$0xff] %v5030
    %5287 = vst [vmem:[#allocation10 + $0x588] sm:$0xff] %v5031
    %5288 = vst [vmem:[#allocation10 + $0x590] sm:$0xff] %v5032
    %5289 = vst [vmem:[#allocation10 + $0x598] sm:$0xff] %v5033
    %5290 = vst [vmem:[#allocation10 + $0x5a0] sm:$0xff] %v5034
    %5291 = vst [vmem:[#allocation10 + $0x5a8] sm:$0xff] %v5035
    %5292 = vst [vmem:[#allocation10 + $0x5b0] sm:$0xff] %v5036
    %5293 = vst [vmem:[#allocation10 + $0x5b8] sm:$0xff] %v5037
    %5294 = vst [vmem:[#allocation10 + $0x5c0] sm:$0xff] %v5038
    %5295 = vst [vmem:[#allocation10 + $0x5c8] sm:$0xff] %v5039
    %5296 = vst [vmem:[#allocation10 + $0x5d0] sm:$0xff] %v5040
    %5297 = vst [vmem:[#allocation10 + $0x5d8] sm:$0xff] %v5041
    %5298 = vst [vmem:[#allocation10 + $0x5e0] sm:$0xff] %v5042
    %5299 = vst [vmem:[#allocation10 + $0x5e8] sm:$0xff] %v5043
    %5300 = vst [vmem:[#allocation10 + $0x5f0] sm:$0xff] %v5044
    %5301 = vst [vmem:[#allocation10 + $0x5f8] sm:$0xff] %v5045
    %5302 = vst [vmem:[#allocation10 + $0x600] sm:$0xff] %v5046
    %5303 = vst [vmem:[#allocation10 + $0x608] sm:$0xff] %v5047
    %5304 = vst [vmem:[#allocation10 + $0x610] sm:$0xff] %v5048
    %5305 = vst [vmem:[#allocation10 + $0x618] sm:$0xff] %v5049
    %5306 = vst [vmem:[#allocation10 + $0x620] sm:$0xff] %v5050
    %5307 = vst [vmem:[#allocation10 + $0x628] sm:$0xff] %v5051
    %5308 = vst [vmem:[#allocation10 + $0x630] sm:$0xff] %v5052
    %5309 = vst [vmem:[#allocation10 + $0x638] sm:$0xff] %v5053
    %5310 = vst [vmem:[#allocation10 + $0x640] sm:$0xff] %v5054
    %5311 = vst [vmem:[#allocation10 + $0x648] sm:$0xff] %v5055
    %5312 = vst [vmem:[#allocation10 + $0x650] sm:$0xff] %v5056
    %5313 = vst [vmem:[#allocation10 + $0x658] sm:$0xff] %v5057
    %5314 = vst [vmem:[#allocation10 + $0x660] sm:$0xff] %v5058
    %5315 = vst [vmem:[#allocation10 + $0x668] sm:$0xff] %v5059
    %5316 = vst [vmem:[#allocation10 + $0x670] sm:$0xff] %v5060
    %5317 = vst [vmem:[#allocation10 + $0x678] sm:$0xff] %v5061
    %5318 = vst [vmem:[#allocation10 + $0x680] sm:$0xff] %v5062
    %5319 = vst [vmem:[#allocation10 + $0x688] sm:$0xff] %v5063
    %5320 = vst [vmem:[#allocation10 + $0x690] sm:$0xff] %v5064
    %5321 = vst [vmem:[#allocation10 + $0x698] sm:$0xff] %v5065
    %5322 = vst [vmem:[#allocation10 + $0x6a0] sm:$0xff] %v5066
    %5323 = vst [vmem:[#allocation10 + $0x6a8] sm:$0xff] %v5067
    %5324 = vst [vmem:[#allocation10 + $0x6b0] sm:$0xff] %v5068
    %5325 = vst [vmem:[#allocation10 + $0x6b8] sm:$0xff] %v5069
    %5326 = vst [vmem:[#allocation10 + $0x6c0] sm:$0xff] %v5070
    %5327 = vst [vmem:[#allocation10 + $0x6c8] sm:$0xff] %v5071
    %5328 = vst [vmem:[#allocation10 + $0x6d0] sm:$0xff] %v5072
    %5329 = vst [vmem:[#allocation10 + $0x6d8] sm:$0xff] %v5073
    %5330 = vst [vmem:[#allocation10 + $0x6e0] sm:$0xff] %v5074
    %5331 = vst [vmem:[#allocation10 + $0x6e8] sm:$0xff] %v5075
    %5332 = vst [vmem:[#allocation10 + $0x6f0] sm:$0xff] %v5076
    %5333 = vst [vmem:[#allocation10 + $0x6f8] sm:$0xff] %v5077
    %5334 = vst [vmem:[#allocation10 + $0x700] sm:$0xff] %v5078
    %5335 = vst [vmem:[#allocation10 + $0x708] sm:$0xff] %v5079
    %5336 = vst [vmem:[#allocation10 + $0x710] sm:$0xff] %v5080
    %5337 = vst [vmem:[#allocation10 + $0x718] sm:$0xff] %v5081
    %5338 = vst [vmem:[#allocation10 + $0x720] sm:$0xff] %v5082
    %5339 = vst [vmem:[#allocation10 + $0x728] sm:$0xff] %v5083
    %5340 = vst [vmem:[#allocation10 + $0x730] sm:$0xff] %v5084
    %5341 = vst [vmem:[#allocation10 + $0x738] sm:$0xff] %v5085
    %5342 = vst [vmem:[#allocation10 + $0x740] sm:$0xff] %v5086
    %5343 = vst [vmem:[#allocation10 + $0x748] sm:$0xff] %v5087
    %5344 = vst [vmem:[#allocation10 + $0x750] sm:$0xff] %v5088
    %5345 = vst [vmem:[#allocation10 + $0x758] sm:$0xff] %v5089
    %5346 = vst [vmem:[#allocation10 + $0x760] sm:$0xff] %v5090
    %5347 = vst [vmem:[#allocation10 + $0x768] sm:$0xff] %v5091
    %5348 = vst [vmem:[#allocation10 + $0x770] sm:$0xff] %v5092
    %5349 = vst [vmem:[#allocation10 + $0x778] sm:$0xff] %v5093
    %5350 = vst [vmem:[#allocation10 + $0x780] sm:$0xff] %v5094
    %5351 = vst [vmem:[#allocation10 + $0x788] sm:$0xff] %v5095
    %5352 = vst [vmem:[#allocation10 + $0x790] sm:$0xff] %v5096
    %5353 = vst [vmem:[#allocation10 + $0x798] sm:$0xff] %v5097
    %5354 = vst [vmem:[#allocation10 + $0x7a0] sm:$0xff] %v5098
    %5355 = vst [vmem:[#allocation10 + $0x7a8] sm:$0xff] %v5099
    %5356 = vst [vmem:[#allocation10 + $0x7b0] sm:$0xff] %v5100
    %5357 = vst [vmem:[#allocation10 + $0x7b8] sm:$0xff] %v5101
    %5358 = vst [vmem:[#allocation10 + $0x7c0] sm:$0xff] %v5102
    %5359 = vst [vmem:[#allocation10 + $0x7c8] sm:$0xff] %v5103
    %5360 = vst [vmem:[#allocation10 + $0x7d0] sm:$0xff] %v5104
    %5361 = vst [vmem:[#allocation10 + $0x7d8] sm:$0xff] %v5105
    %5362 = vst [vmem:[#allocation10 + $0x7e0] sm:$0xff] %v5106
    %5363 = vst [vmem:[#allocation10 + $0x7e8] sm:$0xff] %v5107
    %5364 = vst [vmem:[#allocation10 + $0x7f0] sm:$0xff] %v5108
    %5365 = vst [vmem:[#allocation10 + $0x7f8] sm:$0xff] %v5109
    // Predicated region
    $region42: #{tpu_custom_call.1} parent=1 // pred_check
      _
    $region43: #{tpu_custom_call.1} parent=1 // pred_check_branch
      %5367 = sbr.rel (0) target = $region45
    $region44: #{tpu_custom_call.1} parent=1 // pred_region
      %s5369 = ssub.s32 32768, 32768
      %5370 = vsyncadd [#allocation4], %s5369
      %s5371 = sshll.u32 [#allocation10], 4
      %s5372 = int_to_ptr.vmem [resolvable:$true] %s5371
      %5377 = dma.vmem_to_hbm [thread:$0]  %s5372, 32768, %s6, [#allocation4], 256, 256, 16
    $region45: #{tpu_custom_call.1} parent=1 // pred_fallthru
      _
    // Predicated region
    $region46: #{tpu_custom_call.1} parent=1 // pred_check
      _
    $region47: #{tpu_custom_call.1} parent=1 // pred_check_branch
      %5379 = sbr.rel (0) target = $region49
    $region48: #{tpu_custom_call.1} parent=1 // pred_region
      %5380 = dma.done [#allocation4], 32768
    $region49: #{tpu_custom_call.1} parent=1 // pred_fallthru
      _
    %5381 = vsyncpa [#allocation3], 1
    %5382 = vsyncpa [#allocation6], 1
    %5383 = vsyncpa [#allocation9], 1
    %5384 = vsyncpa [#allocation4], 1

</llo_original>
